<compile_context>
chip_gen: v5e
topology: v5e:2x2
jax: 0.10.0
libtpu: 0.0.40
codegen_flags: <defaults>
</compile_context>

<pallas_src>
import jax
import jax.numpy as jnp
import numpy as np
from jax.experimental import pallas as pl
from jax.experimental.pallas import tpu as pltpu


# -----------------------------------------------------------------------------
# Pallas kernel: full GRU(2 layers) + MLP head forward for one (padded) batch.
# -----------------------------------------------------------------------------
def gru_mlp_kernel(
    x_ref,        # (T*Bp, I) f32, time-major: row t*Bp + b holds x[b, t, :]
    w_ih0_ref,    # (3, I, H) f32   layer-0 input weights, gate order [r|z|n]
    w_hh0_ref,    # (3, H, H) bf16  layer-0 recurrent weights
    bias0_ref,    # (3, 1, H) f32   r: b_ir+b_hr, z: b_iz+b_hz, n: b_in
    bhn0_ref,     # (1, H)    f32   layer-0 b_hn (stays inside r * (.))
    w_ih1_ref,    # (3, H, H) bf16  layer-1 input weights
    w_hh1_ref,    # (3, H, H) bf16  layer-1 recurrent weights
    bias1_ref,    # (3, 1, H) f32
    bhn1_ref,     # (1, H)    f32
    w1_ref,       # (T*H, 128) bf16
    b1_ref,       # (1, 128)   f32
    w2_ref,       # (128, 64)  bf16
    b2_ref,       # (1, 64)    f32
    w3_ref,       # (1, 64)    f32
    b3_ref,       # (1, 1)     f32
    out_ref,      # (Bp, 1)    f32
):
    Bp = out_ref.shape[0]
    TBp = x_ref.shape[0]
    T = TBp // Bp
    H = w_hh0_ref.shape[1]

    f32 = jnp.float32
    bf16 = jnp.bfloat16

    def mm(a, b):
        # Single-pass bf16 MXU with f32 accumulation.
        return jnp.dot(a, b, preferred_element_type=f32)

    def sigmoid(v):
        # tanh-form sigmoid: 1 EUP op per gate (vs exp + reciprocal).
        return 0.5 * jnp.tanh(0.5 * v) + 0.5

    # ---- Loop-invariant weight / bias loads (hoisted once) ----
    wh0_r = w_hh0_ref[0]; wh0_z = w_hh0_ref[1]; wh0_n = w_hh0_ref[2]
    wi1_r = w_ih1_ref[0]; wi1_z = w_ih1_ref[1]; wi1_n = w_ih1_ref[2]
    wh1_r = w_hh1_ref[0]; wh1_z = w_hh1_ref[1]; wh1_n = w_hh1_ref[2]
    b1r = jnp.broadcast_to(bias1_ref[0], (Bp, H))
    b1z = jnp.broadcast_to(bias1_ref[1], (Bp, H))
    b1n = jnp.broadcast_to(bias1_ref[2], (Bp, H))
    bhn0 = jnp.broadcast_to(bhn0_ref[...], (Bp, H))
    bhn1 = jnp.broadcast_to(bhn1_ref[...], (Bp, H))

    # ---- Layer-0 input projection for ALL timesteps, per gate (lane-aligned),
    #      hoisted off the serial recurrence path.  Biases pre-folded. ----
    x = x_ref[...]
    xp_r = mm(x, w_ih0_ref[0]) + bias0_ref[0]     # (T*Bp, H) f32
    xp_z = mm(x, w_ih0_ref[1]) + bias0_ref[1]
    xp_n = mm(x, w_ih0_ref[2]) + bias0_ref[2]

    h0 = jnp.zeros((Bp, H), f32)
    h1 = jnp.zeros((Bp, H), f32)
    h1_steps = []

    # Static Python loop: T is small & static, so every slice below is a
    # static, sublane-aligned (multiple-of-8 rows) extract and the scheduler
    # can overlap adjacent steps' MXU / EUP / VPU work.
    for t in range(T):
        lo = t * Bp
        # --- GRU layer 0: only the recurrent matmuls remain on the chain ---
        h0b = h0.astype(bf16)
        r0 = sigmoid(xp_r[lo:lo + Bp, :] + mm(h0b, wh0_r))
        z0 = sigmoid(xp_z[lo:lo + Bp, :] + mm(h0b, wh0_z))
        n0 = jnp.tanh(xp_n[lo:lo + Bp, :] + r0 * (mm(h0b, wh0_n) + bhn0))
        h0 = n0 + z0 * (h0 - n0)                  # == (1-z)*n + z*h_prev
        # --- GRU layer 1 (input = this step's layer-0 output) ---
        h0b = h0.astype(bf16)
        h1b = h1.astype(bf16)
        r1 = sigmoid(mm(h0b, wi1_r) + b1r + mm(h1b, wh1_r))
        z1 = sigmoid(mm(h0b, wi1_z) + b1z + mm(h1b, wh1_z))
        n1 = jnp.tanh(mm(h0b, wi1_n) + b1n + r1 * (mm(h1b, wh1_n) + bhn1))
        h1 = n1 + z1 * (h1 - n1)
        h1_steps.append(h1)

    # ---- fc1 deferred to after the loop (MRF-friendly on v5e/v6e): one
    #      (Bp, T*H) @ (T*H, 128) matmul on the concatenated step outputs.
    #      Column order of the concat matches torch's out.reshape(B, -1). ----
    flat = jnp.concatenate(h1_steps, axis=-1).astype(bf16)       # (Bp, T*H)
    a1 = jnp.maximum(mm(flat, w1_ref[...]) + b1_ref[...], 0.0)   # (Bp, 128)
    a2 = jnp.maximum(mm(a1.astype(bf16), w2_ref[...]) + b2_ref[...], 0.0)
    # fc3 (64 -> 1): multiply + lane reduction (XLU) instead of N=1 MXU matmul.
    out_ref[...] = jnp.sum(a2 * w3_ref[...], axis=-1, keepdims=True) + b3_ref[...]


# -----------------------------------------------------------------------------
# Wrapper: packs / splits / casts parameters and pads the batch.
# -----------------------------------------------------------------------------
def gru_mlp_forward(x, params):
    """x: (B, T, I) float32 -> (B, 1) float32."""
    B, T, I = x.shape
    H = params["w_hh0"].shape[0]
    assert params["w1"].shape[0] == T * H

    # Pad batch to one full sublane tile (8 rows): B=2 would waste 75% of
    # every vreg.  Padded rows compute harmless values and are dropped below.
    Bp = max(8, ((B + 7) // 8) * 8)
    x_pad = jnp.zeros((Bp, T, I), jnp.float32).at[:B].set(x.astype(jnp.float32))

    # Time-major flatten: row t*Bp + b holds x[b, t, :]; each timestep is the
    # sublane-aligned row block [t*Bp, (t+1)*Bp).
    x_flat = jnp.transpose(x_pad, (1, 0, 2)).reshape(T * Bp, I)

    def split_w(w):      # (in, 3H) -> (3, in, H), gate order [r|z|n]
        return jnp.transpose(w.reshape(w.shape[0], 3, H), (1, 0, 2))

    def split_b(b):      # (1, 3H) -> (3, 1, H)
        return jnp.transpose(b.reshape(1, 3, H), (1, 0, 2))

    bf = lambda a: a.astype(jnp.bfloat16)
    f32 = lambda a: a.astype(jnp.float32)

    b_i0, b_h0 = split_b(params["b_i0"]), split_b(params["b_h0"])
    b_i1, b_h1 = split_b(params["b_i1"]), split_b(params["b_h1"])
    # Fold biases: r/z gates take b_i + b_h; n gate keeps b_in here, b_hn
    # separately (it must stay inside r * (.)).
    bias0 = jnp.concatenate([b_i0[0:1] + b_h0[0:1],
                             b_i0[1:2] + b_h0[1:2],
                             b_i0[2:3]], axis=0)
    bias1 = jnp.concatenate([b_i1[0:1] + b_h1[0:1],
                             b_i1[1:2] + b_h1[1:2],
                             b_i1[2:3]], axis=0)

    args = [
        x_flat,
        f32(split_w(params["w_ih0"])),            # tiny (I=4) projection, f32
        bf(split_w(params["w_hh0"])),
        f32(bias0), f32(b_h0[2]),
        bf(split_w(params["w_ih1"])),
        bf(split_w(params["w_hh1"])),
        f32(bias1), f32(b_h1[2]),
        bf(params["w1"]), f32(params["b1"]),
        bf(params["w2"]), f32(params["b2"]),
        f32(params["w3"]), f32(params["b3"]),
    ]

    # Grid-less call: total VMEM footprint is ~150 KiB, tiny on v5e/v6e/v7x.
    # TODO(synk): for non-toy batch sizes add a leading grid axis over batch
    # tiles with dimension_semantics=(pltpu.PARALLEL,) (uses v7x's 2nd TC) and
    # constant-index weight BlockSpecs so weights stay VMEM-resident.
    out = pl.pallas_call(
        gru_mlp_kernel,
        out_shape=jax.ShapeDtypeStruct((Bp, 1), jnp.float32),
        in_specs=[pl.BlockSpec(memory_space=pltpu.MemorySpace.VMEM)] * len(args),
        out_specs=pl.BlockSpec(memory_space=pltpu.MemorySpace.VMEM),
    )(*args)
    return out[:B]


# -----------------------------------------------------------------------------
# Pure-JAX reference (mirrors the PyTorch forward, f32 HIGHEST precision).
# -----------------------------------------------------------------------------
def gru_mlp_reference(x, p):
    B, T, I = x.shape
    H = p["w_hh0"].shape[0]

    def mm(a, b):
        return jnp.dot(a, b, preferred_element_type=jnp.float32,
                       precision=jax.lax.Precision.HIGHEST)

    def gru_layer(inp, w_ih, w_hh, b_ih, b_hh):
        h = jnp.zeros((B, H), jnp.float32)
        outs = []
        for t in range(T):
            gi = mm(inp[:, t, :], w_ih) + b_ih
            gh = mm(h, w_hh) + b_hh
            r = jax.nn.sigmoid(gi[:, :H] + gh[:, :H])
            z = jax.nn.sigmoid(gi[:, H:2 * H] + gh[:, H:2 * H])
            n = jnp.tanh(gi[:, 2 * H:] + r * gh[:, 2 * H:])
            h = (1.0 - z) * n + z * h
            outs.append(h)
        return jnp.stack(outs, axis=1)           # (B, T, H)

    out = gru_layer(x, p["w_ih0"], p["w_hh0"], p["b_i0"], p["b_h0"])
    # dropout = 0.0 between stacked layers (eval semantics): no-op.
    out = gru_layer(out, p["w_ih1"], p["w_hh1"], p["b_i1"], p["b_h1"])
    flat = out.reshape(B, T * H)                 # matches torch out.reshape(B, -1)
    a1 = jax.nn.relu(mm(flat, p["w1"]) + p["b1"])
    a2 = jax.nn.relu(mm(a1, p["w2"]) + p["b2"])
    return jnp.sum(a2 * p["w3"], axis=-1, keepdims=True) + p["b3"]


# -----------------------------------------------------------------------------
# Main
# -----------------------------------------------------------------------------
if __name__ == "__main__":
    # Small, module-consistent shapes.
    B = 2      # batch
    T = 8      # sequence_length
    I = 4      # input_size
    H = 32     # hidden_size
    # num_layers = 2, dropout = 0.0 (inference no-op), bidirectional = False

    key = jax.random.PRNGKey(0)
    ks = jax.random.split(key, 16)

    def uinit(k, shape, fan_in):
        s = 1.0 / np.sqrt(fan_in)
        return jax.random.uniform(k, shape, jnp.float32, -s, s)

    # Parameters stored pre-transposed for right-multiplication; GRU gate
    # column order is [r | z | n] (PyTorch convention).
    params = {
        # GRU layer 0
        "w_ih0": uinit(ks[0], (I, 3 * H), H),
        "w_hh0": uinit(ks[1], (H, 3 * H), H),
        "b_i0":  uinit(ks[2], (1, 3 * H), H),
        "b_h0":  uinit(ks[3], (1, 3 * H), H),
        # GRU layer 1
        "w_ih1": uinit(ks[4], (H, 3 * H), H),
        "w_hh1": uinit(ks[5], (H, 3 * H), H),
        "b_i1":  uinit(ks[6], (1, 3 * H), H),
        "b_h1":  uinit(ks[7], (1, 3 * H), H),
        # fc1: Linear(H*T, 128)
        "w1": uinit(ks[8], (T * H, 128), T * H),
        "b1": uinit(ks[9], (1, 128), T * H),
        # fc2: Linear(128, 64)
        "w2": uinit(ks[10], (128, 64), 128),
        "b2": uinit(ks[11], (1, 64), 128),
        # fc3: Linear(64, 1)
        "w3": uinit(ks[12], (1, 64), 64),
        "b3": uinit(ks[13], (1, 1), 64),
    }

    x = jax.random.normal(ks[14], (B, T, I), jnp.float32)

    out = jax.block_until_ready(gru_mlp_forward(x, params))
    ref = jax.block_until_ready(gru_mlp_reference(x, params))

    assert out.shape == (B, 1)
    # Kernel matmuls run at single-pass bf16 MXU precision with f32 accumulation,
    # the reference at Precision.HIGHEST f32, so allow ~1e-2-level deviation.
    np.testing.assert_allclose(np.asarray(out), np.asarray(ref),
                               rtol=2e-2, atol=2e-2)

    print("KERNEL_OK")
</pallas_src>

<mosaic_0001>
module attributes {stable_mosaic.version = 11 : i64} {
  func.func @gru_mlp_kernel(%arg0: memref<64x4xf32, #tpu.memory_space<vmem>>, %arg1: memref<3x4x32xf32, #tpu.memory_space<vmem>>, %arg2: memref<3x32x32xbf16, #tpu.memory_space<vmem>>, %arg3: memref<3x1x32xf32, #tpu.memory_space<vmem>>, %arg4: memref<1x32xf32, #tpu.memory_space<vmem>>, %arg5: memref<3x32x32xbf16, #tpu.memory_space<vmem>>, %arg6: memref<3x32x32xbf16, #tpu.memory_space<vmem>>, %arg7: memref<3x1x32xf32, #tpu.memory_space<vmem>>, %arg8: memref<1x32xf32, #tpu.memory_space<vmem>>, %arg9: memref<256x128xbf16, #tpu.memory_space<vmem>>, %arg10: memref<1x128xf32, #tpu.memory_space<vmem>>, %arg11: memref<128x64xbf16, #tpu.memory_space<vmem>>, %arg12: memref<1x64xf32, #tpu.memory_space<vmem>>, %arg13: memref<1x64xf32, #tpu.memory_space<vmem>>, %arg14: memref<1x1xf32, #tpu.memory_space<vmem>>, %arg15: memref<8x1xf32, #tpu.memory_space<vmem>>) attributes {dimension_semantics = [], scalar_prefetch = 0 : i64, scratch_operands = 0 : i64, tpu.core_type = #tpu.core_type<tc>} {
    %c0 = arith.constant 0 : index
    %c0_0 = arith.constant 0 : index
    %c0_1 = arith.constant 0 : index
    %0 = vector.load %arg2[%c0, %c0_0, %c0_1] : memref<3x32x32xbf16, #tpu.memory_space<vmem>>, vector<1x32x32xbf16>
    %1 = vector.shape_cast %0 : vector<1x32x32xbf16> to vector<32x32xbf16>
    %c1 = arith.constant 1 : index
    %c0_2 = arith.constant 0 : index
    %c0_3 = arith.constant 0 : index
    %2 = vector.load %arg2[%c1, %c0_2, %c0_3] : memref<3x32x32xbf16, #tpu.memory_space<vmem>>, vector<1x32x32xbf16>
    %3 = vector.shape_cast %2 : vector<1x32x32xbf16> to vector<32x32xbf16>
    %c2 = arith.constant 2 : index
    %c0_4 = arith.constant 0 : index
    %c0_5 = arith.constant 0 : index
    %4 = vector.load %arg2[%c2, %c0_4, %c0_5] : memref<3x32x32xbf16, #tpu.memory_space<vmem>>, vector<1x32x32xbf16>
    %5 = vector.shape_cast %4 : vector<1x32x32xbf16> to vector<32x32xbf16>
    %c0_6 = arith.constant 0 : index
    %c0_7 = arith.constant 0 : index
    %c0_8 = arith.constant 0 : index
    %6 = vector.load %arg5[%c0_6, %c0_7, %c0_8] : memref<3x32x32xbf16, #tpu.memory_space<vmem>>, vector<1x32x32xbf16>
    %7 = vector.shape_cast %6 : vector<1x32x32xbf16> to vector<32x32xbf16>
    %c1_9 = arith.constant 1 : index
    %c0_10 = arith.constant 0 : index
    %c0_11 = arith.constant 0 : index
    %8 = vector.load %arg5[%c1_9, %c0_10, %c0_11] : memref<3x32x32xbf16, #tpu.memory_space<vmem>>, vector<1x32x32xbf16>
    %9 = vector.shape_cast %8 : vector<1x32x32xbf16> to vector<32x32xbf16>
    %c2_12 = arith.constant 2 : index
    %c0_13 = arith.constant 0 : index
    %c0_14 = arith.constant 0 : index
    %10 = vector.load %arg5[%c2_12, %c0_13, %c0_14] : memref<3x32x32xbf16, #tpu.memory_space<vmem>>, vector<1x32x32xbf16>
    %11 = vector.shape_cast %10 : vector<1x32x32xbf16> to vector<32x32xbf16>
    %c0_15 = arith.constant 0 : index
    %c0_16 = arith.constant 0 : index
    %c0_17 = arith.constant 0 : index
    %12 = vector.load %arg6[%c0_15, %c0_16, %c0_17] : memref<3x32x32xbf16, #tpu.memory_space<vmem>>, vector<1x32x32xbf16>
    %13 = vector.shape_cast %12 : vector<1x32x32xbf16> to vector<32x32xbf16>
    %c1_18 = arith.constant 1 : index
    %c0_19 = arith.constant 0 : index
    %c0_20 = arith.constant 0 : index
    %14 = vector.load %arg6[%c1_18, %c0_19, %c0_20] : memref<3x32x32xbf16, #tpu.memory_space<vmem>>, vector<1x32x32xbf16>
    %15 = vector.shape_cast %14 : vector<1x32x32xbf16> to vector<32x32xbf16>
    %c2_21 = arith.constant 2 : index
    %c0_22 = arith.constant 0 : index
    %c0_23 = arith.constant 0 : index
    %16 = vector.load %arg6[%c2_21, %c0_22, %c0_23] : memref<3x32x32xbf16, #tpu.memory_space<vmem>>, vector<1x32x32xbf16>
    %17 = vector.shape_cast %16 : vector<1x32x32xbf16> to vector<32x32xbf16>
    %c0_24 = arith.constant 0 : index
    %c0_25 = arith.constant 0 : index
    %c0_26 = arith.constant 0 : index
    %18 = vector.load %arg7[%c0_24, %c0_25, %c0_26] : memref<3x1x32xf32, #tpu.memory_space<vmem>>, vector<1x1x32xf32>
    %19 = vector.shape_cast %18 : vector<1x1x32xf32> to vector<1x32xf32>
    %20 = vector.shape_cast %19 : vector<1x32xf32> to vector<1x32xf32>
    %21 = vector.broadcast %20 : vector<1x32xf32> to vector<8x32xf32>
    %c1_27 = arith.constant 1 : index
    %c0_28 = arith.constant 0 : index
    %c0_29 = arith.constant 0 : index
    %22 = vector.load %arg7[%c1_27, %c0_28, %c0_29] : memref<3x1x32xf32, #tpu.memory_space<vmem>>, vector<1x1x32xf32>
    %23 = vector.shape_cast %22 : vector<1x1x32xf32> to vector<1x32xf32>
    %24 = vector.shape_cast %23 : vector<1x32xf32> to vector<1x32xf32>
    %25 = vector.broadcast %24 : vector<1x32xf32> to vector<8x32xf32>
    %c2_30 = arith.constant 2 : index
    %c0_31 = arith.constant 0 : index
    %c0_32 = arith.constant 0 : index
    %26 = vector.load %arg7[%c2_30, %c0_31, %c0_32] : memref<3x1x32xf32, #tpu.memory_space<vmem>>, vector<1x1x32xf32>
    %27 = vector.shape_cast %26 : vector<1x1x32xf32> to vector<1x32xf32>
    %28 = vector.shape_cast %27 : vector<1x32xf32> to vector<1x32xf32>
    %29 = vector.broadcast %28 : vector<1x32xf32> to vector<8x32xf32>
    %c0_33 = arith.constant 0 : index
    %c0_34 = arith.constant 0 : index
    %30 = vector.load %arg4[%c0_33, %c0_34] : memref<1x32xf32, #tpu.memory_space<vmem>>, vector<1x32xf32>
    %31 = vector.shape_cast %30 : vector<1x32xf32> to vector<1x32xf32>
    %32 = vector.broadcast %31 : vector<1x32xf32> to vector<8x32xf32>
    %c0_35 = arith.constant 0 : index
    %c0_36 = arith.constant 0 : index
    %33 = vector.load %arg8[%c0_35, %c0_36] : memref<1x32xf32, #tpu.memory_space<vmem>>, vector<1x32xf32>
    %34 = vector.shape_cast %33 : vector<1x32xf32> to vector<1x32xf32>
    %35 = vector.broadcast %34 : vector<1x32xf32> to vector<8x32xf32>
    %c0_37 = arith.constant 0 : index
    %c0_38 = arith.constant 0 : index
    %36 = vector.load %arg0[%c0_37, %c0_38] : memref<64x4xf32, #tpu.memory_space<vmem>>, vector<64x4xf32>
    %c0_39 = arith.constant 0 : index
    %c0_40 = arith.constant 0 : index
    %c0_41 = arith.constant 0 : index
    %37 = vector.load %arg1[%c0_39, %c0_40, %c0_41] : memref<3x4x32xf32, #tpu.memory_space<vmem>>, vector<1x4x32xf32>
    %38 = vector.shape_cast %37 : vector<1x4x32xf32> to vector<4x32xf32>
    %cst = arith.constant dense<0.000000e+00> : vector<64x32xf32>
    %39 = tpu.matmul %36, %38, %cst {dimension_numbers = #tpu.dot_dimension_numbers<[1], [0], [0], [1], [0, 0, 1, 1], [], []>} : vector<64x4xf32>, vector<4x32xf32>, vector<64x32xf32> -> vector<64x32xf32>
    %c0_42 = arith.constant 0 : index
    %c0_43 = arith.constant 0 : index
    %c0_44 = arith.constant 0 : index
    %40 = vector.load %arg3[%c0_42, %c0_43, %c0_44] : memref<3x1x32xf32, #tpu.memory_space<vmem>>, vector<1x1x32xf32>
    %41 = vector.shape_cast %40 : vector<1x1x32xf32> to vector<1x32xf32>
    %42 = vector.broadcast %41 : vector<1x32xf32> to vector<64x32xf32>
    %43 = arith.addf %39, %42 : vector<64x32xf32>
    %c1_45 = arith.constant 1 : index
    %c0_46 = arith.constant 0 : index
    %c0_47 = arith.constant 0 : index
    %44 = vector.load %arg1[%c1_45, %c0_46, %c0_47] : memref<3x4x32xf32, #tpu.memory_space<vmem>>, vector<1x4x32xf32>
    %45 = vector.shape_cast %44 : vector<1x4x32xf32> to vector<4x32xf32>
    %cst_48 = arith.constant dense<0.000000e+00> : vector<64x32xf32>
    %46 = tpu.matmul %36, %45, %cst_48 {dimension_numbers = #tpu.dot_dimension_numbers<[1], [0], [0], [1], [0, 0, 1, 1], [], []>} : vector<64x4xf32>, vector<4x32xf32>, vector<64x32xf32> -> vector<64x32xf32>
    %c1_49 = arith.constant 1 : index
    %c0_50 = arith.constant 0 : index
    %c0_51 = arith.constant 0 : index
    %47 = vector.load %arg3[%c1_49, %c0_50, %c0_51] : memref<3x1x32xf32, #tpu.memory_space<vmem>>, vector<1x1x32xf32>
    %48 = vector.shape_cast %47 : vector<1x1x32xf32> to vector<1x32xf32>
    %49 = vector.broadcast %48 : vector<1x32xf32> to vector<64x32xf32>
    %50 = arith.addf %46, %49 : vector<64x32xf32>
    %c2_52 = arith.constant 2 : index
    %c0_53 = arith.constant 0 : index
    %c0_54 = arith.constant 0 : index
    %51 = vector.load %arg1[%c2_52, %c0_53, %c0_54] : memref<3x4x32xf32, #tpu.memory_space<vmem>>, vector<1x4x32xf32>
    %52 = vector.shape_cast %51 : vector<1x4x32xf32> to vector<4x32xf32>
    %cst_55 = arith.constant dense<0.000000e+00> : vector<64x32xf32>
    %53 = tpu.matmul %36, %52, %cst_55 {dimension_numbers = #tpu.dot_dimension_numbers<[1], [0], [0], [1], [0, 0, 1, 1], [], []>} : vector<64x4xf32>, vector<4x32xf32>, vector<64x32xf32> -> vector<64x32xf32>
    %c2_56 = arith.constant 2 : index
    %c0_57 = arith.constant 0 : index
    %c0_58 = arith.constant 0 : index
    %54 = vector.load %arg3[%c2_56, %c0_57, %c0_58] : memref<3x1x32xf32, #tpu.memory_space<vmem>>, vector<1x1x32xf32>
    %55 = vector.shape_cast %54 : vector<1x1x32xf32> to vector<1x32xf32>
    %56 = vector.broadcast %55 : vector<1x32xf32> to vector<64x32xf32>
    %57 = arith.addf %53, %56 : vector<64x32xf32>
    %cst_59 = arith.constant 0.000000e+00 : f32
    %58 = vector.broadcast %cst_59 : f32 to vector<8x32xf32>
    %cst_60 = arith.constant 0.000000e+00 : f32
    %59 = vector.broadcast %cst_60 : f32 to vector<8x32xf32>
    %60 = arith.truncf %58 : vector<8x32xf32> to vector<8x32xbf16>
    %61 = vector.extract_strided_slice %43 {offsets = [0, 0], sizes = [8, 32], strides = [1, 1]} : vector<64x32xf32> to vector<8x32xf32>
    %cst_61 = arith.constant dense<0.000000e+00> : vector<8x32xf32>
    %62 = tpu.matmul %60, %1, %cst_61 {dimension_numbers = #tpu.dot_dimension_numbers<[1], [0], [0], [1], [0, 0, 1, 1], [], []>} : vector<8x32xbf16>, vector<32x32xbf16>, vector<8x32xf32> -> vector<8x32xf32>
    %63 = arith.addf %61, %62 : vector<8x32xf32>
    %cst_62 = arith.constant 5.000000e-01 : f32
    %64 = vector.broadcast %cst_62 : f32 to vector<8x32xf32>
    %65 = arith.mulf %64, %63 : vector<8x32xf32>
    %66 = math.tanh %65 : vector<8x32xf32>
    %cst_63 = arith.constant 5.000000e-01 : f32
    %67 = vector.broadcast %cst_63 : f32 to vector<8x32xf32>
    %68 = arith.mulf %67, %66 : vector<8x32xf32>
    %cst_64 = arith.constant 5.000000e-01 : f32
    %69 = vector.broadcast %cst_64 : f32 to vector<8x32xf32>
    %70 = arith.addf %68, %69 : vector<8x32xf32>
    %71 = vector.extract_strided_slice %50 {offsets = [0, 0], sizes = [8, 32], strides = [1, 1]} : vector<64x32xf32> to vector<8x32xf32>
    %cst_65 = arith.constant dense<0.000000e+00> : vector<8x32xf32>
    %72 = tpu.matmul %60, %3, %cst_65 {dimension_numbers = #tpu.dot_dimension_numbers<[1], [0], [0], [1], [0, 0, 1, 1], [], []>} : vector<8x32xbf16>, vector<32x32xbf16>, vector<8x32xf32> -> vector<8x32xf32>
    %73 = arith.addf %71, %72 : vector<8x32xf32>
    %cst_66 = arith.constant 5.000000e-01 : f32
    %74 = vector.broadcast %cst_66 : f32 to vector<8x32xf32>
    %75 = arith.mulf %74, %73 : vector<8x32xf32>
    %76 = math.tanh %75 : vector<8x32xf32>
    %cst_67 = arith.constant 5.000000e-01 : f32
    %77 = vector.broadcast %cst_67 : f32 to vector<8x32xf32>
    %78 = arith.mulf %77, %76 : vector<8x32xf32>
    %cst_68 = arith.constant 5.000000e-01 : f32
    %79 = vector.broadcast %cst_68 : f32 to vector<8x32xf32>
    %80 = arith.addf %78, %79 : vector<8x32xf32>
    %81 = vector.extract_strided_slice %57 {offsets = [0, 0], sizes = [8, 32], strides = [1, 1]} : vector<64x32xf32> to vector<8x32xf32>
    %cst_69 = arith.constant dense<0.000000e+00> : vector<8x32xf32>
    %82 = tpu.matmul %60, %5, %cst_69 {dimension_numbers = #tpu.dot_dimension_numbers<[1], [0], [0], [1], [0, 0, 1, 1], [], []>} : vector<8x32xbf16>, vector<32x32xbf16>, vector<8x32xf32> -> vector<8x32xf32>
    %83 = arith.addf %82, %32 : vector<8x32xf32>
    %84 = arith.mulf %70, %83 : vector<8x32xf32>
    %85 = arith.addf %81, %84 : vector<8x32xf32>
    %86 = math.tanh %85 : vector<8x32xf32>
    %87 = arith.subf %58, %86 : vector<8x32xf32>
    %88 = arith.mulf %80, %87 : vector<8x32xf32>
    %89 = arith.addf %86, %88 : vector<8x32xf32>
    %90 = arith.truncf %89 : vector<8x32xf32> to vector<8x32xbf16>
    %91 = arith.truncf %59 : vector<8x32xf32> to vector<8x32xbf16>
    %cst_70 = arith.constant dense<0.000000e+00> : vector<8x32xf32>
    %92 = tpu.matmul %90, %7, %cst_70 {dimension_numbers = #tpu.dot_dimension_numbers<[1], [0], [0], [1], [0, 0, 1, 1], [], []>} : vector<8x32xbf16>, vector<32x32xbf16>, vector<8x32xf32> -> vector<8x32xf32>
    %93 = arith.addf %92, %21 : vector<8x32xf32>
    %cst_71 = arith.constant dense<0.000000e+00> : vector<8x32xf32>
    %94 = tpu.matmul %91, %13, %cst_71 {dimension_numbers = #tpu.dot_dimension_numbers<[1], [0], [0], [1], [0, 0, 1, 1], [], []>} : vector<8x32xbf16>, vector<32x32xbf16>, vector<8x32xf32> -> vector<8x32xf32>
    %95 = arith.addf %93, %94 : vector<8x32xf32>
    %cst_72 = arith.constant 5.000000e-01 : f32
    %96 = vector.broadcast %cst_72 : f32 to vector<8x32xf32>
    %97 = arith.mulf %96, %95 : vector<8x32xf32>
    %98 = math.tanh %97 : vector<8x32xf32>
    %cst_73 = arith.constant 5.000000e-01 : f32
    %99 = vector.broadcast %cst_73 : f32 to vector<8x32xf32>
    %100 = arith.mulf %99, %98 : vector<8x32xf32>
    %cst_74 = arith.constant 5.000000e-01 : f32
    %101 = vector.broadcast %cst_74 : f32 to vector<8x32xf32>
    %102 = arith.addf %100, %101 : vector<8x32xf32>
    %cst_75 = arith.constant dense<0.000000e+00> : vector<8x32xf32>
    %103 = tpu.matmul %90, %9, %cst_75 {dimension_numbers = #tpu.dot_dimension_numbers<[1], [0], [0], [1], [0, 0, 1, 1], [], []>} : vector<8x32xbf16>, vector<32x32xbf16>, vector<8x32xf32> -> vector<8x32xf32>
    %104 = arith.addf %103, %25 : vector<8x32xf32>
    %cst_76 = arith.constant dense<0.000000e+00> : vector<8x32xf32>
    %105 = tpu.matmul %91, %15, %cst_76 {dimension_numbers = #tpu.dot_dimension_numbers<[1], [0], [0], [1], [0, 0, 1, 1], [], []>} : vector<8x32xbf16>, vector<32x32xbf16>, vector<8x32xf32> -> vector<8x32xf32>
    %106 = arith.addf %104, %105 : vector<8x32xf32>
    %cst_77 = arith.constant 5.000000e-01 : f32
    %107 = vector.broadcast %cst_77 : f32 to vector<8x32xf32>
    %108 = arith.mulf %107, %106 : vector<8x32xf32>
    %109 = math.tanh %108 : vector<8x32xf32>
    %cst_78 = arith.constant 5.000000e-01 : f32
    %110 = vector.broadcast %cst_78 : f32 to vector<8x32xf32>
    %111 = arith.mulf %110, %109 : vector<8x32xf32>
    %cst_79 = arith.constant 5.000000e-01 : f32
    %112 = vector.broadcast %cst_79 : f32 to vector<8x32xf32>
    %113 = arith.addf %111, %112 : vector<8x32xf32>
    %cst_80 = arith.constant dense<0.000000e+00> : vector<8x32xf32>
    %114 = tpu.matmul %90, %11, %cst_80 {dimension_numbers = #tpu.dot_dimension_numbers<[1], [0], [0], [1], [0, 0, 1, 1], [], []>} : vector<8x32xbf16>, vector<32x32xbf16>, vector<8x32xf32> -> vector<8x32xf32>
    %115 = arith.addf %114, %29 : vector<8x32xf32>
    %cst_81 = arith.constant dense<0.000000e+00> : vector<8x32xf32>
    %116 = tpu.matmul %91, %17, %cst_81 {dimension_numbers = #tpu.dot_dimension_numbers<[1], [0], [0], [1], [0, 0, 1, 1], [], []>} : vector<8x32xbf16>, vector<32x32xbf16>, vector<8x32xf32> -> vector<8x32xf32>
    %117 = arith.addf %116, %35 : vector<8x32xf32>
    %118 = arith.mulf %102, %117 : vector<8x32xf32>
    %119 = arith.addf %115, %118 : vector<8x32xf32>
    %120 = math.tanh %119 : vector<8x32xf32>
    %121 = arith.subf %59, %120 : vector<8x32xf32>
    %122 = arith.mulf %113, %121 : vector<8x32xf32>
    %123 = arith.addf %120, %122 : vector<8x32xf32>
    %124 = arith.truncf %89 : vector<8x32xf32> to vector<8x32xbf16>
    %125 = vector.extract_strided_slice %43 {offsets = [8, 0], sizes = [8, 32], strides = [1, 1]} : vector<64x32xf32> to vector<8x32xf32>
    %cst_82 = arith.constant dense<0.000000e+00> : vector<8x32xf32>
    %126 = tpu.matmul %124, %1, %cst_82 {dimension_numbers = #tpu.dot_dimension_numbers<[1], [0], [0], [1], [0, 0, 1, 1], [], []>} : vector<8x32xbf16>, vector<32x32xbf16>, vector<8x32xf32> -> vector<8x32xf32>
    %127 = arith.addf %125, %126 : vector<8x32xf32>
    %cst_83 = arith.constant 5.000000e-01 : f32
    %128 = vector.broadcast %cst_83 : f32 to vector<8x32xf32>
    %129 = arith.mulf %128, %127 : vector<8x32xf32>
    %130 = math.tanh %129 : vector<8x32xf32>
    %cst_84 = arith.constant 5.000000e-01 : f32
    %131 = vector.broadcast %cst_84 : f32 to vector<8x32xf32>
    %132 = arith.mulf %131, %130 : vector<8x32xf32>
    %cst_85 = arith.constant 5.000000e-01 : f32
    %133 = vector.broadcast %cst_85 : f32 to vector<8x32xf32>
    %134 = arith.addf %132, %133 : vector<8x32xf32>
    %135 = vector.extract_strided_slice %50 {offsets = [8, 0], sizes = [8, 32], strides = [1, 1]} : vector<64x32xf32> to vector<8x32xf32>
    %cst_86 = arith.constant dense<0.000000e+00> : vector<8x32xf32>
    %136 = tpu.matmul %124, %3, %cst_86 {dimension_numbers = #tpu.dot_dimension_numbers<[1], [0], [0], [1], [0, 0, 1, 1], [], []>} : vector<8x32xbf16>, vector<32x32xbf16>, vector<8x32xf32> -> vector<8x32xf32>
    %137 = arith.addf %135, %136 : vector<8x32xf32>
    %cst_87 = arith.constant 5.000000e-01 : f32
    %138 = vector.broadcast %cst_87 : f32 to vector<8x32xf32>
    %139 = arith.mulf %138, %137 : vector<8x32xf32>
    %140 = math.tanh %139 : vector<8x32xf32>
    %cst_88 = arith.constant 5.000000e-01 : f32
    %141 = vector.broadcast %cst_88 : f32 to vector<8x32xf32>
    %142 = arith.mulf %141, %140 : vector<8x32xf32>
    %cst_89 = arith.constant 5.000000e-01 : f32
    %143 = vector.broadcast %cst_89 : f32 to vector<8x32xf32>
    %144 = arith.addf %142, %143 : vector<8x32xf32>
    %145 = vector.extract_strided_slice %57 {offsets = [8, 0], sizes = [8, 32], strides = [1, 1]} : vector<64x32xf32> to vector<8x32xf32>
    %cst_90 = arith.constant dense<0.000000e+00> : vector<8x32xf32>
    %146 = tpu.matmul %124, %5, %cst_90 {dimension_numbers = #tpu.dot_dimension_numbers<[1], [0], [0], [1], [0, 0, 1, 1], [], []>} : vector<8x32xbf16>, vector<32x32xbf16>, vector<8x32xf32> -> vector<8x32xf32>
    %147 = arith.addf %146, %32 : vector<8x32xf32>
    %148 = arith.mulf %134, %147 : vector<8x32xf32>
    %149 = arith.addf %145, %148 : vector<8x32xf32>
    %150 = math.tanh %149 : vector<8x32xf32>
    %151 = arith.subf %89, %150 : vector<8x32xf32>
    %152 = arith.mulf %144, %151 : vector<8x32xf32>
    %153 = arith.addf %150, %152 : vector<8x32xf32>
    %154 = arith.truncf %153 : vector<8x32xf32> to vector<8x32xbf16>
    %155 = arith.truncf %123 : vector<8x32xf32> to vector<8x32xbf16>
    %cst_91 = arith.constant dense<0.000000e+00> : vector<8x32xf32>
    %156 = tpu.matmul %154, %7, %cst_91 {dimension_numbers = #tpu.dot_dimension_numbers<[1], [0], [0], [1], [0, 0, 1, 1], [], []>} : vector<8x32xbf16>, vector<32x32xbf16>, vector<8x32xf32> -> vector<8x32xf32>
    %157 = arith.addf %156, %21 : vector<8x32xf32>
    %cst_92 = arith.constant dense<0.000000e+00> : vector<8x32xf32>
    %158 = tpu.matmul %155, %13, %cst_92 {dimension_numbers = #tpu.dot_dimension_numbers<[1], [0], [0], [1], [0, 0, 1, 1], [], []>} : vector<8x32xbf16>, vector<32x32xbf16>, vector<8x32xf32> -> vector<8x32xf32>
    %159 = arith.addf %157, %158 : vector<8x32xf32>
    %cst_93 = arith.constant 5.000000e-01 : f32
    %160 = vector.broadcast %cst_93 : f32 to vector<8x32xf32>
    %161 = arith.mulf %160, %159 : vector<8x32xf32>
    %162 = math.tanh %161 : vector<8x32xf32>
    %cst_94 = arith.constant 5.000000e-01 : f32
    %163 = vector.broadcast %cst_94 : f32 to vector<8x32xf32>
    %164 = arith.mulf %163, %162 : vector<8x32xf32>
    %cst_95 = arith.constant 5.000000e-01 : f32
    %165 = vector.broadcast %cst_95 : f32 to vector<8x32xf32>
    %166 = arith.addf %164, %165 : vector<8x32xf32>
    %cst_96 = arith.constant dense<0.000000e+00> : vector<8x32xf32>
    %167 = tpu.matmul %154, %9, %cst_96 {dimension_numbers = #tpu.dot_dimension_numbers<[1], [0], [0], [1], [0, 0, 1, 1], [], []>} : vector<8x32xbf16>, vector<32x32xbf16>, vector<8x32xf32> -> vector<8x32xf32>
    %168 = arith.addf %167, %25 : vector<8x32xf32>
    %cst_97 = arith.constant dense<0.000000e+00> : vector<8x32xf32>
    %169 = tpu.matmul %155, %15, %cst_97 {dimension_numbers = #tpu.dot_dimension_numbers<[1], [0], [0], [1], [0, 0, 1, 1], [], []>} : vector<8x32xbf16>, vector<32x32xbf16>, vector<8x32xf32> -> vector<8x32xf32>
    %170 = arith.addf %168, %169 : vector<8x32xf32>
    %cst_98 = arith.constant 5.000000e-01 : f32
    %171 = vector.broadcast %cst_98 : f32 to vector<8x32xf32>
    %172 = arith.mulf %171, %170 : vector<8x32xf32>
    %173 = math.tanh %172 : vector<8x32xf32>
    %cst_99 = arith.constant 5.000000e-01 : f32
    %174 = vector.broadcast %cst_99 : f32 to vector<8x32xf32>
    %175 = arith.mulf %174, %173 : vector<8x32xf32>
    %cst_100 = arith.constant 5.000000e-01 : f32
    %176 = vector.broadcast %cst_100 : f32 to vector<8x32xf32>
    %177 = arith.addf %175, %176 : vector<8x32xf32>
    %cst_101 = arith.constant dense<0.000000e+00> : vector<8x32xf32>
    %178 = tpu.matmul %154, %11, %cst_101 {dimension_numbers = #tpu.dot_dimension_numbers<[1], [0], [0], [1], [0, 0, 1, 1], [], []>} : vector<8x32xbf16>, vector<32x32xbf16>, vector<8x32xf32> -> vector<8x32xf32>
    %179 = arith.addf %178, %29 : vector<8x32xf32>
    %cst_102 = arith.constant dense<0.000000e+00> : vector<8x32xf32>
    %180 = tpu.matmul %155, %17, %cst_102 {dimension_numbers = #tpu.dot_dimension_numbers<[1], [0], [0], [1], [0, 0, 1, 1], [], []>} : vector<8x32xbf16>, vector<32x32xbf16>, vector<8x32xf32> -> vector<8x32xf32>
    %181 = arith.addf %180, %35 : vector<8x32xf32>
    %182 = arith.mulf %166, %181 : vector<8x32xf32>
    %183 = arith.addf %179, %182 : vector<8x32xf32>
    %184 = math.tanh %183 : vector<8x32xf32>
    %185 = arith.subf %123, %184 : vector<8x32xf32>
    %186 = arith.mulf %177, %185 : vector<8x32xf32>
    %187 = arith.addf %184, %186 : vector<8x32xf32>
    %188 = arith.truncf %153 : vector<8x32xf32> to vector<8x32xbf16>
    %189 = vector.extract_strided_slice %43 {offsets = [16, 0], sizes = [8, 32], strides = [1, 1]} : vector<64x32xf32> to vector<8x32xf32>
    %cst_103 = arith.constant dense<0.000000e+00> : vector<8x32xf32>
    %190 = tpu.matmul %188, %1, %cst_103 {dimension_numbers = #tpu.dot_dimension_numbers<[1], [0], [0], [1], [0, 0, 1, 1], [], []>} : vector<8x32xbf16>, vector<32x32xbf16>, vector<8x32xf32> -> vector<8x32xf32>
    %191 = arith.addf %189, %190 : vector<8x32xf32>
    %cst_104 = arith.constant 5.000000e-01 : f32
    %192 = vector.broadcast %cst_104 : f32 to vector<8x32xf32>
    %193 = arith.mulf %192, %191 : vector<8x32xf32>
    %194 = math.tanh %193 : vector<8x32xf32>
    %cst_105 = arith.constant 5.000000e-01 : f32
    %195 = vector.broadcast %cst_105 : f32 to vector<8x32xf32>
    %196 = arith.mulf %195, %194 : vector<8x32xf32>
    %cst_106 = arith.constant 5.000000e-01 : f32
    %197 = vector.broadcast %cst_106 : f32 to vector<8x32xf32>
    %198 = arith.addf %196, %197 : vector<8x32xf32>
    %199 = vector.extract_strided_slice %50 {offsets = [16, 0], sizes = [8, 32], strides = [1, 1]} : vector<64x32xf32> to vector<8x32xf32>
    %cst_107 = arith.constant dense<0.000000e+00> : vector<8x32xf32>
    %200 = tpu.matmul %188, %3, %cst_107 {dimension_numbers = #tpu.dot_dimension_numbers<[1], [0], [0], [1], [0, 0, 1, 1], [], []>} : vector<8x32xbf16>, vector<32x32xbf16>, vector<8x32xf32> -> vector<8x32xf32>
    %201 = arith.addf %199, %200 : vector<8x32xf32>
    %cst_108 = arith.constant 5.000000e-01 : f32
    %202 = vector.broadcast %cst_108 : f32 to vector<8x32xf32>
    %203 = arith.mulf %202, %201 : vector<8x32xf32>
    %204 = math.tanh %203 : vector<8x32xf32>
    %cst_109 = arith.constant 5.000000e-01 : f32
    %205 = vector.broadcast %cst_109 : f32 to vector<8x32xf32>
    %206 = arith.mulf %205, %204 : vector<8x32xf32>
    %cst_110 = arith.constant 5.000000e-01 : f32
    %207 = vector.broadcast %cst_110 : f32 to vector<8x32xf32>
    %208 = arith.addf %206, %207 : vector<8x32xf32>
    %209 = vector.extract_strided_slice %57 {offsets = [16, 0], sizes = [8, 32], strides = [1, 1]} : vector<64x32xf32> to vector<8x32xf32>
    %cst_111 = arith.constant dense<0.000000e+00> : vector<8x32xf32>
    %210 = tpu.matmul %188, %5, %cst_111 {dimension_numbers = #tpu.dot_dimension_numbers<[1], [0], [0], [1], [0, 0, 1, 1], [], []>} : vector<8x32xbf16>, vector<32x32xbf16>, vector<8x32xf32> -> vector<8x32xf32>
    %211 = arith.addf %210, %32 : vector<8x32xf32>
    %212 = arith.mulf %198, %211 : vector<8x32xf32>
    %213 = arith.addf %209, %212 : vector<8x32xf32>
    %214 = math.tanh %213 : vector<8x32xf32>
    %215 = arith.subf %153, %214 : vector<8x32xf32>
    %216 = arith.mulf %208, %215 : vector<8x32xf32>
    %217 = arith.addf %214, %216 : vector<8x32xf32>
    %218 = arith.truncf %217 : vector<8x32xf32> to vector<8x32xbf16>
    %219 = arith.truncf %187 : vector<8x32xf32> to vector<8x32xbf16>
    %cst_112 = arith.constant dense<0.000000e+00> : vector<8x32xf32>
    %220 = tpu.matmul %218, %7, %cst_112 {dimension_numbers = #tpu.dot_dimension_numbers<[1], [0], [0], [1], [0, 0, 1, 1], [], []>} : vector<8x32xbf16>, vector<32x32xbf16>, vector<8x32xf32> -> vector<8x32xf32>
    %221 = arith.addf %220, %21 : vector<8x32xf32>
    %cst_113 = arith.constant dense<0.000000e+00> : vector<8x32xf32>
    %222 = tpu.matmul %219, %13, %cst_113 {dimension_numbers = #tpu.dot_dimension_numbers<[1], [0], [0], [1], [0, 0, 1, 1], [], []>} : vector<8x32xbf16>, vector<32x32xbf16>, vector<8x32xf32> -> vector<8x32xf32>
    %223 = arith.addf %221, %222 : vector<8x32xf32>
    %cst_114 = arith.constant 5.000000e-01 : f32
    %224 = vector.broadcast %cst_114 : f32 to vector<8x32xf32>
    %225 = arith.mulf %224, %223 : vector<8x32xf32>
    %226 = math.tanh %225 : vector<8x32xf32>
    %cst_115 = arith.constant 5.000000e-01 : f32
    %227 = vector.broadcast %cst_115 : f32 to vector<8x32xf32>
    %228 = arith.mulf %227, %226 : vector<8x32xf32>
    %cst_116 = arith.constant 5.000000e-01 : f32
    %229 = vector.broadcast %cst_116 : f32 to vector<8x32xf32>
    %230 = arith.addf %228, %229 : vector<8x32xf32>
    %cst_117 = arith.constant dense<0.000000e+00> : vector<8x32xf32>
    %231 = tpu.matmul %218, %9, %cst_117 {dimension_numbers = #tpu.dot_dimension_numbers<[1], [0], [0], [1], [0, 0, 1, 1], [], []>} : vector<8x32xbf16>, vector<32x32xbf16>, vector<8x32xf32> -> vector<8x32xf32>
    %232 = arith.addf %231, %25 : vector<8x32xf32>
    %cst_118 = arith.constant dense<0.000000e+00> : vector<8x32xf32>
    %233 = tpu.matmul %219, %15, %cst_118 {dimension_numbers = #tpu.dot_dimension_numbers<[1], [0], [0], [1], [0, 0, 1, 1], [], []>} : vector<8x32xbf16>, vector<32x32xbf16>, vector<8x32xf32> -> vector<8x32xf32>
    %234 = arith.addf %232, %233 : vector<8x32xf32>
    %cst_119 = arith.constant 5.000000e-01 : f32
    %235 = vector.broadcast %cst_119 : f32 to vector<8x32xf32>
    %236 = arith.mulf %235, %234 : vector<8x32xf32>
    %237 = math.tanh %236 : vector<8x32xf32>
    %cst_120 = arith.constant 5.000000e-01 : f32
    %238 = vector.broadcast %cst_120 : f32 to vector<8x32xf32>
    %239 = arith.mulf %238, %237 : vector<8x32xf32>
    %cst_121 = arith.constant 5.000000e-01 : f32
    %240 = vector.broadcast %cst_121 : f32 to vector<8x32xf32>
    %241 = arith.addf %239, %240 : vector<8x32xf32>
    %cst_122 = arith.constant dense<0.000000e+00> : vector<8x32xf32>
    %242 = tpu.matmul %218, %11, %cst_122 {dimension_numbers = #tpu.dot_dimension_numbers<[1], [0], [0], [1], [0, 0, 1, 1], [], []>} : vector<8x32xbf16>, vector<32x32xbf16>, vector<8x32xf32> -> vector<8x32xf32>
    %243 = arith.addf %242, %29 : vector<8x32xf32>
    %cst_123 = arith.constant dense<0.000000e+00> : vector<8x32xf32>
    %244 = tpu.matmul %219, %17, %cst_123 {dimension_numbers = #tpu.dot_dimension_numbers<[1], [0], [0], [1], [0, 0, 1, 1], [], []>} : vector<8x32xbf16>, vector<32x32xbf16>, vector<8x32xf32> -> vector<8x32xf32>
    %245 = arith.addf %244, %35 : vector<8x32xf32>
    %246 = arith.mulf %230, %245 : vector<8x32xf32>
    %247 = arith.addf %243, %246 : vector<8x32xf32>
    %248 = math.tanh %247 : vector<8x32xf32>
    %249 = arith.subf %187, %248 : vector<8x32xf32>
    %250 = arith.mulf %241, %249 : vector<8x32xf32>
    %251 = arith.addf %248, %250 : vector<8x32xf32>
    %252 = arith.truncf %217 : vector<8x32xf32> to vector<8x32xbf16>
    %253 = vector.extract_strided_slice %43 {offsets = [24, 0], sizes = [8, 32], strides = [1, 1]} : vector<64x32xf32> to vector<8x32xf32>
    %cst_124 = arith.constant dense<0.000000e+00> : vector<8x32xf32>
    %254 = tpu.matmul %252, %1, %cst_124 {dimension_numbers = #tpu.dot_dimension_numbers<[1], [0], [0], [1], [0, 0, 1, 1], [], []>} : vector<8x32xbf16>, vector<32x32xbf16>, vector<8x32xf32> -> vector<8x32xf32>
    %255 = arith.addf %253, %254 : vector<8x32xf32>
    %cst_125 = arith.constant 5.000000e-01 : f32
    %256 = vector.broadcast %cst_125 : f32 to vector<8x32xf32>
    %257 = arith.mulf %256, %255 : vector<8x32xf32>
    %258 = math.tanh %257 : vector<8x32xf32>
    %cst_126 = arith.constant 5.000000e-01 : f32
    %259 = vector.broadcast %cst_126 : f32 to vector<8x32xf32>
    %260 = arith.mulf %259, %258 : vector<8x32xf32>
    %cst_127 = arith.constant 5.000000e-01 : f32
    %261 = vector.broadcast %cst_127 : f32 to vector<8x32xf32>
    %262 = arith.addf %260, %261 : vector<8x32xf32>
    %263 = vector.extract_strided_slice %50 {offsets = [24, 0], sizes = [8, 32], strides = [1, 1]} : vector<64x32xf32> to vector<8x32xf32>
    %cst_128 = arith.constant dense<0.000000e+00> : vector<8x32xf32>
    %264 = tpu.matmul %252, %3, %cst_128 {dimension_numbers = #tpu.dot_dimension_numbers<[1], [0], [0], [1], [0, 0, 1, 1], [], []>} : vector<8x32xbf16>, vector<32x32xbf16>, vector<8x32xf32> -> vector<8x32xf32>
    %265 = arith.addf %263, %264 : vector<8x32xf32>
    %cst_129 = arith.constant 5.000000e-01 : f32
    %266 = vector.broadcast %cst_129 : f32 to vector<8x32xf32>
    %267 = arith.mulf %266, %265 : vector<8x32xf32>
    %268 = math.tanh %267 : vector<8x32xf32>
    %cst_130 = arith.constant 5.000000e-01 : f32
    %269 = vector.broadcast %cst_130 : f32 to vector<8x32xf32>
    %270 = arith.mulf %269, %268 : vector<8x32xf32>
    %cst_131 = arith.constant 5.000000e-01 : f32
    %271 = vector.broadcast %cst_131 : f32 to vector<8x32xf32>
    %272 = arith.addf %270, %271 : vector<8x32xf32>
    %273 = vector.extract_strided_slice %57 {offsets = [24, 0], sizes = [8, 32], strides = [1, 1]} : vector<64x32xf32> to vector<8x32xf32>
    %cst_132 = arith.constant dense<0.000000e+00> : vector<8x32xf32>
    %274 = tpu.matmul %252, %5, %cst_132 {dimension_numbers = #tpu.dot_dimension_numbers<[1], [0], [0], [1], [0, 0, 1, 1], [], []>} : vector<8x32xbf16>, vector<32x32xbf16>, vector<8x32xf32> -> vector<8x32xf32>
    %275 = arith.addf %274, %32 : vector<8x32xf32>
    %276 = arith.mulf %262, %275 : vector<8x32xf32>
    %277 = arith.addf %273, %276 : vector<8x32xf32>
    %278 = math.tanh %277 : vector<8x32xf32>
    %279 = arith.subf %217, %278 : vector<8x32xf32>
    %280 = arith.mulf %272, %279 : vector<8x32xf32>
    %281 = arith.addf %278, %280 : vector<8x32xf32>
    %282 = arith.truncf %281 : vector<8x32xf32> to vector<8x32xbf16>
    %283 = arith.truncf %251 : vector<8x32xf32> to vector<8x32xbf16>
    %cst_133 = arith.constant dense<0.000000e+00> : vector<8x32xf32>
    %284 = tpu.matmul %282, %7, %cst_133 {dimension_numbers = #tpu.dot_dimension_numbers<[1], [0], [0], [1], [0, 0, 1, 1], [], []>} : vector<8x32xbf16>, vector<32x32xbf16>, vector<8x32xf32> -> vector<8x32xf32>
    %285 = arith.addf %284, %21 : vector<8x32xf32>
    %cst_134 = arith.constant dense<0.000000e+00> : vector<8x32xf32>
    %286 = tpu.matmul %283, %13, %cst_134 {dimension_numbers = #tpu.dot_dimension_numbers<[1], [0], [0], [1], [0, 0, 1, 1], [], []>} : vector<8x32xbf16>, vector<32x32xbf16>, vector<8x32xf32> -> vector<8x32xf32>
    %287 = arith.addf %285, %286 : vector<8x32xf32>
    %cst_135 = arith.constant 5.000000e-01 : f32
    %288 = vector.broadcast %cst_135 : f32 to vector<8x32xf32>
    %289 = arith.mulf %288, %287 : vector<8x32xf32>
    %290 = math.tanh %289 : vector<8x32xf32>
    %cst_136 = arith.constant 5.000000e-01 : f32
    %291 = vector.broadcast %cst_136 : f32 to vector<8x32xf32>
    %292 = arith.mulf %291, %290 : vector<8x32xf32>
    %cst_137 = arith.constant 5.000000e-01 : f32
    %293 = vector.broadcast %cst_137 : f32 to vector<8x32xf32>
    %294 = arith.addf %292, %293 : vector<8x32xf32>
    %cst_138 = arith.constant dense<0.000000e+00> : vector<8x32xf32>
    %295 = tpu.matmul %282, %9, %cst_138 {dimension_numbers = #tpu.dot_dimension_numbers<[1], [0], [0], [1], [0, 0, 1, 1], [], []>} : vector<8x32xbf16>, vector<32x32xbf16>, vector<8x32xf32> -> vector<8x32xf32>
    %296 = arith.addf %295, %25 : vector<8x32xf32>
    %cst_139 = arith.constant dense<0.000000e+00> : vector<8x32xf32>
    %297 = tpu.matmul %283, %15, %cst_139 {dimension_numbers = #tpu.dot_dimension_numbers<[1], [0], [0], [1], [0, 0, 1, 1], [], []>} : vector<8x32xbf16>, vector<32x32xbf16>, vector<8x32xf32> -> vector<8x32xf32>
    %298 = arith.addf %296, %297 : vector<8x32xf32>
    %cst_140 = arith.constant 5.000000e-01 : f32
    %299 = vector.broadcast %cst_140 : f32 to vector<8x32xf32>
    %300 = arith.mulf %299, %298 : vector<8x32xf32>
    %301 = math.tanh %300 : vector<8x32xf32>
    %cst_141 = arith.constant 5.000000e-01 : f32
    %302 = vector.broadcast %cst_141 : f32 to vector<8x32xf32>
    %303 = arith.mulf %302, %301 : vector<8x32xf32>
    %cst_142 = arith.constant 5.000000e-01 : f32
    %304 = vector.broadcast %cst_142 : f32 to vector<8x32xf32>
    %305 = arith.addf %303, %304 : vector<8x32xf32>
    %cst_143 = arith.constant dense<0.000000e+00> : vector<8x32xf32>
    %306 = tpu.matmul %282, %11, %cst_143 {dimension_numbers = #tpu.dot_dimension_numbers<[1], [0], [0], [1], [0, 0, 1, 1], [], []>} : vector<8x32xbf16>, vector<32x32xbf16>, vector<8x32xf32> -> vector<8x32xf32>
    %307 = arith.addf %306, %29 : vector<8x32xf32>
    %cst_144 = arith.constant dense<0.000000e+00> : vector<8x32xf32>
    %308 = tpu.matmul %283, %17, %cst_144 {dimension_numbers = #tpu.dot_dimension_numbers<[1], [0], [0], [1], [0, 0, 1, 1], [], []>} : vector<8x32xbf16>, vector<32x32xbf16>, vector<8x32xf32> -> vector<8x32xf32>
    %309 = arith.addf %308, %35 : vector<8x32xf32>
    %310 = arith.mulf %294, %309 : vector<8x32xf32>
    %311 = arith.addf %307, %310 : vector<8x32xf32>
    %312 = math.tanh %311 : vector<8x32xf32>
    %313 = arith.subf %251, %312 : vector<8x32xf32>
    %314 = arith.mulf %305, %313 : vector<8x32xf32>
    %315 = arith.addf %312, %314 : vector<8x32xf32>
    %316 = arith.truncf %281 : vector<8x32xf32> to vector<8x32xbf16>
    %317 = vector.extract_strided_slice %43 {offsets = [32, 0], sizes = [8, 32], strides = [1, 1]} : vector<64x32xf32> to vector<8x32xf32>
    %cst_145 = arith.constant dense<0.000000e+00> : vector<8x32xf32>
    %318 = tpu.matmul %316, %1, %cst_145 {dimension_numbers = #tpu.dot_dimension_numbers<[1], [0], [0], [1], [0, 0, 1, 1], [], []>} : vector<8x32xbf16>, vector<32x32xbf16>, vector<8x32xf32> -> vector<8x32xf32>
    %319 = arith.addf %317, %318 : vector<8x32xf32>
    %cst_146 = arith.constant 5.000000e-01 : f32
    %320 = vector.broadcast %cst_146 : f32 to vector<8x32xf32>
    %321 = arith.mulf %320, %319 : vector<8x32xf32>
    %322 = math.tanh %321 : vector<8x32xf32>
    %cst_147 = arith.constant 5.000000e-01 : f32
    %323 = vector.broadcast %cst_147 : f32 to vector<8x32xf32>
    %324 = arith.mulf %323, %322 : vector<8x32xf32>
    %cst_148 = arith.constant 5.000000e-01 : f32
    %325 = vector.broadcast %cst_148 : f32 to vector<8x32xf32>
    %326 = arith.addf %324, %325 : vector<8x32xf32>
    %327 = vector.extract_strided_slice %50 {offsets = [32, 0], sizes = [8, 32], strides = [1, 1]} : vector<64x32xf32> to vector<8x32xf32>
    %cst_149 = arith.constant dense<0.000000e+00> : vector<8x32xf32>
    %328 = tpu.matmul %316, %3, %cst_149 {dimension_numbers = #tpu.dot_dimension_numbers<[1], [0], [0], [1], [0, 0, 1, 1], [], []>} : vector<8x32xbf16>, vector<32x32xbf16>, vector<8x32xf32> -> vector<8x32xf32>
    %329 = arith.addf %327, %328 : vector<8x32xf32>
    %cst_150 = arith.constant 5.000000e-01 : f32
    %330 = vector.broadcast %cst_150 : f32 to vector<8x32xf32>
    %331 = arith.mulf %330, %329 : vector<8x32xf32>
    %332 = math.tanh %331 : vector<8x32xf32>
    %cst_151 = arith.constant 5.000000e-01 : f32
    %333 = vector.broadcast %cst_151 : f32 to vector<8x32xf32>
    %334 = arith.mulf %333, %332 : vector<8x32xf32>
    %cst_152 = arith.constant 5.000000e-01 : f32
    %335 = vector.broadcast %cst_152 : f32 to vector<8x32xf32>
    %336 = arith.addf %334, %335 : vector<8x32xf32>
    %337 = vector.extract_strided_slice %57 {offsets = [32, 0], sizes = [8, 32], strides = [1, 1]} : vector<64x32xf32> to vector<8x32xf32>
    %cst_153 = arith.constant dense<0.000000e+00> : vector<8x32xf32>
    %338 = tpu.matmul %316, %5, %cst_153 {dimension_numbers = #tpu.dot_dimension_numbers<[1], [0], [0], [1], [0, 0, 1, 1], [], []>} : vector<8x32xbf16>, vector<32x32xbf16>, vector<8x32xf32> -> vector<8x32xf32>
    %339 = arith.addf %338, %32 : vector<8x32xf32>
    %340 = arith.mulf %326, %339 : vector<8x32xf32>
    %341 = arith.addf %337, %340 : vector<8x32xf32>
    %342 = math.tanh %341 : vector<8x32xf32>
    %343 = arith.subf %281, %342 : vector<8x32xf32>
    %344 = arith.mulf %336, %343 : vector<8x32xf32>
    %345 = arith.addf %342, %344 : vector<8x32xf32>
    %346 = arith.truncf %345 : vector<8x32xf32> to vector<8x32xbf16>
    %347 = arith.truncf %315 : vector<8x32xf32> to vector<8x32xbf16>
    %cst_154 = arith.constant dense<0.000000e+00> : vector<8x32xf32>
    %348 = tpu.matmul %346, %7, %cst_154 {dimension_numbers = #tpu.dot_dimension_numbers<[1], [0], [0], [1], [0, 0, 1, 1], [], []>} : vector<8x32xbf16>, vector<32x32xbf16>, vector<8x32xf32> -> vector<8x32xf32>
    %349 = arith.addf %348, %21 : vector<8x32xf32>
    %cst_155 = arith.constant dense<0.000000e+00> : vector<8x32xf32>
    %350 = tpu.matmul %347, %13, %cst_155 {dimension_numbers = #tpu.dot_dimension_numbers<[1], [0], [0], [1], [0, 0, 1, 1], [], []>} : vector<8x32xbf16>, vector<32x32xbf16>, vector<8x32xf32> -> vector<8x32xf32>
    %351 = arith.addf %349, %350 : vector<8x32xf32>
    %cst_156 = arith.constant 5.000000e-01 : f32
    %352 = vector.broadcast %cst_156 : f32 to vector<8x32xf32>
    %353 = arith.mulf %352, %351 : vector<8x32xf32>
    %354 = math.tanh %353 : vector<8x32xf32>
    %cst_157 = arith.constant 5.000000e-01 : f32
    %355 = vector.broadcast %cst_157 : f32 to vector<8x32xf32>
    %356 = arith.mulf %355, %354 : vector<8x32xf32>
    %cst_158 = arith.constant 5.000000e-01 : f32
    %357 = vector.broadcast %cst_158 : f32 to vector<8x32xf32>
    %358 = arith.addf %356, %357 : vector<8x32xf32>
    %cst_159 = arith.constant dense<0.000000e+00> : vector<8x32xf32>
    %359 = tpu.matmul %346, %9, %cst_159 {dimension_numbers = #tpu.dot_dimension_numbers<[1], [0], [0], [1], [0, 0, 1, 1], [], []>} : vector<8x32xbf16>, vector<32x32xbf16>, vector<8x32xf32> -> vector<8x32xf32>
    %360 = arith.addf %359, %25 : vector<8x32xf32>
    %cst_160 = arith.constant dense<0.000000e+00> : vector<8x32xf32>
    %361 = tpu.matmul %347, %15, %cst_160 {dimension_numbers = #tpu.dot_dimension_numbers<[1], [0], [0], [1], [0, 0, 1, 1], [], []>} : vector<8x32xbf16>, vector<32x32xbf16>, vector<8x32xf32> -> vector<8x32xf32>
    %362 = arith.addf %360, %361 : vector<8x32xf32>
    %cst_161 = arith.constant 5.000000e-01 : f32
    %363 = vector.broadcast %cst_161 : f32 to vector<8x32xf32>
    %364 = arith.mulf %363, %362 : vector<8x32xf32>
    %365 = math.tanh %364 : vector<8x32xf32>
    %cst_162 = arith.constant 5.000000e-01 : f32
    %366 = vector.broadcast %cst_162 : f32 to vector<8x32xf32>
    %367 = arith.mulf %366, %365 : vector<8x32xf32>
    %cst_163 = arith.constant 5.000000e-01 : f32
    %368 = vector.broadcast %cst_163 : f32 to vector<8x32xf32>
    %369 = arith.addf %367, %368 : vector<8x32xf32>
    %cst_164 = arith.constant dense<0.000000e+00> : vector<8x32xf32>
    %370 = tpu.matmul %346, %11, %cst_164 {dimension_numbers = #tpu.dot_dimension_numbers<[1], [0], [0], [1], [0, 0, 1, 1], [], []>} : vector<8x32xbf16>, vector<32x32xbf16>, vector<8x32xf32> -> vector<8x32xf32>
    %371 = arith.addf %370, %29 : vector<8x32xf32>
    %cst_165 = arith.constant dense<0.000000e+00> : vector<8x32xf32>
    %372 = tpu.matmul %347, %17, %cst_165 {dimension_numbers = #tpu.dot_dimension_numbers<[1], [0], [0], [1], [0, 0, 1, 1], [], []>} : vector<8x32xbf16>, vector<32x32xbf16>, vector<8x32xf32> -> vector<8x32xf32>
    %373 = arith.addf %372, %35 : vector<8x32xf32>
    %374 = arith.mulf %358, %373 : vector<8x32xf32>
    %375 = arith.addf %371, %374 : vector<8x32xf32>
    %376 = math.tanh %375 : vector<8x32xf32>
    %377 = arith.subf %315, %376 : vector<8x32xf32>
    %378 = arith.mulf %369, %377 : vector<8x32xf32>
    %379 = arith.addf %376, %378 : vector<8x32xf32>
    %380 = arith.truncf %345 : vector<8x32xf32> to vector<8x32xbf16>
    %381 = vector.extract_strided_slice %43 {offsets = [40, 0], sizes = [8, 32], strides = [1, 1]} : vector<64x32xf32> to vector<8x32xf32>
    %cst_166 = arith.constant dense<0.000000e+00> : vector<8x32xf32>
    %382 = tpu.matmul %380, %1, %cst_166 {dimension_numbers = #tpu.dot_dimension_numbers<[1], [0], [0], [1], [0, 0, 1, 1], [], []>} : vector<8x32xbf16>, vector<32x32xbf16>, vector<8x32xf32> -> vector<8x32xf32>
    %383 = arith.addf %381, %382 : vector<8x32xf32>
    %cst_167 = arith.constant 5.000000e-01 : f32
    %384 = vector.broadcast %cst_167 : f32 to vector<8x32xf32>
    %385 = arith.mulf %384, %383 : vector<8x32xf32>
    %386 = math.tanh %385 : vector<8x32xf32>
    %cst_168 = arith.constant 5.000000e-01 : f32
    %387 = vector.broadcast %cst_168 : f32 to vector<8x32xf32>
    %388 = arith.mulf %387, %386 : vector<8x32xf32>
    %cst_169 = arith.constant 5.000000e-01 : f32
    %389 = vector.broadcast %cst_169 : f32 to vector<8x32xf32>
    %390 = arith.addf %388, %389 : vector<8x32xf32>
    %391 = vector.extract_strided_slice %50 {offsets = [40, 0], sizes = [8, 32], strides = [1, 1]} : vector<64x32xf32> to vector<8x32xf32>
    %cst_170 = arith.constant dense<0.000000e+00> : vector<8x32xf32>
    %392 = tpu.matmul %380, %3, %cst_170 {dimension_numbers = #tpu.dot_dimension_numbers<[1], [0], [0], [1], [0, 0, 1, 1], [], []>} : vector<8x32xbf16>, vector<32x32xbf16>, vector<8x32xf32> -> vector<8x32xf32>
    %393 = arith.addf %391, %392 : vector<8x32xf32>
    %cst_171 = arith.constant 5.000000e-01 : f32
    %394 = vector.broadcast %cst_171 : f32 to vector<8x32xf32>
    %395 = arith.mulf %394, %393 : vector<8x32xf32>
    %396 = math.tanh %395 : vector<8x32xf32>
    %cst_172 = arith.constant 5.000000e-01 : f32
    %397 = vector.broadcast %cst_172 : f32 to vector<8x32xf32>
    %398 = arith.mulf %397, %396 : vector<8x32xf32>
    %cst_173 = arith.constant 5.000000e-01 : f32
    %399 = vector.broadcast %cst_173 : f32 to vector<8x32xf32>
    %400 = arith.addf %398, %399 : vector<8x32xf32>
    %401 = vector.extract_strided_slice %57 {offsets = [40, 0], sizes = [8, 32], strides = [1, 1]} : vector<64x32xf32> to vector<8x32xf32>
    %cst_174 = arith.constant dense<0.000000e+00> : vector<8x32xf32>
    %402 = tpu.matmul %380, %5, %cst_174 {dimension_numbers = #tpu.dot_dimension_numbers<[1], [0], [0], [1], [0, 0, 1, 1], [], []>} : vector<8x32xbf16>, vector<32x32xbf16>, vector<8x32xf32> -> vector<8x32xf32>
    %403 = arith.addf %402, %32 : vector<8x32xf32>
    %404 = arith.mulf %390, %403 : vector<8x32xf32>
    %405 = arith.addf %401, %404 : vector<8x32xf32>
    %406 = math.tanh %405 : vector<8x32xf32>
    %407 = arith.subf %345, %406 : vector<8x32xf32>
    %408 = arith.mulf %400, %407 : vector<8x32xf32>
    %409 = arith.addf %406, %408 : vector<8x32xf32>
    %410 = arith.truncf %409 : vector<8x32xf32> to vector<8x32xbf16>
    %411 = arith.truncf %379 : vector<8x32xf32> to vector<8x32xbf16>
    %cst_175 = arith.constant dense<0.000000e+00> : vector<8x32xf32>
    %412 = tpu.matmul %410, %7, %cst_175 {dimension_numbers = #tpu.dot_dimension_numbers<[1], [0], [0], [1], [0, 0, 1, 1], [], []>} : vector<8x32xbf16>, vector<32x32xbf16>, vector<8x32xf32> -> vector<8x32xf32>
    %413 = arith.addf %412, %21 : vector<8x32xf32>
    %cst_176 = arith.constant dense<0.000000e+00> : vector<8x32xf32>
    %414 = tpu.matmul %411, %13, %cst_176 {dimension_numbers = #tpu.dot_dimension_numbers<[1], [0], [0], [1], [0, 0, 1, 1], [], []>} : vector<8x32xbf16>, vector<32x32xbf16>, vector<8x32xf32> -> vector<8x32xf32>
    %415 = arith.addf %413, %414 : vector<8x32xf32>
    %cst_177 = arith.constant 5.000000e-01 : f32
    %416 = vector.broadcast %cst_177 : f32 to vector<8x32xf32>
    %417 = arith.mulf %416, %415 : vector<8x32xf32>
    %418 = math.tanh %417 : vector<8x32xf32>
    %cst_178 = arith.constant 5.000000e-01 : f32
    %419 = vector.broadcast %cst_178 : f32 to vector<8x32xf32>
    %420 = arith.mulf %419, %418 : vector<8x32xf32>
    %cst_179 = arith.constant 5.000000e-01 : f32
    %421 = vector.broadcast %cst_179 : f32 to vector<8x32xf32>
    %422 = arith.addf %420, %421 : vector<8x32xf32>
    %cst_180 = arith.constant dense<0.000000e+00> : vector<8x32xf32>
    %423 = tpu.matmul %410, %9, %cst_180 {dimension_numbers = #tpu.dot_dimension_numbers<[1], [0], [0], [1], [0, 0, 1, 1], [], []>} : vector<8x32xbf16>, vector<32x32xbf16>, vector<8x32xf32> -> vector<8x32xf32>
    %424 = arith.addf %423, %25 : vector<8x32xf32>
    %cst_181 = arith.constant dense<0.000000e+00> : vector<8x32xf32>
    %425 = tpu.matmul %411, %15, %cst_181 {dimension_numbers = #tpu.dot_dimension_numbers<[1], [0], [0], [1], [0, 0, 1, 1], [], []>} : vector<8x32xbf16>, vector<32x32xbf16>, vector<8x32xf32> -> vector<8x32xf32>
    %426 = arith.addf %424, %425 : vector<8x32xf32>
    %cst_182 = arith.constant 5.000000e-01 : f32
    %427 = vector.broadcast %cst_182 : f32 to vector<8x32xf32>
    %428 = arith.mulf %427, %426 : vector<8x32xf32>
    %429 = math.tanh %428 : vector<8x32xf32>
    %cst_183 = arith.constant 5.000000e-01 : f32
    %430 = vector.broadcast %cst_183 : f32 to vector<8x32xf32>
    %431 = arith.mulf %430, %429 : vector<8x32xf32>
    %cst_184 = arith.constant 5.000000e-01 : f32
    %432 = vector.broadcast %cst_184 : f32 to vector<8x32xf32>
    %433 = arith.addf %431, %432 : vector<8x32xf32>
    %cst_185 = arith.constant dense<0.000000e+00> : vector<8x32xf32>
    %434 = tpu.matmul %410, %11, %cst_185 {dimension_numbers = #tpu.dot_dimension_numbers<[1], [0], [0], [1], [0, 0, 1, 1], [], []>} : vector<8x32xbf16>, vector<32x32xbf16>, vector<8x32xf32> -> vector<8x32xf32>
    %435 = arith.addf %434, %29 : vector<8x32xf32>
    %cst_186 = arith.constant dense<0.000000e+00> : vector<8x32xf32>
    %436 = tpu.matmul %411, %17, %cst_186 {dimension_numbers = #tpu.dot_dimension_numbers<[1], [0], [0], [1], [0, 0, 1, 1], [], []>} : vector<8x32xbf16>, vector<32x32xbf16>, vector<8x32xf32> -> vector<8x32xf32>
    %437 = arith.addf %436, %35 : vector<8x32xf32>
    %438 = arith.mulf %422, %437 : vector<8x32xf32>
    %439 = arith.addf %435, %438 : vector<8x32xf32>
    %440 = math.tanh %439 : vector<8x32xf32>
    %441 = arith.subf %379, %440 : vector<8x32xf32>
    %442 = arith.mulf %433, %441 : vector<8x32xf32>
    %443 = arith.addf %440, %442 : vector<8x32xf32>
    %444 = arith.truncf %409 : vector<8x32xf32> to vector<8x32xbf16>
    %445 = vector.extract_strided_slice %43 {offsets = [48, 0], sizes = [8, 32], strides = [1, 1]} : vector<64x32xf32> to vector<8x32xf32>
    %cst_187 = arith.constant dense<0.000000e+00> : vector<8x32xf32>
    %446 = tpu.matmul %444, %1, %cst_187 {dimension_numbers = #tpu.dot_dimension_numbers<[1], [0], [0], [1], [0, 0, 1, 1], [], []>} : vector<8x32xbf16>, vector<32x32xbf16>, vector<8x32xf32> -> vector<8x32xf32>
    %447 = arith.addf %445, %446 : vector<8x32xf32>
    %cst_188 = arith.constant 5.000000e-01 : f32
    %448 = vector.broadcast %cst_188 : f32 to vector<8x32xf32>
    %449 = arith.mulf %448, %447 : vector<8x32xf32>
    %450 = math.tanh %449 : vector<8x32xf32>
    %cst_189 = arith.constant 5.000000e-01 : f32
    %451 = vector.broadcast %cst_189 : f32 to vector<8x32xf32>
    %452 = arith.mulf %451, %450 : vector<8x32xf32>
    %cst_190 = arith.constant 5.000000e-01 : f32
    %453 = vector.broadcast %cst_190 : f32 to vector<8x32xf32>
    %454 = arith.addf %452, %453 : vector<8x32xf32>
    %455 = vector.extract_strided_slice %50 {offsets = [48, 0], sizes = [8, 32], strides = [1, 1]} : vector<64x32xf32> to vector<8x32xf32>
    %cst_191 = arith.constant dense<0.000000e+00> : vector<8x32xf32>
    %456 = tpu.matmul %444, %3, %cst_191 {dimension_numbers = #tpu.dot_dimension_numbers<[1], [0], [0], [1], [0, 0, 1, 1], [], []>} : vector<8x32xbf16>, vector<32x32xbf16>, vector<8x32xf32> -> vector<8x32xf32>
    %457 = arith.addf %455, %456 : vector<8x32xf32>
    %cst_192 = arith.constant 5.000000e-01 : f32
    %458 = vector.broadcast %cst_192 : f32 to vector<8x32xf32>
    %459 = arith.mulf %458, %457 : vector<8x32xf32>
    %460 = math.tanh %459 : vector<8x32xf32>
    %cst_193 = arith.constant 5.000000e-01 : f32
    %461 = vector.broadcast %cst_193 : f32 to vector<8x32xf32>
    %462 = arith.mulf %461, %460 : vector<8x32xf32>
    %cst_194 = arith.constant 5.000000e-01 : f32
    %463 = vector.broadcast %cst_194 : f32 to vector<8x32xf32>
    %464 = arith.addf %462, %463 : vector<8x32xf32>
    %465 = vector.extract_strided_slice %57 {offsets = [48, 0], sizes = [8, 32], strides = [1, 1]} : vector<64x32xf32> to vector<8x32xf32>
    %cst_195 = arith.constant dense<0.000000e+00> : vector<8x32xf32>
    %466 = tpu.matmul %444, %5, %cst_195 {dimension_numbers = #tpu.dot_dimension_numbers<[1], [0], [0], [1], [0, 0, 1, 1], [], []>} : vector<8x32xbf16>, vector<32x32xbf16>, vector<8x32xf32> -> vector<8x32xf32>
    %467 = arith.addf %466, %32 : vector<8x32xf32>
    %468 = arith.mulf %454, %467 : vector<8x32xf32>
    %469 = arith.addf %465, %468 : vector<8x32xf32>
    %470 = math.tanh %469 : vector<8x32xf32>
    %471 = arith.subf %409, %470 : vector<8x32xf32>
    %472 = arith.mulf %464, %471 : vector<8x32xf32>
    %473 = arith.addf %470, %472 : vector<8x32xf32>
    %474 = arith.truncf %473 : vector<8x32xf32> to vector<8x32xbf16>
    %475 = arith.truncf %443 : vector<8x32xf32> to vector<8x32xbf16>
    %cst_196 = arith.constant dense<0.000000e+00> : vector<8x32xf32>
    %476 = tpu.matmul %474, %7, %cst_196 {dimension_numbers = #tpu.dot_dimension_numbers<[1], [0], [0], [1], [0, 0, 1, 1], [], []>} : vector<8x32xbf16>, vector<32x32xbf16>, vector<8x32xf32> -> vector<8x32xf32>
    %477 = arith.addf %476, %21 : vector<8x32xf32>
    %cst_197 = arith.constant dense<0.000000e+00> : vector<8x32xf32>
    %478 = tpu.matmul %475, %13, %cst_197 {dimension_numbers = #tpu.dot_dimension_numbers<[1], [0], [0], [1], [0, 0, 1, 1], [], []>} : vector<8x32xbf16>, vector<32x32xbf16>, vector<8x32xf32> -> vector<8x32xf32>
    %479 = arith.addf %477, %478 : vector<8x32xf32>
    %cst_198 = arith.constant 5.000000e-01 : f32
    %480 = vector.broadcast %cst_198 : f32 to vector<8x32xf32>
    %481 = arith.mulf %480, %479 : vector<8x32xf32>
    %482 = math.tanh %481 : vector<8x32xf32>
    %cst_199 = arith.constant 5.000000e-01 : f32
    %483 = vector.broadcast %cst_199 : f32 to vector<8x32xf32>
    %484 = arith.mulf %483, %482 : vector<8x32xf32>
    %cst_200 = arith.constant 5.000000e-01 : f32
    %485 = vector.broadcast %cst_200 : f32 to vector<8x32xf32>
    %486 = arith.addf %484, %485 : vector<8x32xf32>
    %cst_201 = arith.constant dense<0.000000e+00> : vector<8x32xf32>
    %487 = tpu.matmul %474, %9, %cst_201 {dimension_numbers = #tpu.dot_dimension_numbers<[1], [0], [0], [1], [0, 0, 1, 1], [], []>} : vector<8x32xbf16>, vector<32x32xbf16>, vector<8x32xf32> -> vector<8x32xf32>
    %488 = arith.addf %487, %25 : vector<8x32xf32>
    %cst_202 = arith.constant dense<0.000000e+00> : vector<8x32xf32>
    %489 = tpu.matmul %475, %15, %cst_202 {dimension_numbers = #tpu.dot_dimension_numbers<[1], [0], [0], [1], [0, 0, 1, 1], [], []>} : vector<8x32xbf16>, vector<32x32xbf16>, vector<8x32xf32> -> vector<8x32xf32>
    %490 = arith.addf %488, %489 : vector<8x32xf32>
    %cst_203 = arith.constant 5.000000e-01 : f32
    %491 = vector.broadcast %cst_203 : f32 to vector<8x32xf32>
    %492 = arith.mulf %491, %490 : vector<8x32xf32>
    %493 = math.tanh %492 : vector<8x32xf32>
    %cst_204 = arith.constant 5.000000e-01 : f32
    %494 = vector.broadcast %cst_204 : f32 to vector<8x32xf32>
    %495 = arith.mulf %494, %493 : vector<8x32xf32>
    %cst_205 = arith.constant 5.000000e-01 : f32
    %496 = vector.broadcast %cst_205 : f32 to vector<8x32xf32>
    %497 = arith.addf %495, %496 : vector<8x32xf32>
    %cst_206 = arith.constant dense<0.000000e+00> : vector<8x32xf32>
    %498 = tpu.matmul %474, %11, %cst_206 {dimension_numbers = #tpu.dot_dimension_numbers<[1], [0], [0], [1], [0, 0, 1, 1], [], []>} : vector<8x32xbf16>, vector<32x32xbf16>, vector<8x32xf32> -> vector<8x32xf32>
    %499 = arith.addf %498, %29 : vector<8x32xf32>
    %cst_207 = arith.constant dense<0.000000e+00> : vector<8x32xf32>
    %500 = tpu.matmul %475, %17, %cst_207 {dimension_numbers = #tpu.dot_dimension_numbers<[1], [0], [0], [1], [0, 0, 1, 1], [], []>} : vector<8x32xbf16>, vector<32x32xbf16>, vector<8x32xf32> -> vector<8x32xf32>
    %501 = arith.addf %500, %35 : vector<8x32xf32>
    %502 = arith.mulf %486, %501 : vector<8x32xf32>
    %503 = arith.addf %499, %502 : vector<8x32xf32>
    %504 = math.tanh %503 : vector<8x32xf32>
    %505 = arith.subf %443, %504 : vector<8x32xf32>
    %506 = arith.mulf %497, %505 : vector<8x32xf32>
    %507 = arith.addf %504, %506 : vector<8x32xf32>
    %508 = arith.truncf %473 : vector<8x32xf32> to vector<8x32xbf16>
    %509 = vector.extract_strided_slice %43 {offsets = [56, 0], sizes = [8, 32], strides = [1, 1]} : vector<64x32xf32> to vector<8x32xf32>
    %cst_208 = arith.constant dense<0.000000e+00> : vector<8x32xf32>
    %510 = tpu.matmul %508, %1, %cst_208 {dimension_numbers = #tpu.dot_dimension_numbers<[1], [0], [0], [1], [0, 0, 1, 1], [], []>} : vector<8x32xbf16>, vector<32x32xbf16>, vector<8x32xf32> -> vector<8x32xf32>
    %511 = arith.addf %509, %510 : vector<8x32xf32>
    %cst_209 = arith.constant 5.000000e-01 : f32
    %512 = vector.broadcast %cst_209 : f32 to vector<8x32xf32>
    %513 = arith.mulf %512, %511 : vector<8x32xf32>
    %514 = math.tanh %513 : vector<8x32xf32>
    %cst_210 = arith.constant 5.000000e-01 : f32
    %515 = vector.broadcast %cst_210 : f32 to vector<8x32xf32>
    %516 = arith.mulf %515, %514 : vector<8x32xf32>
    %cst_211 = arith.constant 5.000000e-01 : f32
    %517 = vector.broadcast %cst_211 : f32 to vector<8x32xf32>
    %518 = arith.addf %516, %517 : vector<8x32xf32>
    %519 = vector.extract_strided_slice %50 {offsets = [56, 0], sizes = [8, 32], strides = [1, 1]} : vector<64x32xf32> to vector<8x32xf32>
    %cst_212 = arith.constant dense<0.000000e+00> : vector<8x32xf32>
    %520 = tpu.matmul %508, %3, %cst_212 {dimension_numbers = #tpu.dot_dimension_numbers<[1], [0], [0], [1], [0, 0, 1, 1], [], []>} : vector<8x32xbf16>, vector<32x32xbf16>, vector<8x32xf32> -> vector<8x32xf32>
    %521 = arith.addf %519, %520 : vector<8x32xf32>
    %cst_213 = arith.constant 5.000000e-01 : f32
    %522 = vector.broadcast %cst_213 : f32 to vector<8x32xf32>
    %523 = arith.mulf %522, %521 : vector<8x32xf32>
    %524 = math.tanh %523 : vector<8x32xf32>
    %cst_214 = arith.constant 5.000000e-01 : f32
    %525 = vector.broadcast %cst_214 : f32 to vector<8x32xf32>
    %526 = arith.mulf %525, %524 : vector<8x32xf32>
    %cst_215 = arith.constant 5.000000e-01 : f32
    %527 = vector.broadcast %cst_215 : f32 to vector<8x32xf32>
    %528 = arith.addf %526, %527 : vector<8x32xf32>
    %529 = vector.extract_strided_slice %57 {offsets = [56, 0], sizes = [8, 32], strides = [1, 1]} : vector<64x32xf32> to vector<8x32xf32>
    %cst_216 = arith.constant dense<0.000000e+00> : vector<8x32xf32>
    %530 = tpu.matmul %508, %5, %cst_216 {dimension_numbers = #tpu.dot_dimension_numbers<[1], [0], [0], [1], [0, 0, 1, 1], [], []>} : vector<8x32xbf16>, vector<32x32xbf16>, vector<8x32xf32> -> vector<8x32xf32>
    %531 = arith.addf %530, %32 : vector<8x32xf32>
    %532 = arith.mulf %518, %531 : vector<8x32xf32>
    %533 = arith.addf %529, %532 : vector<8x32xf32>
    %534 = math.tanh %533 : vector<8x32xf32>
    %535 = arith.subf %473, %534 : vector<8x32xf32>
    %536 = arith.mulf %528, %535 : vector<8x32xf32>
    %537 = arith.addf %534, %536 : vector<8x32xf32>
    %538 = arith.truncf %537 : vector<8x32xf32> to vector<8x32xbf16>
    %539 = arith.truncf %507 : vector<8x32xf32> to vector<8x32xbf16>
    %cst_217 = arith.constant dense<0.000000e+00> : vector<8x32xf32>
    %540 = tpu.matmul %538, %7, %cst_217 {dimension_numbers = #tpu.dot_dimension_numbers<[1], [0], [0], [1], [0, 0, 1, 1], [], []>} : vector<8x32xbf16>, vector<32x32xbf16>, vector<8x32xf32> -> vector<8x32xf32>
    %541 = arith.addf %540, %21 : vector<8x32xf32>
    %cst_218 = arith.constant dense<0.000000e+00> : vector<8x32xf32>
    %542 = tpu.matmul %539, %13, %cst_218 {dimension_numbers = #tpu.dot_dimension_numbers<[1], [0], [0], [1], [0, 0, 1, 1], [], []>} : vector<8x32xbf16>, vector<32x32xbf16>, vector<8x32xf32> -> vector<8x32xf32>
    %543 = arith.addf %541, %542 : vector<8x32xf32>
    %cst_219 = arith.constant 5.000000e-01 : f32
    %544 = vector.broadcast %cst_219 : f32 to vector<8x32xf32>
    %545 = arith.mulf %544, %543 : vector<8x32xf32>
    %546 = math.tanh %545 : vector<8x32xf32>
    %cst_220 = arith.constant 5.000000e-01 : f32
    %547 = vector.broadcast %cst_220 : f32 to vector<8x32xf32>
    %548 = arith.mulf %547, %546 : vector<8x32xf32>
    %cst_221 = arith.constant 5.000000e-01 : f32
    %549 = vector.broadcast %cst_221 : f32 to vector<8x32xf32>
    %550 = arith.addf %548, %549 : vector<8x32xf32>
    %cst_222 = arith.constant dense<0.000000e+00> : vector<8x32xf32>
    %551 = tpu.matmul %538, %9, %cst_222 {dimension_numbers = #tpu.dot_dimension_numbers<[1], [0], [0], [1], [0, 0, 1, 1], [], []>} : vector<8x32xbf16>, vector<32x32xbf16>, vector<8x32xf32> -> vector<8x32xf32>
    %552 = arith.addf %551, %25 : vector<8x32xf32>
    %cst_223 = arith.constant dense<0.000000e+00> : vector<8x32xf32>
    %553 = tpu.matmul %539, %15, %cst_223 {dimension_numbers = #tpu.dot_dimension_numbers<[1], [0], [0], [1], [0, 0, 1, 1], [], []>} : vector<8x32xbf16>, vector<32x32xbf16>, vector<8x32xf32> -> vector<8x32xf32>
    %554 = arith.addf %552, %553 : vector<8x32xf32>
    %cst_224 = arith.constant 5.000000e-01 : f32
    %555 = vector.broadcast %cst_224 : f32 to vector<8x32xf32>
    %556 = arith.mulf %555, %554 : vector<8x32xf32>
    %557 = math.tanh %556 : vector<8x32xf32>
    %cst_225 = arith.constant 5.000000e-01 : f32
    %558 = vector.broadcast %cst_225 : f32 to vector<8x32xf32>
    %559 = arith.mulf %558, %557 : vector<8x32xf32>
    %cst_226 = arith.constant 5.000000e-01 : f32
    %560 = vector.broadcast %cst_226 : f32 to vector<8x32xf32>
    %561 = arith.addf %559, %560 : vector<8x32xf32>
    %cst_227 = arith.constant dense<0.000000e+00> : vector<8x32xf32>
    %562 = tpu.matmul %538, %11, %cst_227 {dimension_numbers = #tpu.dot_dimension_numbers<[1], [0], [0], [1], [0, 0, 1, 1], [], []>} : vector<8x32xbf16>, vector<32x32xbf16>, vector<8x32xf32> -> vector<8x32xf32>
    %563 = arith.addf %562, %29 : vector<8x32xf32>
    %cst_228 = arith.constant dense<0.000000e+00> : vector<8x32xf32>
    %564 = tpu.matmul %539, %17, %cst_228 {dimension_numbers = #tpu.dot_dimension_numbers<[1], [0], [0], [1], [0, 0, 1, 1], [], []>} : vector<8x32xbf16>, vector<32x32xbf16>, vector<8x32xf32> -> vector<8x32xf32>
    %565 = arith.addf %564, %35 : vector<8x32xf32>
    %566 = arith.mulf %550, %565 : vector<8x32xf32>
    %567 = arith.addf %563, %566 : vector<8x32xf32>
    %568 = math.tanh %567 : vector<8x32xf32>
    %569 = arith.subf %507, %568 : vector<8x32xf32>
    %570 = arith.mulf %561, %569 : vector<8x32xf32>
    %571 = arith.addf %568, %570 : vector<8x32xf32>
    %572 = tpu.concatenate %123, %187, %251, %315, %379, %443, %507, %571 in 1 : vector<8x32xf32>, vector<8x32xf32>, vector<8x32xf32>, vector<8x32xf32>, vector<8x32xf32>, vector<8x32xf32>, vector<8x32xf32>, vector<8x32xf32> -> vector<8x256xf32>
    %573 = arith.truncf %572 : vector<8x256xf32> to vector<8x256xbf16>
    %c0_229 = arith.constant 0 : index
    %c0_230 = arith.constant 0 : index
    %574 = vector.load %arg9[%c0_229, %c0_230] : memref<256x128xbf16, #tpu.memory_space<vmem>>, vector<256x128xbf16>
    %cst_231 = arith.constant dense<0.000000e+00> : vector<8x128xf32>
    %575 = tpu.matmul %573, %574, %cst_231 {dimension_numbers = #tpu.dot_dimension_numbers<[1], [0], [0], [1], [0, 0, 1, 1], [], []>} : vector<8x256xbf16>, vector<256x128xbf16>, vector<8x128xf32> -> vector<8x128xf32>
    %c0_232 = arith.constant 0 : index
    %c0_233 = arith.constant 0 : index
    %576 = vector.load %arg10[%c0_232, %c0_233] : memref<1x128xf32, #tpu.memory_space<vmem>>, vector<1x128xf32>
    %577 = vector.broadcast %576 : vector<1x128xf32> to vector<8x128xf32>
    %578 = arith.addf %575, %577 : vector<8x128xf32>
    %cst_234 = arith.constant 0.000000e+00 : f32
    %579 = vector.broadcast %cst_234 : f32 to vector<8x128xf32>
    %580 = arith.maximumf %578, %579 : vector<8x128xf32>
    %581 = arith.truncf %580 : vector<8x128xf32> to vector<8x128xbf16>
    %c0_235 = arith.constant 0 : index
    %c0_236 = arith.constant 0 : index
    %582 = vector.load %arg11[%c0_235, %c0_236] : memref<128x64xbf16, #tpu.memory_space<vmem>>, vector<128x64xbf16>
    %cst_237 = arith.constant dense<0.000000e+00> : vector<8x64xf32>
    %583 = tpu.matmul %581, %582, %cst_237 {dimension_numbers = #tpu.dot_dimension_numbers<[1], [0], [0], [1], [0, 0, 1, 1], [], []>} : vector<8x128xbf16>, vector<128x64xbf16>, vector<8x64xf32> -> vector<8x64xf32>
    %c0_238 = arith.constant 0 : index
    %c0_239 = arith.constant 0 : index
    %584 = vector.load %arg12[%c0_238, %c0_239] : memref<1x64xf32, #tpu.memory_space<vmem>>, vector<1x64xf32>
    %585 = vector.broadcast %584 : vector<1x64xf32> to vector<8x64xf32>
    %586 = arith.addf %583, %585 : vector<8x64xf32>
    %cst_240 = arith.constant 0.000000e+00 : f32
    %587 = vector.broadcast %cst_240 : f32 to vector<8x64xf32>
    %588 = arith.maximumf %586, %587 : vector<8x64xf32>
    %c0_241 = arith.constant 0 : index
    %c0_242 = arith.constant 0 : index
    %589 = vector.load %arg13[%c0_241, %c0_242] : memref<1x64xf32, #tpu.memory_space<vmem>>, vector<1x64xf32>
    %590 = vector.broadcast %589 : vector<1x64xf32> to vector<8x64xf32>
    %591 = arith.mulf %588, %590 : vector<8x64xf32>
    %cst_243 = arith.constant dense<0.000000e+00> : vector<8xf32>
    %592 = vector.multi_reduction <add>, %591, %cst_243 [1] : vector<8x64xf32> to vector<8xf32>
    %593 = vector.shape_cast %592 : vector<8xf32> to vector<8x1xf32>
    %c0_244 = arith.constant 0 : index
    %c0_245 = arith.constant 0 : index
    %594 = vector.load %arg14[%c0_244, %c0_245] : memref<1x1xf32, #tpu.memory_space<vmem>>, vector<1x1xf32>
    %595 = vector.broadcast %594 : vector<1x1xf32> to vector<8x1xf32>
    %596 = arith.addf %593, %595 : vector<8x1xf32>
    %c0_246 = arith.constant 0 : index
    %c0_247 = arith.constant 0 : index
    %597 = vector.load %arg15[%c0_246, %c0_247] : memref<8x1xf32, #tpu.memory_space<vmem>>, vector<8x1xf32>
    tpu.vector_store %arg15[%c0_246, %c0_247], %596 {strides = array<i32>} : memref<8x1xf32, #tpu.memory_space<vmem>>, vector<8x1xf32>,
    return
  }
}

</mosaic_0001>

<llo_original>
// kernel: tpu_custom_call.1
$region0: #{tpu_custom_call.1}
  #allocation0 [shape = 'u32[]', space=smem, size = 0x4, offset = 0x4, fixed_abs, tag = 'smem constant byte address 0x4 - core index']
  #allocation1 [shape = 'u32[72,128]{1,0:T(1,128)}', space=vmem, size = 0x9000, scoped, tag = 'internal scratch']
  #allocation2 [shape = 'f32[1,1]{1,0:T(1,128)S(1)}', space=vmem, size = 0x200, scoped, tag = 'scoped memory for tpu_custom_call.1']
  %s0 = inlined_call_operand.vmem [shape: f32[64,4], index: 0, kind: input, shape index: {}]
  %s1 = inlined_call_operand.hbm [shape: f32[3,4,32], index: 1, kind: input, shape index: {}]
  %s2 = inlined_call_operand.hbm [shape: bf16[3,32,32], index: 2, kind: input, shape index: {}]
  %s3 = inlined_call_operand.vmem [shape: f32[3,1,32], index: 3, kind: input, shape index: {}]
  %s4 = inlined_call_operand.vmem [shape: f32[1,32], index: 4, kind: input, shape index: {}]
  %s5 = inlined_call_operand.hbm [shape: bf16[3,32,32], index: 5, kind: input, shape index: {}]
  %s6 = inlined_call_operand.hbm [shape: bf16[3,32,32], index: 6, kind: input, shape index: {}]
  %s7 = inlined_call_operand.vmem [shape: f32[3,1,32], index: 7, kind: input, shape index: {}]
  %s8 = inlined_call_operand.vmem [shape: f32[1,32], index: 8, kind: input, shape index: {}]
  %s9 = inlined_call_operand.vmem [shape: bf16[256,128], index: 9, kind: input, shape index: {}]
  %s10 = inlined_call_operand.vmem [shape: f32[1,128], index: 10, kind: input, shape index: {}]
  %s11 = inlined_call_operand.vmem [shape: bf16[128,64], index: 11, kind: input, shape index: {}]
  %s12 = inlined_call_operand.vmem [shape: f32[1,64], index: 12, kind: input, shape index: {}]
  %s13 = inlined_call_operand.vmem [shape: f32[1,64], index: 13, kind: input, shape index: {}]
  %s14 = inlined_call_operand.<no memory space> [shape: f32[1,1], index: 14, kind: input, shape index: {}]
  %s15 = inlined_call_operand.vmem [shape: f32[8,1], index: 15, kind: output, shape index: {}]
  %s16 = sld [smem:[#allocation0]]
  $region86: #{tpu_custom_call.1} parent=0
    _
  %s18 = ssub.s32 1, %s16
  %s19 = scalar_select 0, %s18, %s16
  %v20 = vstv %s14
  %21 = vst [vmem:[#allocation2] sm:$0x1] %v20
  $region1: #{tpu_custom_call.1} parent=0
    #allocation3 [shape = 'u8[6144]{0}', space=vmem, size = 0x1800, scoped, tag = 'input window, operand 1, single buffered']
    #allocation4 [shape = 's32[1]{0}', space=sflag, size = 0x4, scoped, tag = 'scoped memory for tpu_custom_call.1']
    #allocation5 [shape = 'u8[24576]{0}', space=vmem, size = 0x6000, scoped, tag = 'input window, operand 2, single buffered']
    #allocation6 [shape = 's32[1]{0}', space=sflag, size = 0x4, scoped, tag = 'scoped memory for tpu_custom_call.1']
    #allocation7 [shape = 'u8[24576]{0}', space=vmem, size = 0x6000, scoped, tag = 'input window, operand 5, single buffered']
    #allocation8 [shape = 'u8[24576]{0}', space=vmem, size = 0x6000, scoped, tag = 'input window, operand 6, single buffered']
    #allocation9 [shape = 's32[1]{0}', space=sflag, size = 0x4, scoped, tag = 'scoped memory for tpu_custom_call.1']
    %22 = vsyncpa [#allocation4], 0
    %23 = vsyncpa [#allocation6], 0
    %24 = vsyncpa [#allocation9], 0
    // Predicated region
    $region2: #{tpu_custom_call.1} parent=1 // pred_check
      _
    $region3: #{tpu_custom_call.1} parent=1 // pred_check_branch
      %26 = sbr.rel (0) target = $region5
    $region4: #{tpu_custom_call.1} parent=1 // pred_region
      _
    $region5: #{tpu_custom_call.1} parent=1 // pred_fallthru
      _
    // Predicated region
    $region6: #{tpu_custom_call.1} parent=1 // pred_check
      _
    $region7: #{tpu_custom_call.1} parent=1 // pred_check_branch
      %28 = sbr.rel (0) target = $region9
    $region8: #{tpu_custom_call.1} parent=1 // pred_region
      %30 = vsyncadd [#allocation4], 0
      %s31 = sshll.u32 %s1, 4
      %s32 = int_to_ptr.hbm [resolvable:$true] %s31
      %s33 = sshll.u32 [#allocation3], 4
      %s34 = int_to_ptr.vmem [resolvable:$true] %s33
      %39 = dma.hbm_to_vmem [thread:$0]  %s32, 192, %s34, [#allocation4], 64, 64, 4
    $region9: #{tpu_custom_call.1} parent=1 // pred_fallthru
      _
    // Predicated region
    $region10: #{tpu_custom_call.1} parent=1 // pred_check
      _
    $region11: #{tpu_custom_call.1} parent=1 // pred_check_branch
      %41 = sbr.rel (0) target = $region13
    $region12: #{tpu_custom_call.1} parent=1 // pred_region
      %43 = vsyncadd [#allocation6], 0
      %s44 = sshll.u32 %s2, 4
      %s45 = int_to_ptr.hbm [resolvable:$true] %s44
      %s46 = sshll.u32 [#allocation5], 4
      %s47 = int_to_ptr.vmem [resolvable:$true] %s46
      %52 = dma.hbm_to_vmem [thread:$0]  %s45, 768, %s47, [#allocation6], 64, 64, 4
    $region13: #{tpu_custom_call.1} parent=1 // pred_fallthru
      _
    // Predicated region
    $region14: #{tpu_custom_call.1} parent=1 // pred_check
      _
    $region15: #{tpu_custom_call.1} parent=1 // pred_check_branch
      %54 = sbr.rel (0) target = $region17
    $region16: #{tpu_custom_call.1} parent=1 // pred_region
      _
    $region17: #{tpu_custom_call.1} parent=1 // pred_fallthru
      _
    // Predicated region
    $region18: #{tpu_custom_call.1} parent=1 // pred_check
      _
    $region19: #{tpu_custom_call.1} parent=1 // pred_check_branch
      %56 = sbr.rel (0) target = $region21
    $region20: #{tpu_custom_call.1} parent=1 // pred_region
      _
    $region21: #{tpu_custom_call.1} parent=1 // pred_fallthru
      _
    // Predicated region
    $region22: #{tpu_custom_call.1} parent=1 // pred_check
      _
    $region23: #{tpu_custom_call.1} parent=1 // pred_check_branch
      %58 = sbr.rel (0) target = $region25
    $region24: #{tpu_custom_call.1} parent=1 // pred_region
      %60 = vsyncadd [#allocation6], 0
      %s61 = sshll.u32 %s5, 4
      %s62 = int_to_ptr.hbm [resolvable:$true] %s61
      %s63 = sshll.u32 [#allocation7], 4
      %s64 = int_to_ptr.vmem [resolvable:$true] %s63
      %69 = dma.hbm_to_vmem [thread:$0]  %s62, 768, %s64, [#allocation6], 64, 64, 4
    $region25: #{tpu_custom_call.1} parent=1 // pred_fallthru
      _
    // Predicated region
    $region26: #{tpu_custom_call.1} parent=1 // pred_check
      _
    $region27: #{tpu_custom_call.1} parent=1 // pred_check_branch
      %71 = sbr.rel (0) target = $region29
    $region28: #{tpu_custom_call.1} parent=1 // pred_region
      %73 = vsyncadd [#allocation9], 0
      %s74 = sshll.u32 %s6, 4
      %s75 = int_to_ptr.hbm [resolvable:$true] %s74
      %s76 = sshll.u32 [#allocation8], 4
      %s77 = int_to_ptr.vmem [resolvable:$true] %s76
      %82 = dma.hbm_to_vmem [thread:$0]  %s75, 768, %s77, [#allocation9], 64, 64, 4
    $region29: #{tpu_custom_call.1} parent=1 // pred_fallthru
      _
    // Predicated region
    $region30: #{tpu_custom_call.1} parent=1 // pred_check
      _
    $region31: #{tpu_custom_call.1} parent=1 // pred_check_branch
      %84 = sbr.rel (0) target = $region33
    $region32: #{tpu_custom_call.1} parent=1 // pred_region
      _
    $region33: #{tpu_custom_call.1} parent=1 // pred_fallthru
      _
    // Predicated region
    $region34: #{tpu_custom_call.1} parent=1 // pred_check
      _
    $region35: #{tpu_custom_call.1} parent=1 // pred_check_branch
      %86 = sbr.rel (0) target = $region37
    $region36: #{tpu_custom_call.1} parent=1 // pred_region
      _
    $region37: #{tpu_custom_call.1} parent=1 // pred_fallthru
      _
    // Predicated region
    $region38: #{tpu_custom_call.1} parent=1 // pred_check
      _
    $region39: #{tpu_custom_call.1} parent=1 // pred_check_branch
      %88 = sbr.rel (0) target = $region41
    $region40: #{tpu_custom_call.1} parent=1 // pred_region
      _
    $region41: #{tpu_custom_call.1} parent=1 // pred_fallthru
      _
    // Predicated region
    $region42: #{tpu_custom_call.1} parent=1 // pred_check
      _
    $region43: #{tpu_custom_call.1} parent=1 // pred_check_branch
      %90 = sbr.rel (0) target = $region45
    $region44: #{tpu_custom_call.1} parent=1 // pred_region
      _
    $region45: #{tpu_custom_call.1} parent=1 // pred_fallthru
      _
    // Predicated region
    $region46: #{tpu_custom_call.1} parent=1 // pred_check
      _
    $region47: #{tpu_custom_call.1} parent=1 // pred_check_branch
      %92 = sbr.rel (0) target = $region49
    $region48: #{tpu_custom_call.1} parent=1 // pred_region
      _
    $region49: #{tpu_custom_call.1} parent=1 // pred_fallthru
      _
    // Predicated region
    $region50: #{tpu_custom_call.1} parent=1 // pred_check
      _
    $region51: #{tpu_custom_call.1} parent=1 // pred_check_branch
      %94 = sbr.rel (0) target = $region53
    $region52: #{tpu_custom_call.1} parent=1 // pred_region
      _
    $region53: #{tpu_custom_call.1} parent=1 // pred_fallthru
      _
    // Predicated region
    $region54: #{tpu_custom_call.1} parent=1 // pred_check
      _
    $region55: #{tpu_custom_call.1} parent=1 // pred_check_branch
      %96 = sbr.rel (0) target = $region57
    $region56: #{tpu_custom_call.1} parent=1 // pred_region
      _
    $region57: #{tpu_custom_call.1} parent=1 // pred_fallthru
      _
    // Predicated region
    $region58: #{tpu_custom_call.1} parent=1 // pred_check
      _
    $region59: #{tpu_custom_call.1} parent=1 // pred_check_branch
      %98 = sbr.rel (0) target = $region61
    $region60: #{tpu_custom_call.1} parent=1 // pred_region
      _
    $region61: #{tpu_custom_call.1} parent=1 // pred_fallthru
      _
    // Predicated region
    $region62: #{tpu_custom_call.1} parent=1 // pred_check
      _
    $region63: #{tpu_custom_call.1} parent=1 // pred_check_branch
      %100 = sbr.rel (0) target = $region65
    $region64: #{tpu_custom_call.1} parent=1 // pred_region
      %102 = dma.done [#allocation4], 192
    $region65: #{tpu_custom_call.1} parent=1 // pred_fallthru
      _
    // Predicated region
    $region66: #{tpu_custom_call.1} parent=1 // pred_check
      _
    $region67: #{tpu_custom_call.1} parent=1 // pred_check_branch
      %104 = sbr.rel (0) target = $region69
    $region68: #{tpu_custom_call.1} parent=1 // pred_region
      %106 = dma.done [#allocation6], 768
    $region69: #{tpu_custom_call.1} parent=1 // pred_fallthru
      _
    // Predicated region
    $region70: #{tpu_custom_call.1} parent=1 // pred_check
      _
    $region71: #{tpu_custom_call.1} parent=1 // pred_check_branch
      %108 = sbr.rel (0) target = $region73
    $region72: #{tpu_custom_call.1} parent=1 // pred_region
      %110 = dma.done [#allocation6], 768
    $region73: #{tpu_custom_call.1} parent=1 // pred_fallthru
      _
    // Predicated region
    $region74: #{tpu_custom_call.1} parent=1 // pred_check
      _
    $region75: #{tpu_custom_call.1} parent=1 // pred_check_branch
      %112 = sbr.rel (0) target = $region77
    $region76: #{tpu_custom_call.1} parent=1 // pred_region
      %114 = dma.done [#allocation9], 768
    $region77: #{tpu_custom_call.1} parent=1 // pred_fallthru
      _
    %v116 = vld [vmem:[#allocation5] sm:$0xf]
    %v117 = vld [vmem:[#allocation5 + $0x4] sm:$0xf]
    %v118 = vld [vmem:[#allocation5 + $0x8] sm:$0xf]
    %v119 = vld [vmem:[#allocation5 + $0xc] sm:$0xf]
    %s120 = scalar_lea.vmem [#allocation5], 16
    %v121 = vld [vmem:[%s120] sm:$0xf]
    %v122 = vld [vmem:[%s120 + $0x4] sm:$0xf]
    %v123 = vld [vmem:[%s120 + $0x8] sm:$0xf]
    %v124 = vld [vmem:[%s120 + $0xc] sm:$0xf]
    %s125 = scalar_lea.vmem [#allocation5], 32
    %v126 = vld [vmem:[%s125] sm:$0xf]
    %v127 = vld [vmem:[%s125 + $0x4] sm:$0xf]
    %v128 = vld [vmem:[%s125 + $0x8] sm:$0xf]
    %v129 = vld [vmem:[%s125 + $0xc] sm:$0xf]
    %v130 = vld [vmem:[#allocation7] sm:$0xf]
    %v131 = vld [vmem:[#allocation7 + $0x4] sm:$0xf]
    %v132 = vld [vmem:[#allocation7 + $0x8] sm:$0xf]
    %v133 = vld [vmem:[#allocation7 + $0xc] sm:$0xf]
    %s134 = scalar_lea.vmem [#allocation7], 16
    %v135 = vld [vmem:[%s134] sm:$0xf]
    %v136 = vld [vmem:[%s134 + $0x4] sm:$0xf]
    %v137 = vld [vmem:[%s134 + $0x8] sm:$0xf]
    %v138 = vld [vmem:[%s134 + $0xc] sm:$0xf]
    %s139 = scalar_lea.vmem [#allocation7], 32
    %v140 = vld [vmem:[%s139] sm:$0xf]
    %v141 = vld [vmem:[%s139 + $0x4] sm:$0xf]
    %v142 = vld [vmem:[%s139 + $0x8] sm:$0xf]
    %v143 = vld [vmem:[%s139 + $0xc] sm:$0xf]
    %v144 = vld [vmem:[#allocation8] sm:$0xf]
    %v145 = vld [vmem:[#allocation8 + $0x4] sm:$0xf]
    %v146 = vld [vmem:[#allocation8 + $0x8] sm:$0xf]
    %v147 = vld [vmem:[#allocation8 + $0xc] sm:$0xf]
    %s148 = scalar_lea.vmem [#allocation8], 16
    %v149 = vld [vmem:[%s148] sm:$0xf]
    %v150 = vld [vmem:[%s148 + $0x4] sm:$0xf]
    %v151 = vld [vmem:[%s148 + $0x8] sm:$0xf]
    %v152 = vld [vmem:[%s148 + $0xc] sm:$0xf]
    %s153 = scalar_lea.vmem [#allocation8], 32
    %v154 = vld [vmem:[%s153] sm:$0xf]
    %v155 = vld [vmem:[%s153 + $0x4] sm:$0xf]
    %v156 = vld [vmem:[%s153 + $0x8] sm:$0xf]
    %v157 = vld [vmem:[%s153 + $0xc] sm:$0xf]
    %v158 = vld [vmem:[%s7] sm:$0x1]
    %v160 = vperm.slane %v158, 0
    %s162 = scalar_lea.vmem %s7, 1
    %v163 = vld [vmem:[%s162] sm:$0x1]
    %v165 = vperm.slane %v163, 0
    %s167 = scalar_lea.vmem %s7, 2
    %v168 = vld [vmem:[%s167] sm:$0x1]
    %v170 = vperm.slane %v168, 0
    %v172 = vld [vmem:[%s4] sm:$0x1]
    %v174 = vperm.slane %v172, 0
    %v176 = vld [vmem:[%s8] sm:$0x1]
    %v178 = vperm.slane %v176, 0
    %v180 = vld [vmem:[%s0] sm:$0xff]
    %v181 = vld [vmem:[%s0 + $0x8] sm:$0xff]
    %v182 = vld [vmem:[%s0 + $0x10] sm:$0xff]
    %v183 = vld [vmem:[%s0 + $0x18] sm:$0xff]
    %v184 = vld [vmem:[%s0 + $0x20] sm:$0xff]
    %v185 = vld [vmem:[%s0 + $0x28] sm:$0xff]
    %v186 = vld [vmem:[%s0 + $0x30] sm:$0xff]
    %v187 = vld [vmem:[%s0 + $0x38] sm:$0xff]
    %v188 = vld [vmem:[#allocation3] sm:$0xf]
    %v189 = vld [vmem:[%s3] sm:$0x1]
    %v191 = vperm.slane %v189, 0
    %vm193 = vcmask 31744
    %v195 = vsel %vm193, %v180, 0
    %v198 = vsel %vm193, %v181, 0
    %v201 = vsel %vm193, %v182, 0
    %v204 = vsel %vm193, %v183, 0
    %v207 = vsel %vm193, %v184, 0
    %v210 = vsel %vm193, %v185, 0
    %v213 = vsel %vm193, %v186, 0
    %v216 = vsel %vm193, %v187, 0
    %vm218 = vcmask 1043456
    %v220 = vsel %vm218, %v188, 0
    %222 = vmatpush.msra.mxu0 0.0
    %223 = vmatpush.msra.mxu0 0.0
    %224 = vmatpush.msra.mxu0 0.0
    %225 = vmatpush.msra.mxu0 0.0
    %226 = vmatpush.msra.mxu0 0.0
    %227 = vmatpush.msra.mxu0 0.0
    %228 = vmatpush.msra.mxu0 0.0
    %229 = vmatpush.msra.mxu0 0.0
    %230 = vmatpush.msra.mxu0 0.0
    %231 = vmatpush.msra.mxu0 0.0
    %232 = vmatpush.msra.mxu0 0.0
    %233 = vmatpush.msra.mxu0 0.0
    %234 = vmatpush.msra.mxu0 0.0
    %235 = vmatpush.msra.mxu0 0.0
    %236 = vmatpush.msra.mxu0 0.0
    %237 = vmatpush.msra.mxu0 %v220
    %238 = vmatmul.f32.gmra.mxu0 %v195
    %v239 = vpop.f32.mrf.mxu0
    %v240 = vadd.f32 %v191, %v239
    %241 = vmatmul.f32.gmra.mxu0 %v198
    %v242 = vpop.f32.mrf.mxu0
    %v243 = vadd.f32 %v191, %v242
    %244 = vmatmul.f32.gmra.mxu0 %v201
    %v245 = vpop.f32.mrf.mxu0
    %v246 = vadd.f32 %v191, %v245
    %247 = vmatmul.f32.gmra.mxu0 %v204
    %v248 = vpop.f32.mrf.mxu0
    %v249 = vadd.f32 %v191, %v248
    %250 = vmatmul.f32.gmra.mxu0 %v207
    %v251 = vpop.f32.mrf.mxu0
    %v252 = vadd.f32 %v191, %v251
    %253 = vmatmul.f32.gmra.mxu0 %v210
    %v254 = vpop.f32.mrf.mxu0
    %v255 = vadd.f32 %v191, %v254
    %256 = vmatmul.f32.gmra.mxu0 %v213
    %v257 = vpop.f32.mrf.mxu0
    %v258 = vadd.f32 %v191, %v257
    %259 = vmatmul.f32.gmra.mxu0 %v216
    %v260 = vpop.f32.mrf.mxu0
    %v261 = vadd.f32 %v191, %v260
    %262 = vdwg.mxu0
    %s263 = scalar_lea.vmem [#allocation3], 4
    %v264 = vld [vmem:[%s263] sm:$0xf]
    %s265 = scalar_lea.vmem %s3, 1
    %v266 = vld [vmem:[%s265] sm:$0x1]
    %v268 = vperm.slane %v266, 0
    %v271 = vsel %vm218, %v264, 0
    %273 = vmatpush.msra.mxu0 0.0
    %274 = vmatpush.msra.mxu0 0.0
    %275 = vmatpush.msra.mxu0 0.0
    %276 = vmatpush.msra.mxu0 0.0
    %277 = vmatpush.msra.mxu0 0.0
    %278 = vmatpush.msra.mxu0 0.0
    %279 = vmatpush.msra.mxu0 0.0
    %280 = vmatpush.msra.mxu0 0.0
    %281 = vmatpush.msra.mxu0 0.0
    %282 = vmatpush.msra.mxu0 0.0
    %283 = vmatpush.msra.mxu0 0.0
    %284 = vmatpush.msra.mxu0 0.0
    %285 = vmatpush.msra.mxu0 0.0
    %286 = vmatpush.msra.mxu0 0.0
    %287 = vmatpush.msra.mxu0 0.0
    %288 = vmatpush.msra.mxu0 %v271
    %289 = vmatmul.f32.gmra.mxu0 %v195
    %v290 = vpop.f32.mrf.mxu0
    %v291 = vadd.f32 %v268, %v290
    %292 = vmatmul.f32.gmra.mxu0 %v198
    %v293 = vpop.f32.mrf.mxu0
    %v294 = vadd.f32 %v268, %v293
    %295 = vmatmul.f32.gmra.mxu0 %v201
    %v296 = vpop.f32.mrf.mxu0
    %v297 = vadd.f32 %v268, %v296
    %298 = vmatmul.f32.gmra.mxu0 %v204
    %v299 = vpop.f32.mrf.mxu0
    %v300 = vadd.f32 %v268, %v299
    %301 = vmatmul.f32.gmra.mxu0 %v207
    %v302 = vpop.f32.mrf.mxu0
    %v303 = vadd.f32 %v268, %v302
    %304 = vmatmul.f32.gmra.mxu0 %v210
    %v305 = vpop.f32.mrf.mxu0
    %v306 = vadd.f32 %v268, %v305
    %307 = vmatmul.f32.gmra.mxu0 %v213
    %v308 = vpop.f32.mrf.mxu0
    %v309 = vadd.f32 %v268, %v308
    %310 = vmatmul.f32.gmra.mxu0 %v216
    %v311 = vpop.f32.mrf.mxu0
    %v312 = vadd.f32 %v268, %v311
    %313 = vdwg.mxu0
    %s314 = scalar_lea.vmem [#allocation3], 8
    %v315 = vld [vmem:[%s314] sm:$0xf]
    %s316 = scalar_lea.vmem %s3, 2
    %v317 = vld [vmem:[%s316] sm:$0x1]
    %v319 = vperm.slane %v317, 0
    %v322 = vsel %vm218, %v315, 0
    %324 = vmatpush.msra.mxu0 0.0
    %325 = vmatpush.msra.mxu0 0.0
    %326 = vmatpush.msra.mxu0 0.0
    %327 = vmatpush.msra.mxu0 0.0
    %328 = vmatpush.msra.mxu0 0.0
    %329 = vmatpush.msra.mxu0 0.0
    %330 = vmatpush.msra.mxu0 0.0
    %331 = vmatpush.msra.mxu0 0.0
    %332 = vmatpush.msra.mxu0 0.0
    %333 = vmatpush.msra.mxu0 0.0
    %334 = vmatpush.msra.mxu0 0.0
    %335 = vmatpush.msra.mxu0 0.0
    %336 = vmatpush.msra.mxu0 0.0
    %337 = vmatpush.msra.mxu0 0.0
    %338 = vmatpush.msra.mxu0 0.0
    %339 = vmatpush.msra.mxu0 %v322
    %340 = vmatmul.f32.gmra.mxu0 %v195
    %v341 = vpop.f32.mrf.mxu0
    %v342 = vadd.f32 %v319, %v341
    %343 = vmatmul.f32.gmra.mxu0 %v198
    %v344 = vpop.f32.mrf.mxu0
    %v345 = vadd.f32 %v319, %v344
    %346 = vmatmul.f32.gmra.mxu0 %v201
    %v347 = vpop.f32.mrf.mxu0
    %v348 = vadd.f32 %v319, %v347
    %349 = vmatmul.f32.gmra.mxu0 %v204
    %v350 = vpop.f32.mrf.mxu0
    %v351 = vadd.f32 %v319, %v350
    %352 = vmatmul.f32.gmra.mxu0 %v207
    %v353 = vpop.f32.mrf.mxu0
    %v354 = vadd.f32 %v319, %v353
    %355 = vmatmul.f32.gmra.mxu0 %v210
    %v356 = vpop.f32.mrf.mxu0
    %v357 = vadd.f32 %v319, %v356
    %358 = vmatmul.f32.gmra.mxu0 %v213
    %v359 = vpop.f32.mrf.mxu0
    %v360 = vadd.f32 %v319, %v359
    %361 = vmatmul.f32.gmra.mxu0 %v216
    %v362 = vpop.f32.mrf.mxu0
    %v363 = vadd.f32 %v319, %v362
    %364 = vdwg.mxu0
    %v369 = vunpack.c.l.b16 %v116
    %v370 = vunpack.c.l.b16 %v117
    %v371 = vunpack.c.l.b16 %v118
    %v372 = vunpack.c.l.b16 %v119
    %v373 = vpack.c.b16 %v370, %v369
    %v374 = vpack.c.b16 %v372, %v371
    %vm377 = vcmask 261120
    %v379 = vsel %vm377, 0, 0
    %381 = vmatpush.bf16.msra.mxu0 0
    %382 = vmatpush.bf16.msra.mxu0 0
    %383 = vmatpush.bf16.msra.mxu0 0
    %384 = vmatpush.bf16.msra.mxu0 0
    %385 = vmatpush.bf16.msra.mxu0 0
    %386 = vmatpush.bf16.msra.mxu0 0
    %387 = vmatpush.bf16.msra.mxu0 %v374
    %388 = vmatpush.bf16.msra.mxu0 %v373
    %389 = vmatmul.bf16.gmra.mxu0 %v379
    %v390 = vpop.f32.mrf.mxu0
    %v391 = vadd.f32 0.0, %v390
    %v392 = vpop.f32.mrf.mxu0
    %393 = vdwg.mxu0
    %v394 = vadd.f32 %v240, %v391
    %v395 = vmul.f32 %v394, 0.5
    %v396 = vtanh.pop %v395
    %v397 = vmul.f32 %v396, 0.5
    %v398 = vadd.f32 %v397, 0.5
    %v403 = vunpack.c.l.b16 %v121
    %v404 = vunpack.c.l.b16 %v122
    %v405 = vunpack.c.l.b16 %v123
    %v406 = vunpack.c.l.b16 %v124
    %v407 = vpack.c.b16 %v404, %v403
    %v408 = vpack.c.b16 %v406, %v405
    %411 = vmatpush.bf16.msra.mxu0 0
    %412 = vmatpush.bf16.msra.mxu0 0
    %413 = vmatpush.bf16.msra.mxu0 0
    %414 = vmatpush.bf16.msra.mxu0 0
    %415 = vmatpush.bf16.msra.mxu0 0
    %416 = vmatpush.bf16.msra.mxu0 0
    %417 = vmatpush.bf16.msra.mxu0 %v408
    %418 = vmatpush.bf16.msra.mxu0 %v407
    %419 = vmatmul.bf16.gmra.mxu0 %v379
    %v420 = vpop.f32.mrf.mxu0
    %v421 = vadd.f32 0.0, %v420
    %v422 = vpop.f32.mrf.mxu0
    %423 = vdwg.mxu0
    %v424 = vadd.f32 %v291, %v421
    %v425 = vmul.f32 %v424, 0.5
    %v426 = vtanh.pop %v425
    %v427 = vmul.f32 %v426, 0.5
    %v428 = vadd.f32 %v427, 0.5
    %v433 = vunpack.c.l.b16 %v126
    %v434 = vunpack.c.l.b16 %v127
    %v435 = vunpack.c.l.b16 %v128
    %v436 = vunpack.c.l.b16 %v129
    %v437 = vpack.c.b16 %v434, %v433
    %v438 = vpack.c.b16 %v436, %v435
    %441 = vmatpush.bf16.msra.mxu0 0
    %442 = vmatpush.bf16.msra.mxu0 0
    %443 = vmatpush.bf16.msra.mxu0 0
    %444 = vmatpush.bf16.msra.mxu0 0
    %445 = vmatpush.bf16.msra.mxu0 0
    %446 = vmatpush.bf16.msra.mxu0 0
    %447 = vmatpush.bf16.msra.mxu0 %v438
    %448 = vmatpush.bf16.msra.mxu0 %v437
    %449 = vmatmul.bf16.gmra.mxu0 %v379
    %v450 = vpop.f32.mrf.mxu0
    %v451 = vadd.f32 %v174, %v450
    %v452 = vpop.f32.mrf.mxu0
    %453 = vdwg.mxu0
    %v454 = vmul.f32 %v398, %v451
    %v455 = vadd.f32 %v342, %v454
    %v456 = vtanh.pop %v455
    %v457 = vsub.f32 0.0, %v456
    %v458 = vmul.f32 %v428, %v457
    %v459 = vadd.f32 %v456, %v458
    %v460 = vpack.c.bf16 %v459, %v459
    %v465 = vunpack.c.l.b16 %v130
    %v466 = vunpack.c.l.b16 %v131
    %v467 = vunpack.c.l.b16 %v132
    %v468 = vunpack.c.l.b16 %v133
    %v469 = vpack.c.b16 %v466, %v465
    %v470 = vpack.c.b16 %v468, %v467
    %v474 = vsel %vm377, %v460, 0
    %476 = vmatpush.bf16.msra.mxu0 0
    %477 = vmatpush.bf16.msra.mxu0 0
    %478 = vmatpush.bf16.msra.mxu0 0
    %479 = vmatpush.bf16.msra.mxu0 0
    %480 = vmatpush.bf16.msra.mxu0 0
    %481 = vmatpush.bf16.msra.mxu0 0
    %482 = vmatpush.bf16.msra.mxu0 %v470
    %483 = vmatpush.bf16.msra.mxu0 %v469
    %484 = vmatmul.bf16.gmra.mxu0 %v474
    %v485 = vpop.f32.mrf.mxu0
    %v486 = vadd.f32 %v160, %v485
    %v487 = vpop.f32.mrf.mxu0
    %488 = vdwg.mxu0
    %v493 = vunpack.c.l.b16 %v144
    %v494 = vunpack.c.l.b16 %v145
    %v495 = vunpack.c.l.b16 %v146
    %v496 = vunpack.c.l.b16 %v147
    %v497 = vpack.c.b16 %v494, %v493
    %v498 = vpack.c.b16 %v496, %v495
    %501 = vmatpush.bf16.msra.mxu0 0
    %502 = vmatpush.bf16.msra.mxu0 0
    %503 = vmatpush.bf16.msra.mxu0 0
    %504 = vmatpush.bf16.msra.mxu0 0
    %505 = vmatpush.bf16.msra.mxu0 0
    %506 = vmatpush.bf16.msra.mxu0 0
    %507 = vmatpush.bf16.msra.mxu0 %v498
    %508 = vmatpush.bf16.msra.mxu0 %v497
    %509 = vmatmul.bf16.gmra.mxu0 %v379
    %v510 = vpop.f32.mrf.mxu0
    %v511 = vadd.f32 0.0, %v510
    %v512 = vpop.f32.mrf.mxu0
    %513 = vdwg.mxu0
    %v514 = vadd.f32 %v486, %v511
    %v515 = vmul.f32 %v514, 0.5
    %v516 = vtanh.pop %v515
    %v517 = vmul.f32 %v516, 0.5
    %v518 = vadd.f32 %v517, 0.5
    %v523 = vunpack.c.l.b16 %v135
    %v524 = vunpack.c.l.b16 %v136
    %v525 = vunpack.c.l.b16 %v137
    %v526 = vunpack.c.l.b16 %v138
    %v527 = vpack.c.b16 %v524, %v523
    %v528 = vpack.c.b16 %v526, %v525
    %531 = vmatpush.bf16.msra.mxu0 0
    %532 = vmatpush.bf16.msra.mxu0 0
    %533 = vmatpush.bf16.msra.mxu0 0
    %534 = vmatpush.bf16.msra.mxu0 0
    %535 = vmatpush.bf16.msra.mxu0 0
    %536 = vmatpush.bf16.msra.mxu0 0
    %537 = vmatpush.bf16.msra.mxu0 %v528
    %538 = vmatpush.bf16.msra.mxu0 %v527
    %539 = vmatmul.bf16.gmra.mxu0 %v474
    %v540 = vpop.f32.mrf.mxu0
    %v541 = vadd.f32 %v165, %v540
    %v542 = vpop.f32.mrf.mxu0
    %543 = vdwg.mxu0
    %v548 = vunpack.c.l.b16 %v149
    %v549 = vunpack.c.l.b16 %v150
    %v550 = vunpack.c.l.b16 %v151
    %v551 = vunpack.c.l.b16 %v152
    %v552 = vpack.c.b16 %v549, %v548
    %v553 = vpack.c.b16 %v551, %v550
    %556 = vmatpush.bf16.msra.mxu0 0
    %557 = vmatpush.bf16.msra.mxu0 0
    %558 = vmatpush.bf16.msra.mxu0 0
    %559 = vmatpush.bf16.msra.mxu0 0
    %560 = vmatpush.bf16.msra.mxu0 0
    %561 = vmatpush.bf16.msra.mxu0 0
    %562 = vmatpush.bf16.msra.mxu0 %v553
    %563 = vmatpush.bf16.msra.mxu0 %v552
    %564 = vmatmul.bf16.gmra.mxu0 %v379
    %v565 = vpop.f32.mrf.mxu0
    %v566 = vadd.f32 0.0, %v565
    %v567 = vpop.f32.mrf.mxu0
    %568 = vdwg.mxu0
    %v569 = vadd.f32 %v541, %v566
    %v570 = vmul.f32 %v569, 0.5
    %v571 = vtanh.pop %v570
    %v572 = vmul.f32 %v571, 0.5
    %v573 = vadd.f32 %v572, 0.5
    %v578 = vunpack.c.l.b16 %v140
    %v579 = vunpack.c.l.b16 %v141
    %v580 = vunpack.c.l.b16 %v142
    %v581 = vunpack.c.l.b16 %v143
    %v582 = vpack.c.b16 %v579, %v578
    %v583 = vpack.c.b16 %v581, %v580
    %586 = vmatpush.bf16.msra.mxu0 0
    %587 = vmatpush.bf16.msra.mxu0 0
    %588 = vmatpush.bf16.msra.mxu0 0
    %589 = vmatpush.bf16.msra.mxu0 0
    %590 = vmatpush.bf16.msra.mxu0 0
    %591 = vmatpush.bf16.msra.mxu0 0
    %592 = vmatpush.bf16.msra.mxu0 %v583
    %593 = vmatpush.bf16.msra.mxu0 %v582
    %594 = vmatmul.bf16.gmra.mxu0 %v474
    %v595 = vpop.f32.mrf.mxu0
    %v596 = vadd.f32 %v170, %v595
    %v597 = vpop.f32.mrf.mxu0
    %598 = vdwg.mxu0
    %v603 = vunpack.c.l.b16 %v154
    %v604 = vunpack.c.l.b16 %v155
    %v605 = vunpack.c.l.b16 %v156
    %v606 = vunpack.c.l.b16 %v157
    %v607 = vpack.c.b16 %v604, %v603
    %v608 = vpack.c.b16 %v606, %v605
    %611 = vmatpush.bf16.msra.mxu0 0
    %612 = vmatpush.bf16.msra.mxu0 0
    %613 = vmatpush.bf16.msra.mxu0 0
    %614 = vmatpush.bf16.msra.mxu0 0
    %615 = vmatpush.bf16.msra.mxu0 0
    %616 = vmatpush.bf16.msra.mxu0 0
    %617 = vmatpush.bf16.msra.mxu0 %v608
    %618 = vmatpush.bf16.msra.mxu0 %v607
    %619 = vmatmul.bf16.gmra.mxu0 %v379
    %v620 = vpop.f32.mrf.mxu0
    %v621 = vadd.f32 %v178, %v620
    %v622 = vpop.f32.mrf.mxu0
    %623 = vdwg.mxu0
    %v624 = vmul.f32 %v518, %v621
    %v625 = vadd.f32 %v596, %v624
    %v626 = vtanh.pop %v625
    %v627 = vsub.f32 0.0, %v626
    %v628 = vmul.f32 %v573, %v627
    %v629 = vadd.f32 %v626, %v628
    %630 = vmatpush.bf16.msra.mxu0 0
    %631 = vmatpush.bf16.msra.mxu0 0
    %632 = vmatpush.bf16.msra.mxu0 0
    %633 = vmatpush.bf16.msra.mxu0 0
    %634 = vmatpush.bf16.msra.mxu0 0
    %635 = vmatpush.bf16.msra.mxu0 0
    %636 = vmatpush.bf16.msra.mxu0 %v374
    %637 = vmatpush.bf16.msra.mxu0 %v373
    %638 = vmatmul.bf16.gmra.mxu0 %v474
    %v639 = vpop.f32.mrf.mxu0
    %v640 = vadd.f32 0.0, %v639
    %v641 = vpop.f32.mrf.mxu0
    %642 = vdwg.mxu0
    %v643 = vadd.f32 %v243, %v640
    %v644 = vmul.f32 %v643, 0.5
    %v645 = vtanh.pop %v644
    %v646 = vmul.f32 %v645, 0.5
    %v647 = vadd.f32 %v646, 0.5
    %648 = vmatpush.bf16.msra.mxu0 0
    %649 = vmatpush.bf16.msra.mxu0 0
    %650 = vmatpush.bf16.msra.mxu0 0
    %651 = vmatpush.bf16.msra.mxu0 0
    %652 = vmatpush.bf16.msra.mxu0 0
    %653 = vmatpush.bf16.msra.mxu0 0
    %654 = vmatpush.bf16.msra.mxu0 %v408
    %655 = vmatpush.bf16.msra.mxu0 %v407
    %656 = vmatmul.bf16.gmra.mxu0 %v474
    %v657 = vpop.f32.mrf.mxu0
    %v658 = vadd.f32 0.0, %v657
    %v659 = vpop.f32.mrf.mxu0
    %660 = vdwg.mxu0
    %v661 = vadd.f32 %v294, %v658
    %v662 = vmul.f32 %v661, 0.5
    %v663 = vtanh.pop %v662
    %v664 = vmul.f32 %v663, 0.5
    %v665 = vadd.f32 %v664, 0.5
    %666 = vmatpush.bf16.msra.mxu0 0
    %667 = vmatpush.bf16.msra.mxu0 0
    %668 = vmatpush.bf16.msra.mxu0 0
    %669 = vmatpush.bf16.msra.mxu0 0
    %670 = vmatpush.bf16.msra.mxu0 0
    %671 = vmatpush.bf16.msra.mxu0 0
    %672 = vmatpush.bf16.msra.mxu0 %v438
    %673 = vmatpush.bf16.msra.mxu0 %v437
    %674 = vmatmul.bf16.gmra.mxu0 %v474
    %v675 = vpop.f32.mrf.mxu0
    %v676 = vadd.f32 %v174, %v675
    %v677 = vpop.f32.mrf.mxu0
    %678 = vdwg.mxu0
    %v679 = vmul.f32 %v647, %v676
    %v680 = vadd.f32 %v345, %v679
    %v681 = vtanh.pop %v680
    %v682 = vsub.f32 %v459, %v681
    %v683 = vmul.f32 %v665, %v682
    %v684 = vadd.f32 %v681, %v683
    %v685 = vpack.c.bf16 %v684, %v684
    %v686 = vpack.c.bf16 %v629, %v629
    %v688 = vsel %vm377, %v685, 0
    %690 = vmatpush.bf16.msra.mxu0 0
    %691 = vmatpush.bf16.msra.mxu0 0
    %692 = vmatpush.bf16.msra.mxu0 0
    %693 = vmatpush.bf16.msra.mxu0 0
    %694 = vmatpush.bf16.msra.mxu0 0
    %695 = vmatpush.bf16.msra.mxu0 0
    %696 = vmatpush.bf16.msra.mxu0 %v470
    %697 = vmatpush.bf16.msra.mxu0 %v469
    %698 = vmatmul.bf16.gmra.mxu0 %v688
    %v699 = vpop.f32.mrf.mxu0
    %v700 = vadd.f32 %v160, %v699
    %v701 = vpop.f32.mrf.mxu0
    %702 = vdwg.mxu0
    %v704 = vsel %vm377, %v686, 0
    %706 = vmatpush.bf16.msra.mxu0 0
    %707 = vmatpush.bf16.msra.mxu0 0
    %708 = vmatpush.bf16.msra.mxu0 0
    %709 = vmatpush.bf16.msra.mxu0 0
    %710 = vmatpush.bf16.msra.mxu0 0
    %711 = vmatpush.bf16.msra.mxu0 0
    %712 = vmatpush.bf16.msra.mxu0 %v498
    %713 = vmatpush.bf16.msra.mxu0 %v497
    %714 = vmatmul.bf16.gmra.mxu0 %v704
    %v715 = vpop.f32.mrf.mxu0
    %v716 = vadd.f32 0.0, %v715
    %v717 = vpop.f32.mrf.mxu0
    %718 = vdwg.mxu0
    %v719 = vadd.f32 %v700, %v716
    %v720 = vmul.f32 %v719, 0.5
    %v721 = vtanh.pop %v720
    %v722 = vmul.f32 %v721, 0.5
    %v723 = vadd.f32 %v722, 0.5
    %724 = vmatpush.bf16.msra.mxu0 0
    %725 = vmatpush.bf16.msra.mxu0 0
    %726 = vmatpush.bf16.msra.mxu0 0
    %727 = vmatpush.bf16.msra.mxu0 0
    %728 = vmatpush.bf16.msra.mxu0 0
    %729 = vmatpush.bf16.msra.mxu0 0
    %730 = vmatpush.bf16.msra.mxu0 %v528
    %731 = vmatpush.bf16.msra.mxu0 %v527
    %732 = vmatmul.bf16.gmra.mxu0 %v688
    %v733 = vpop.f32.mrf.mxu0
    %v734 = vadd.f32 %v165, %v733
    %v735 = vpop.f32.mrf.mxu0
    %736 = vdwg.mxu0
    %737 = vmatpush.bf16.msra.mxu0 0
    %738 = vmatpush.bf16.msra.mxu0 0
    %739 = vmatpush.bf16.msra.mxu0 0
    %740 = vmatpush.bf16.msra.mxu0 0
    %741 = vmatpush.bf16.msra.mxu0 0
    %742 = vmatpush.bf16.msra.mxu0 0
    %743 = vmatpush.bf16.msra.mxu0 %v553
    %744 = vmatpush.bf16.msra.mxu0 %v552
    %745 = vmatmul.bf16.gmra.mxu0 %v704
    %v746 = vpop.f32.mrf.mxu0
    %v747 = vadd.f32 0.0, %v746
    %v748 = vpop.f32.mrf.mxu0
    %749 = vdwg.mxu0
    %v750 = vadd.f32 %v734, %v747
    %v751 = vmul.f32 %v750, 0.5
    %v752 = vtanh.pop %v751
    %v753 = vmul.f32 %v752, 0.5
    %v754 = vadd.f32 %v753, 0.5
    %755 = vmatpush.bf16.msra.mxu0 0
    %756 = vmatpush.bf16.msra.mxu0 0
    %757 = vmatpush.bf16.msra.mxu0 0
    %758 = vmatpush.bf16.msra.mxu0 0
    %759 = vmatpush.bf16.msra.mxu0 0
    %760 = vmatpush.bf16.msra.mxu0 0
    %761 = vmatpush.bf16.msra.mxu0 %v583
    %762 = vmatpush.bf16.msra.mxu0 %v582
    %763 = vmatmul.bf16.gmra.mxu0 %v688
    %v764 = vpop.f32.mrf.mxu0
    %v765 = vadd.f32 %v170, %v764
    %v766 = vpop.f32.mrf.mxu0
    %767 = vdwg.mxu0
    %768 = vmatpush.bf16.msra.mxu0 0
    %769 = vmatpush.bf16.msra.mxu0 0
    %770 = vmatpush.bf16.msra.mxu0 0
    %771 = vmatpush.bf16.msra.mxu0 0
    %772 = vmatpush.bf16.msra.mxu0 0
    %773 = vmatpush.bf16.msra.mxu0 0
    %774 = vmatpush.bf16.msra.mxu0 %v608
    %775 = vmatpush.bf16.msra.mxu0 %v607
    %776 = vmatmul.bf16.gmra.mxu0 %v704
    %v777 = vpop.f32.mrf.mxu0
    %v778 = vadd.f32 %v178, %v777
    %v779 = vpop.f32.mrf.mxu0
    %780 = vdwg.mxu0
    %v781 = vmul.f32 %v723, %v778
    %v782 = vadd.f32 %v765, %v781
    %v783 = vtanh.pop %v782
    %v784 = vsub.f32 %v629, %v783
    %v785 = vmul.f32 %v754, %v784
    %v786 = vadd.f32 %v783, %v785
    %787 = vmatpush.bf16.msra.mxu0 0
    %788 = vmatpush.bf16.msra.mxu0 0
    %789 = vmatpush.bf16.msra.mxu0 0
    %790 = vmatpush.bf16.msra.mxu0 0
    %791 = vmatpush.bf16.msra.mxu0 0
    %792 = vmatpush.bf16.msra.mxu0 0
    %793 = vmatpush.bf16.msra.mxu0 %v374
    %794 = vmatpush.bf16.msra.mxu0 %v373
    %795 = vmatmul.bf16.gmra.mxu0 %v688
    %v796 = vpop.f32.mrf.mxu0
    %v797 = vadd.f32 0.0, %v796
    %v798 = vpop.f32.mrf.mxu0
    %799 = vdwg.mxu0
    %v800 = vadd.f32 %v246, %v797
    %v801 = vmul.f32 %v800, 0.5
    %v802 = vtanh.pop %v801
    %v803 = vmul.f32 %v802, 0.5
    %v804 = vadd.f32 %v803, 0.5
    %805 = vmatpush.bf16.msra.mxu0 0
    %806 = vmatpush.bf16.msra.mxu0 0
    %807 = vmatpush.bf16.msra.mxu0 0
    %808 = vmatpush.bf16.msra.mxu0 0
    %809 = vmatpush.bf16.msra.mxu0 0
    %810 = vmatpush.bf16.msra.mxu0 0
    %811 = vmatpush.bf16.msra.mxu0 %v408
    %812 = vmatpush.bf16.msra.mxu0 %v407
    %813 = vmatmul.bf16.gmra.mxu0 %v688
    %v814 = vpop.f32.mrf.mxu0
    %v815 = vadd.f32 0.0, %v814
    %v816 = vpop.f32.mrf.mxu0
    %817 = vdwg.mxu0
    %v818 = vadd.f32 %v297, %v815
    %v819 = vmul.f32 %v818, 0.5
    %v820 = vtanh.pop %v819
    %v821 = vmul.f32 %v820, 0.5
    %v822 = vadd.f32 %v821, 0.5
    %823 = vmatpush.bf16.msra.mxu0 0
    %824 = vmatpush.bf16.msra.mxu0 0
    %825 = vmatpush.bf16.msra.mxu0 0
    %826 = vmatpush.bf16.msra.mxu0 0
    %827 = vmatpush.bf16.msra.mxu0 0
    %828 = vmatpush.bf16.msra.mxu0 0
    %829 = vmatpush.bf16.msra.mxu0 %v438
    %830 = vmatpush.bf16.msra.mxu0 %v437
    %831 = vmatmul.bf16.gmra.mxu0 %v688
    %v832 = vpop.f32.mrf.mxu0
    %v833 = vadd.f32 %v174, %v832
    %v834 = vpop.f32.mrf.mxu0
    %835 = vdwg.mxu0
    %v836 = vmul.f32 %v804, %v833
    %v837 = vadd.f32 %v348, %v836
    %v838 = vtanh.pop %v837
    %v839 = vsub.f32 %v684, %v838
    %v840 = vmul.f32 %v822, %v839
    %v841 = vadd.f32 %v838, %v840
    %v842 = vpack.c.bf16 %v841, %v841
    %v843 = vpack.c.bf16 %v786, %v786
    %v845 = vsel %vm377, %v842, 0
    %847 = vmatpush.bf16.msra.mxu0 0
    %848 = vmatpush.bf16.msra.mxu0 0
    %849 = vmatpush.bf16.msra.mxu0 0
    %850 = vmatpush.bf16.msra.mxu0 0
    %851 = vmatpush.bf16.msra.mxu0 0
    %852 = vmatpush.bf16.msra.mxu0 0
    %853 = vmatpush.bf16.msra.mxu0 %v470
    %854 = vmatpush.bf16.msra.mxu0 %v469
    %855 = vmatmul.bf16.gmra.mxu0 %v845
    %v856 = vpop.f32.mrf.mxu0
    %v857 = vadd.f32 %v160, %v856
    %v858 = vpop.f32.mrf.mxu0
    %859 = vdwg.mxu0
    %v861 = vsel %vm377, %v843, 0
    %863 = vmatpush.bf16.msra.mxu0 0
    %864 = vmatpush.bf16.msra.mxu0 0
    %865 = vmatpush.bf16.msra.mxu0 0
    %866 = vmatpush.bf16.msra.mxu0 0
    %867 = vmatpush.bf16.msra.mxu0 0
    %868 = vmatpush.bf16.msra.mxu0 0
    %869 = vmatpush.bf16.msra.mxu0 %v498
    %870 = vmatpush.bf16.msra.mxu0 %v497
    %871 = vmatmul.bf16.gmra.mxu0 %v861
    %v872 = vpop.f32.mrf.mxu0
    %v873 = vadd.f32 0.0, %v872
    %v874 = vpop.f32.mrf.mxu0
    %875 = vdwg.mxu0
    %v876 = vadd.f32 %v857, %v873
    %v877 = vmul.f32 %v876, 0.5
    %v878 = vtanh.pop %v877
    %v879 = vmul.f32 %v878, 0.5
    %v880 = vadd.f32 %v879, 0.5
    %881 = vmatpush.bf16.msra.mxu0 0
    %882 = vmatpush.bf16.msra.mxu0 0
    %883 = vmatpush.bf16.msra.mxu0 0
    %884 = vmatpush.bf16.msra.mxu0 0
    %885 = vmatpush.bf16.msra.mxu0 0
    %886 = vmatpush.bf16.msra.mxu0 0
    %887 = vmatpush.bf16.msra.mxu0 %v528
    %888 = vmatpush.bf16.msra.mxu0 %v527
    %889 = vmatmul.bf16.gmra.mxu0 %v845
    %v890 = vpop.f32.mrf.mxu0
    %v891 = vadd.f32 %v165, %v890
    %v892 = vpop.f32.mrf.mxu0
    %893 = vdwg.mxu0
    %894 = vmatpush.bf16.msra.mxu0 0
    %895 = vmatpush.bf16.msra.mxu0 0
    %896 = vmatpush.bf16.msra.mxu0 0
    %897 = vmatpush.bf16.msra.mxu0 0
    %898 = vmatpush.bf16.msra.mxu0 0
    %899 = vmatpush.bf16.msra.mxu0 0
    %900 = vmatpush.bf16.msra.mxu0 %v553
    %901 = vmatpush.bf16.msra.mxu0 %v552
    %902 = vmatmul.bf16.gmra.mxu0 %v861
    %v903 = vpop.f32.mrf.mxu0
    %v904 = vadd.f32 0.0, %v903
    %v905 = vpop.f32.mrf.mxu0
    %906 = vdwg.mxu0
    %v907 = vadd.f32 %v891, %v904
    %v908 = vmul.f32 %v907, 0.5
    %v909 = vtanh.pop %v908
    %v910 = vmul.f32 %v909, 0.5
    %v911 = vadd.f32 %v910, 0.5
    %912 = vmatpush.bf16.msra.mxu0 0
    %913 = vmatpush.bf16.msra.mxu0 0
    %914 = vmatpush.bf16.msra.mxu0 0
    %915 = vmatpush.bf16.msra.mxu0 0
    %916 = vmatpush.bf16.msra.mxu0 0
    %917 = vmatpush.bf16.msra.mxu0 0
    %918 = vmatpush.bf16.msra.mxu0 %v583
    %919 = vmatpush.bf16.msra.mxu0 %v582
    %920 = vmatmul.bf16.gmra.mxu0 %v845
    %v921 = vpop.f32.mrf.mxu0
    %v922 = vadd.f32 %v170, %v921
    %v923 = vpop.f32.mrf.mxu0
    %924 = vdwg.mxu0
    %925 = vmatpush.bf16.msra.mxu0 0
    %926 = vmatpush.bf16.msra.mxu0 0
    %927 = vmatpush.bf16.msra.mxu0 0
    %928 = vmatpush.bf16.msra.mxu0 0
    %929 = vmatpush.bf16.msra.mxu0 0
    %930 = vmatpush.bf16.msra.mxu0 0
    %931 = vmatpush.bf16.msra.mxu0 %v608
    %932 = vmatpush.bf16.msra.mxu0 %v607
    %933 = vmatmul.bf16.gmra.mxu0 %v861
    %v934 = vpop.f32.mrf.mxu0
    %v935 = vadd.f32 %v178, %v934
    %v936 = vpop.f32.mrf.mxu0
    %937 = vdwg.mxu0
    %v938 = vmul.f32 %v880, %v935
    %v939 = vadd.f32 %v922, %v938
    %v940 = vtanh.pop %v939
    %v941 = vsub.f32 %v786, %v940
    %v942 = vmul.f32 %v911, %v941
    %v943 = vadd.f32 %v940, %v942
    %944 = vmatpush.bf16.msra.mxu0 0
    %945 = vmatpush.bf16.msra.mxu0 0
    %946 = vmatpush.bf16.msra.mxu0 0
    %947 = vmatpush.bf16.msra.mxu0 0
    %948 = vmatpush.bf16.msra.mxu0 0
    %949 = vmatpush.bf16.msra.mxu0 0
    %950 = vmatpush.bf16.msra.mxu0 %v374
    %951 = vmatpush.bf16.msra.mxu0 %v373
    %952 = vmatmul.bf16.gmra.mxu0 %v845
    %v953 = vpop.f32.mrf.mxu0
    %v954 = vadd.f32 0.0, %v953
    %v955 = vpop.f32.mrf.mxu0
    %956 = vdwg.mxu0
    %v957 = vadd.f32 %v249, %v954
    %v958 = vmul.f32 %v957, 0.5
    %v959 = vtanh.pop %v958
    %v960 = vmul.f32 %v959, 0.5
    %v961 = vadd.f32 %v960, 0.5
    %962 = vmatpush.bf16.msra.mxu0 0
    %963 = vmatpush.bf16.msra.mxu0 0
    %964 = vmatpush.bf16.msra.mxu0 0
    %965 = vmatpush.bf16.msra.mxu0 0
    %966 = vmatpush.bf16.msra.mxu0 0
    %967 = vmatpush.bf16.msra.mxu0 0
    %968 = vmatpush.bf16.msra.mxu0 %v408
    %969 = vmatpush.bf16.msra.mxu0 %v407
    %970 = vmatmul.bf16.gmra.mxu0 %v845
    %v971 = vpop.f32.mrf.mxu0
    %v972 = vadd.f32 0.0, %v971
    %v973 = vpop.f32.mrf.mxu0
    %974 = vdwg.mxu0
    %v975 = vadd.f32 %v300, %v972
    %v976 = vmul.f32 %v975, 0.5
    %v977 = vtanh.pop %v976
    %v978 = vmul.f32 %v977, 0.5
    %v979 = vadd.f32 %v978, 0.5
    %980 = vmatpush.bf16.msra.mxu0 0
    %981 = vmatpush.bf16.msra.mxu0 0
    %982 = vmatpush.bf16.msra.mxu0 0
    %983 = vmatpush.bf16.msra.mxu0 0
    %984 = vmatpush.bf16.msra.mxu0 0
    %985 = vmatpush.bf16.msra.mxu0 0
    %986 = vmatpush.bf16.msra.mxu0 %v438
    %987 = vmatpush.bf16.msra.mxu0 %v437
    %988 = vmatmul.bf16.gmra.mxu0 %v845
    %v989 = vpop.f32.mrf.mxu0
    %v990 = vadd.f32 %v174, %v989
    %v991 = vpop.f32.mrf.mxu0
    %992 = vdwg.mxu0
    %v993 = vmul.f32 %v961, %v990
    %v994 = vadd.f32 %v351, %v993
    %v995 = vtanh.pop %v994
    %v996 = vsub.f32 %v841, %v995
    %v997 = vmul.f32 %v979, %v996
    %v998 = vadd.f32 %v995, %v997
    %v999 = vpack.c.bf16 %v998, %v998
    %v1000 = vpack.c.bf16 %v943, %v943
    %v1002 = vsel %vm377, %v999, 0
    %1004 = vmatpush.bf16.msra.mxu0 0
    %1005 = vmatpush.bf16.msra.mxu0 0
    %1006 = vmatpush.bf16.msra.mxu0 0
    %1007 = vmatpush.bf16.msra.mxu0 0
    %1008 = vmatpush.bf16.msra.mxu0 0
    %1009 = vmatpush.bf16.msra.mxu0 0
    %1010 = vmatpush.bf16.msra.mxu0 %v470
    %1011 = vmatpush.bf16.msra.mxu0 %v469
    %1012 = vmatmul.bf16.gmra.mxu0 %v1002
    %v1013 = vpop.f32.mrf.mxu0
    %v1014 = vadd.f32 %v160, %v1013
    %v1015 = vpop.f32.mrf.mxu0
    %1016 = vdwg.mxu0
    %v1018 = vsel %vm377, %v1000, 0
    %1020 = vmatpush.bf16.msra.mxu0 0
    %1021 = vmatpush.bf16.msra.mxu0 0
    %1022 = vmatpush.bf16.msra.mxu0 0
    %1023 = vmatpush.bf16.msra.mxu0 0
    %1024 = vmatpush.bf16.msra.mxu0 0
    %1025 = vmatpush.bf16.msra.mxu0 0
    %1026 = vmatpush.bf16.msra.mxu0 %v498
    %1027 = vmatpush.bf16.msra.mxu0 %v497
    %1028 = vmatmul.bf16.gmra.mxu0 %v1018
    %v1029 = vpop.f32.mrf.mxu0
    %v1030 = vadd.f32 0.0, %v1029
    %v1031 = vpop.f32.mrf.mxu0
    %1032 = vdwg.mxu0
    %v1033 = vadd.f32 %v1014, %v1030
    %v1034 = vmul.f32 %v1033, 0.5
    %v1035 = vtanh.pop %v1034
    %v1036 = vmul.f32 %v1035, 0.5
    %v1037 = vadd.f32 %v1036, 0.5
    %1038 = vmatpush.bf16.msra.mxu0 0
    %1039 = vmatpush.bf16.msra.mxu0 0
    %1040 = vmatpush.bf16.msra.mxu0 0
    %1041 = vmatpush.bf16.msra.mxu0 0
    %1042 = vmatpush.bf16.msra.mxu0 0
    %1043 = vmatpush.bf16.msra.mxu0 0
    %1044 = vmatpush.bf16.msra.mxu0 %v528
    %1045 = vmatpush.bf16.msra.mxu0 %v527
    %1046 = vmatmul.bf16.gmra.mxu0 %v1002
    %v1047 = vpop.f32.mrf.mxu0
    %v1048 = vadd.f32 %v165, %v1047
    %v1049 = vpop.f32.mrf.mxu0
    %1050 = vdwg.mxu0
    %1051 = vmatpush.bf16.msra.mxu0 0
    %1052 = vmatpush.bf16.msra.mxu0 0
    %1053 = vmatpush.bf16.msra.mxu0 0
    %1054 = vmatpush.bf16.msra.mxu0 0
    %1055 = vmatpush.bf16.msra.mxu0 0
    %1056 = vmatpush.bf16.msra.mxu0 0
    %1057 = vmatpush.bf16.msra.mxu0 %v553
    %1058 = vmatpush.bf16.msra.mxu0 %v552
    %1059 = vmatmul.bf16.gmra.mxu0 %v1018
    %v1060 = vpop.f32.mrf.mxu0
    %v1061 = vadd.f32 0.0, %v1060
    %v1062 = vpop.f32.mrf.mxu0
    %1063 = vdwg.mxu0
    %v1064 = vadd.f32 %v1048, %v1061
    %v1065 = vmul.f32 %v1064, 0.5
    %v1066 = vtanh.pop %v1065
    %v1067 = vmul.f32 %v1066, 0.5
    %v1068 = vadd.f32 %v1067, 0.5
    %1069 = vmatpush.bf16.msra.mxu0 0
    %1070 = vmatpush.bf16.msra.mxu0 0
    %1071 = vmatpush.bf16.msra.mxu0 0
    %1072 = vmatpush.bf16.msra.mxu0 0
    %1073 = vmatpush.bf16.msra.mxu0 0
    %1074 = vmatpush.bf16.msra.mxu0 0
    %1075 = vmatpush.bf16.msra.mxu0 %v583
    %1076 = vmatpush.bf16.msra.mxu0 %v582
    %1077 = vmatmul.bf16.gmra.mxu0 %v1002
    %v1078 = vpop.f32.mrf.mxu0
    %v1079 = vadd.f32 %v170, %v1078
    %v1080 = vpop.f32.mrf.mxu0
    %1081 = vdwg.mxu0
    %1082 = vmatpush.bf16.msra.mxu0 0
    %1083 = vmatpush.bf16.msra.mxu0 0
    %1084 = vmatpush.bf16.msra.mxu0 0
    %1085 = vmatpush.bf16.msra.mxu0 0
    %1086 = vmatpush.bf16.msra.mxu0 0
    %1087 = vmatpush.bf16.msra.mxu0 0
    %1088 = vmatpush.bf16.msra.mxu0 %v608
    %1089 = vmatpush.bf16.msra.mxu0 %v607
    %1090 = vmatmul.bf16.gmra.mxu0 %v1018
    %v1091 = vpop.f32.mrf.mxu0
    %v1092 = vadd.f32 %v178, %v1091
    %v1093 = vpop.f32.mrf.mxu0
    %1094 = vdwg.mxu0
    %v1095 = vmul.f32 %v1037, %v1092
    %v1096 = vadd.f32 %v1079, %v1095
    %v1097 = vtanh.pop %v1096
    %v1098 = vsub.f32 %v943, %v1097
    %v1099 = vmul.f32 %v1068, %v1098
    %v1100 = vadd.f32 %v1097, %v1099
    %1101 = vmatpush.bf16.msra.mxu0 0
    %1102 = vmatpush.bf16.msra.mxu0 0
    %1103 = vmatpush.bf16.msra.mxu0 0
    %1104 = vmatpush.bf16.msra.mxu0 0
    %1105 = vmatpush.bf16.msra.mxu0 0
    %1106 = vmatpush.bf16.msra.mxu0 0
    %1107 = vmatpush.bf16.msra.mxu0 %v374
    %1108 = vmatpush.bf16.msra.mxu0 %v373
    %1109 = vmatmul.bf16.gmra.mxu0 %v1002
    %v1110 = vpop.f32.mrf.mxu0
    %v1111 = vadd.f32 0.0, %v1110
    %v1112 = vpop.f32.mrf.mxu0
    %1113 = vdwg.mxu0
    %v1114 = vadd.f32 %v252, %v1111
    %v1115 = vmul.f32 %v1114, 0.5
    %v1116 = vtanh.pop %v1115
    %v1117 = vmul.f32 %v1116, 0.5
    %v1118 = vadd.f32 %v1117, 0.5
    %1119 = vmatpush.bf16.msra.mxu0 0
    %1120 = vmatpush.bf16.msra.mxu0 0
    %1121 = vmatpush.bf16.msra.mxu0 0
    %1122 = vmatpush.bf16.msra.mxu0 0
    %1123 = vmatpush.bf16.msra.mxu0 0
    %1124 = vmatpush.bf16.msra.mxu0 0
    %1125 = vmatpush.bf16.msra.mxu0 %v408
    %1126 = vmatpush.bf16.msra.mxu0 %v407
    %1127 = vmatmul.bf16.gmra.mxu0 %v1002
    %v1128 = vpop.f32.mrf.mxu0
    %v1129 = vadd.f32 0.0, %v1128
    %v1130 = vpop.f32.mrf.mxu0
    %1131 = vdwg.mxu0
    %v1132 = vadd.f32 %v303, %v1129
    %v1133 = vmul.f32 %v1132, 0.5
    %v1134 = vtanh.pop %v1133
    %v1135 = vmul.f32 %v1134, 0.5
    %v1136 = vadd.f32 %v1135, 0.5
    %1137 = vmatpush.bf16.msra.mxu0 0
    %1138 = vmatpush.bf16.msra.mxu0 0
    %1139 = vmatpush.bf16.msra.mxu0 0
    %1140 = vmatpush.bf16.msra.mxu0 0
    %1141 = vmatpush.bf16.msra.mxu0 0
    %1142 = vmatpush.bf16.msra.mxu0 0
    %1143 = vmatpush.bf16.msra.mxu0 %v438
    %1144 = vmatpush.bf16.msra.mxu0 %v437
    %1145 = vmatmul.bf16.gmra.mxu0 %v1002
    %v1146 = vpop.f32.mrf.mxu0
    %v1147 = vadd.f32 %v174, %v1146
    %v1148 = vpop.f32.mrf.mxu0
    %1149 = vdwg.mxu0
    %v1150 = vmul.f32 %v1118, %v1147
    %v1151 = vadd.f32 %v354, %v1150
    %v1152 = vtanh.pop %v1151
    %v1153 = vsub.f32 %v998, %v1152
    %v1154 = vmul.f32 %v1136, %v1153
    %v1155 = vadd.f32 %v1152, %v1154
    %v1156 = vpack.c.bf16 %v1155, %v1155
    %v1157 = vpack.c.bf16 %v1100, %v1100
    %v1159 = vsel %vm377, %v1156, 0
    %1161 = vmatpush.bf16.msra.mxu0 0
    %1162 = vmatpush.bf16.msra.mxu0 0
    %1163 = vmatpush.bf16.msra.mxu0 0
    %1164 = vmatpush.bf16.msra.mxu0 0
    %1165 = vmatpush.bf16.msra.mxu0 0
    %1166 = vmatpush.bf16.msra.mxu0 0
    %1167 = vmatpush.bf16.msra.mxu0 %v470
    %1168 = vmatpush.bf16.msra.mxu0 %v469
    %1169 = vmatmul.bf16.gmra.mxu0 %v1159
    %v1170 = vpop.f32.mrf.mxu0
    %v1171 = vadd.f32 %v160, %v1170
    %v1172 = vpop.f32.mrf.mxu0
    %1173 = vdwg.mxu0
    %v1175 = vsel %vm377, %v1157, 0
    %1177 = vmatpush.bf16.msra.mxu0 0
    %1178 = vmatpush.bf16.msra.mxu0 0
    %1179 = vmatpush.bf16.msra.mxu0 0
    %1180 = vmatpush.bf16.msra.mxu0 0
    %1181 = vmatpush.bf16.msra.mxu0 0
    %1182 = vmatpush.bf16.msra.mxu0 0
    %1183 = vmatpush.bf16.msra.mxu0 %v498
    %1184 = vmatpush.bf16.msra.mxu0 %v497
    %1185 = vmatmul.bf16.gmra.mxu0 %v1175
    %v1186 = vpop.f32.mrf.mxu0
    %v1187 = vadd.f32 0.0, %v1186
    %v1188 = vpop.f32.mrf.mxu0
    %1189 = vdwg.mxu0
    %v1190 = vadd.f32 %v1171, %v1187
    %v1191 = vmul.f32 %v1190, 0.5
    %v1192 = vtanh.pop %v1191
    %v1193 = vmul.f32 %v1192, 0.5
    %v1194 = vadd.f32 %v1193, 0.5
    %1195 = vmatpush.bf16.msra.mxu0 0
    %1196 = vmatpush.bf16.msra.mxu0 0
    %1197 = vmatpush.bf16.msra.mxu0 0
    %1198 = vmatpush.bf16.msra.mxu0 0
    %1199 = vmatpush.bf16.msra.mxu0 0
    %1200 = vmatpush.bf16.msra.mxu0 0
    %1201 = vmatpush.bf16.msra.mxu0 %v528
    %1202 = vmatpush.bf16.msra.mxu0 %v527
    %1203 = vmatmul.bf16.gmra.mxu0 %v1159
    %v1204 = vpop.f32.mrf.mxu0
    %v1205 = vadd.f32 %v165, %v1204
    %v1206 = vpop.f32.mrf.mxu0
    %1207 = vdwg.mxu0
    %1208 = vmatpush.bf16.msra.mxu0 0
    %1209 = vmatpush.bf16.msra.mxu0 0
    %1210 = vmatpush.bf16.msra.mxu0 0
    %1211 = vmatpush.bf16.msra.mxu0 0
    %1212 = vmatpush.bf16.msra.mxu0 0
    %1213 = vmatpush.bf16.msra.mxu0 0
    %1214 = vmatpush.bf16.msra.mxu0 %v553
    %1215 = vmatpush.bf16.msra.mxu0 %v552
    %1216 = vmatmul.bf16.gmra.mxu0 %v1175
    %v1217 = vpop.f32.mrf.mxu0
    %v1218 = vadd.f32 0.0, %v1217
    %v1219 = vpop.f32.mrf.mxu0
    %1220 = vdwg.mxu0
    %v1221 = vadd.f32 %v1205, %v1218
    %v1222 = vmul.f32 %v1221, 0.5
    %v1223 = vtanh.pop %v1222
    %v1224 = vmul.f32 %v1223, 0.5
    %v1225 = vadd.f32 %v1224, 0.5
    %1226 = vmatpush.bf16.msra.mxu0 0
    %1227 = vmatpush.bf16.msra.mxu0 0
    %1228 = vmatpush.bf16.msra.mxu0 0
    %1229 = vmatpush.bf16.msra.mxu0 0
    %1230 = vmatpush.bf16.msra.mxu0 0
    %1231 = vmatpush.bf16.msra.mxu0 0
    %1232 = vmatpush.bf16.msra.mxu0 %v583
    %1233 = vmatpush.bf16.msra.mxu0 %v582
    %1234 = vmatmul.bf16.gmra.mxu0 %v1159
    %v1235 = vpop.f32.mrf.mxu0
    %v1236 = vadd.f32 %v170, %v1235
    %v1237 = vpop.f32.mrf.mxu0
    %1238 = vdwg.mxu0
    %1239 = vmatpush.bf16.msra.mxu0 0
    %1240 = vmatpush.bf16.msra.mxu0 0
    %1241 = vmatpush.bf16.msra.mxu0 0
    %1242 = vmatpush.bf16.msra.mxu0 0
    %1243 = vmatpush.bf16.msra.mxu0 0
    %1244 = vmatpush.bf16.msra.mxu0 0
    %1245 = vmatpush.bf16.msra.mxu0 %v608
    %1246 = vmatpush.bf16.msra.mxu0 %v607
    %1247 = vmatmul.bf16.gmra.mxu0 %v1175
    %v1248 = vpop.f32.mrf.mxu0
    %v1249 = vadd.f32 %v178, %v1248
    %v1250 = vpop.f32.mrf.mxu0
    %1251 = vdwg.mxu0
    %v1252 = vmul.f32 %v1194, %v1249
    %v1253 = vadd.f32 %v1236, %v1252
    %v1254 = vtanh.pop %v1253
    %v1255 = vsub.f32 %v1100, %v1254
    %v1256 = vmul.f32 %v1225, %v1255
    %v1257 = vadd.f32 %v1254, %v1256
    %1258 = vmatpush.bf16.msra.mxu0 0
    %1259 = vmatpush.bf16.msra.mxu0 0
    %1260 = vmatpush.bf16.msra.mxu0 0
    %1261 = vmatpush.bf16.msra.mxu0 0
    %1262 = vmatpush.bf16.msra.mxu0 0
    %1263 = vmatpush.bf16.msra.mxu0 0
    %1264 = vmatpush.bf16.msra.mxu0 %v374
    %1265 = vmatpush.bf16.msra.mxu0 %v373
    %1266 = vmatmul.bf16.gmra.mxu0 %v1159
    %v1267 = vpop.f32.mrf.mxu0
    %v1268 = vadd.f32 0.0, %v1267
    %v1269 = vpop.f32.mrf.mxu0
    %1270 = vdwg.mxu0
    %v1271 = vadd.f32 %v255, %v1268
    %v1272 = vmul.f32 %v1271, 0.5
    %v1273 = vtanh.pop %v1272
    %v1274 = vmul.f32 %v1273, 0.5
    %v1275 = vadd.f32 %v1274, 0.5
    %1276 = vmatpush.bf16.msra.mxu0 0
    %1277 = vmatpush.bf16.msra.mxu0 0
    %1278 = vmatpush.bf16.msra.mxu0 0
    %1279 = vmatpush.bf16.msra.mxu0 0
    %1280 = vmatpush.bf16.msra.mxu0 0
    %1281 = vmatpush.bf16.msra.mxu0 0
    %1282 = vmatpush.bf16.msra.mxu0 %v408
    %1283 = vmatpush.bf16.msra.mxu0 %v407
    %1284 = vmatmul.bf16.gmra.mxu0 %v1159
    %v1285 = vpop.f32.mrf.mxu0
    %v1286 = vadd.f32 0.0, %v1285
    %v1287 = vpop.f32.mrf.mxu0
    %1288 = vdwg.mxu0
    %v1289 = vadd.f32 %v306, %v1286
    %v1290 = vmul.f32 %v1289, 0.5
    %v1291 = vtanh.pop %v1290
    %v1292 = vmul.f32 %v1291, 0.5
    %v1293 = vadd.f32 %v1292, 0.5
    %1294 = vmatpush.bf16.msra.mxu0 0
    %1295 = vmatpush.bf16.msra.mxu0 0
    %1296 = vmatpush.bf16.msra.mxu0 0
    %1297 = vmatpush.bf16.msra.mxu0 0
    %1298 = vmatpush.bf16.msra.mxu0 0
    %1299 = vmatpush.bf16.msra.mxu0 0
    %1300 = vmatpush.bf16.msra.mxu0 %v438
    %1301 = vmatpush.bf16.msra.mxu0 %v437
    %1302 = vmatmul.bf16.gmra.mxu0 %v1159
    %v1303 = vpop.f32.mrf.mxu0
    %v1304 = vadd.f32 %v174, %v1303
    %v1305 = vpop.f32.mrf.mxu0
    %1306 = vdwg.mxu0
    %v1307 = vmul.f32 %v1275, %v1304
    %v1308 = vadd.f32 %v357, %v1307
    %v1309 = vtanh.pop %v1308
    %v1310 = vsub.f32 %v1155, %v1309
    %v1311 = vmul.f32 %v1293, %v1310
    %v1312 = vadd.f32 %v1309, %v1311
    %v1313 = vpack.c.bf16 %v1312, %v1312
    %v1314 = vpack.c.bf16 %v1257, %v1257
    %v1316 = vsel %vm377, %v1313, 0
    %1318 = vmatpush.bf16.msra.mxu0 0
    %1319 = vmatpush.bf16.msra.mxu0 0
    %1320 = vmatpush.bf16.msra.mxu0 0
    %1321 = vmatpush.bf16.msra.mxu0 0
    %1322 = vmatpush.bf16.msra.mxu0 0
    %1323 = vmatpush.bf16.msra.mxu0 0
    %1324 = vmatpush.bf16.msra.mxu0 %v470
    %1325 = vmatpush.bf16.msra.mxu0 %v469
    %1326 = vmatmul.bf16.gmra.mxu0 %v1316
    %v1327 = vpop.f32.mrf.mxu0
    %v1328 = vadd.f32 %v160, %v1327
    %v1329 = vpop.f32.mrf.mxu0
    %1330 = vdwg.mxu0
    %v1332 = vsel %vm377, %v1314, 0
    %1334 = vmatpush.bf16.msra.mxu0 0
    %1335 = vmatpush.bf16.msra.mxu0 0
    %1336 = vmatpush.bf16.msra.mxu0 0
    %1337 = vmatpush.bf16.msra.mxu0 0
    %1338 = vmatpush.bf16.msra.mxu0 0
    %1339 = vmatpush.bf16.msra.mxu0 0
    %1340 = vmatpush.bf16.msra.mxu0 %v498
    %1341 = vmatpush.bf16.msra.mxu0 %v497
    %1342 = vmatmul.bf16.gmra.mxu0 %v1332
    %v1343 = vpop.f32.mrf.mxu0
    %v1344 = vadd.f32 0.0, %v1343
    %v1345 = vpop.f32.mrf.mxu0
    %1346 = vdwg.mxu0
    %v1347 = vadd.f32 %v1328, %v1344
    %v1348 = vmul.f32 %v1347, 0.5
    %v1349 = vtanh.pop %v1348
    %v1350 = vmul.f32 %v1349, 0.5
    %v1351 = vadd.f32 %v1350, 0.5
    %1352 = vmatpush.bf16.msra.mxu0 0
    %1353 = vmatpush.bf16.msra.mxu0 0
    %1354 = vmatpush.bf16.msra.mxu0 0
    %1355 = vmatpush.bf16.msra.mxu0 0
    %1356 = vmatpush.bf16.msra.mxu0 0
    %1357 = vmatpush.bf16.msra.mxu0 0
    %1358 = vmatpush.bf16.msra.mxu0 %v528
    %1359 = vmatpush.bf16.msra.mxu0 %v527
    %1360 = vmatmul.bf16.gmra.mxu0 %v1316
    %v1361 = vpop.f32.mrf.mxu0
    %v1362 = vadd.f32 %v165, %v1361
    %v1363 = vpop.f32.mrf.mxu0
    %1364 = vdwg.mxu0
    %1365 = vmatpush.bf16.msra.mxu0 0
    %1366 = vmatpush.bf16.msra.mxu0 0
    %1367 = vmatpush.bf16.msra.mxu0 0
    %1368 = vmatpush.bf16.msra.mxu0 0
    %1369 = vmatpush.bf16.msra.mxu0 0
    %1370 = vmatpush.bf16.msra.mxu0 0
    %1371 = vmatpush.bf16.msra.mxu0 %v553
    %1372 = vmatpush.bf16.msra.mxu0 %v552
    %1373 = vmatmul.bf16.gmra.mxu0 %v1332
    %v1374 = vpop.f32.mrf.mxu0
    %v1375 = vadd.f32 0.0, %v1374
    %v1376 = vpop.f32.mrf.mxu0
    %1377 = vdwg.mxu0
    %v1378 = vadd.f32 %v1362, %v1375
    %v1379 = vmul.f32 %v1378, 0.5
    %v1380 = vtanh.pop %v1379
    %v1381 = vmul.f32 %v1380, 0.5
    %v1382 = vadd.f32 %v1381, 0.5
    %1383 = vmatpush.bf16.msra.mxu0 0
    %1384 = vmatpush.bf16.msra.mxu0 0
    %1385 = vmatpush.bf16.msra.mxu0 0
    %1386 = vmatpush.bf16.msra.mxu0 0
    %1387 = vmatpush.bf16.msra.mxu0 0
    %1388 = vmatpush.bf16.msra.mxu0 0
    %1389 = vmatpush.bf16.msra.mxu0 %v583
    %1390 = vmatpush.bf16.msra.mxu0 %v582
    %1391 = vmatmul.bf16.gmra.mxu0 %v1316
    %v1392 = vpop.f32.mrf.mxu0
    %v1393 = vadd.f32 %v170, %v1392
    %v1394 = vpop.f32.mrf.mxu0
    %1395 = vdwg.mxu0
    %1396 = vmatpush.bf16.msra.mxu0 0
    %1397 = vmatpush.bf16.msra.mxu0 0
    %1398 = vmatpush.bf16.msra.mxu0 0
    %1399 = vmatpush.bf16.msra.mxu0 0
    %1400 = vmatpush.bf16.msra.mxu0 0
    %1401 = vmatpush.bf16.msra.mxu0 0
    %1402 = vmatpush.bf16.msra.mxu0 %v608
    %1403 = vmatpush.bf16.msra.mxu0 %v607
    %1404 = vmatmul.bf16.gmra.mxu0 %v1332
    %v1405 = vpop.f32.mrf.mxu0
    %v1406 = vadd.f32 %v178, %v1405
    %v1407 = vpop.f32.mrf.mxu0
    %1408 = vdwg.mxu0
    %v1409 = vmul.f32 %v1351, %v1406
    %v1410 = vadd.f32 %v1393, %v1409
    %v1411 = vtanh.pop %v1410
    %v1412 = vsub.f32 %v1257, %v1411
    %v1413 = vmul.f32 %v1382, %v1412
    %v1414 = vadd.f32 %v1411, %v1413
    %1415 = vmatpush.bf16.msra.mxu0 0
    %1416 = vmatpush.bf16.msra.mxu0 0
    %1417 = vmatpush.bf16.msra.mxu0 0
    %1418 = vmatpush.bf16.msra.mxu0 0
    %1419 = vmatpush.bf16.msra.mxu0 0
    %1420 = vmatpush.bf16.msra.mxu0 0
    %1421 = vmatpush.bf16.msra.mxu0 %v374
    %1422 = vmatpush.bf16.msra.mxu0 %v373
    %1423 = vmatmul.bf16.gmra.mxu0 %v1316
    %v1424 = vpop.f32.mrf.mxu0
    %v1425 = vadd.f32 0.0, %v1424
    %v1426 = vpop.f32.mrf.mxu0
    %1427 = vdwg.mxu0
    %v1428 = vadd.f32 %v258, %v1425
    %v1429 = vmul.f32 %v1428, 0.5
    %v1430 = vtanh.pop %v1429
    %v1431 = vmul.f32 %v1430, 0.5
    %v1432 = vadd.f32 %v1431, 0.5
    %1433 = vmatpush.bf16.msra.mxu0 0
    %1434 = vmatpush.bf16.msra.mxu0 0
    %1435 = vmatpush.bf16.msra.mxu0 0
    %1436 = vmatpush.bf16.msra.mxu0 0
    %1437 = vmatpush.bf16.msra.mxu0 0
    %1438 = vmatpush.bf16.msra.mxu0 0
    %1439 = vmatpush.bf16.msra.mxu0 %v408
    %1440 = vmatpush.bf16.msra.mxu0 %v407
    %1441 = vmatmul.bf16.gmra.mxu0 %v1316
    %v1442 = vpop.f32.mrf.mxu0
    %v1443 = vadd.f32 0.0, %v1442
    %v1444 = vpop.f32.mrf.mxu0
    %1445 = vdwg.mxu0
    %v1446 = vadd.f32 %v309, %v1443
    %v1447 = vmul.f32 %v1446, 0.5
    %v1448 = vtanh.pop %v1447
    %v1449 = vmul.f32 %v1448, 0.5
    %v1450 = vadd.f32 %v1449, 0.5
    %1451 = vmatpush.bf16.msra.mxu0 0
    %1452 = vmatpush.bf16.msra.mxu0 0
    %1453 = vmatpush.bf16.msra.mxu0 0
    %1454 = vmatpush.bf16.msra.mxu0 0
    %1455 = vmatpush.bf16.msra.mxu0 0
    %1456 = vmatpush.bf16.msra.mxu0 0
    %1457 = vmatpush.bf16.msra.mxu0 %v438
    %1458 = vmatpush.bf16.msra.mxu0 %v437
    %1459 = vmatmul.bf16.gmra.mxu0 %v1316
    %v1460 = vpop.f32.mrf.mxu0
    %v1461 = vadd.f32 %v174, %v1460
    %v1462 = vpop.f32.mrf.mxu0
    %1463 = vdwg.mxu0
    %v1464 = vmul.f32 %v1432, %v1461
    %v1465 = vadd.f32 %v360, %v1464
    %v1466 = vtanh.pop %v1465
    %v1467 = vsub.f32 %v1312, %v1466
    %v1468 = vmul.f32 %v1450, %v1467
    %v1469 = vadd.f32 %v1466, %v1468
    %v1470 = vpack.c.bf16 %v1469, %v1469
    %v1471 = vpack.c.bf16 %v1414, %v1414
    %v1473 = vsel %vm377, %v1470, 0
    %1475 = vmatpush.bf16.msra.mxu0 0
    %1476 = vmatpush.bf16.msra.mxu0 0
    %1477 = vmatpush.bf16.msra.mxu0 0
    %1478 = vmatpush.bf16.msra.mxu0 0
    %1479 = vmatpush.bf16.msra.mxu0 0
    %1480 = vmatpush.bf16.msra.mxu0 0
    %1481 = vmatpush.bf16.msra.mxu0 %v470
    %1482 = vmatpush.bf16.msra.mxu0 %v469
    %1483 = vmatmul.bf16.gmra.mxu0 %v1473
    %v1484 = vpop.f32.mrf.mxu0
    %v1485 = vadd.f32 %v160, %v1484
    %v1486 = vpop.f32.mrf.mxu0
    %1487 = vdwg.mxu0
    %v1489 = vsel %vm377, %v1471, 0
    %1491 = vmatpush.bf16.msra.mxu0 0
    %1492 = vmatpush.bf16.msra.mxu0 0
    %1493 = vmatpush.bf16.msra.mxu0 0
    %1494 = vmatpush.bf16.msra.mxu0 0
    %1495 = vmatpush.bf16.msra.mxu0 0
    %1496 = vmatpush.bf16.msra.mxu0 0
    %1497 = vmatpush.bf16.msra.mxu0 %v498
    %1498 = vmatpush.bf16.msra.mxu0 %v497
    %1499 = vmatmul.bf16.gmra.mxu0 %v1489
    %v1500 = vpop.f32.mrf.mxu0
    %v1501 = vadd.f32 0.0, %v1500
    %v1502 = vpop.f32.mrf.mxu0
    %1503 = vdwg.mxu0
    %v1504 = vadd.f32 %v1485, %v1501
    %v1505 = vmul.f32 %v1504, 0.5
    %v1506 = vtanh.pop %v1505
    %v1507 = vmul.f32 %v1506, 0.5
    %v1508 = vadd.f32 %v1507, 0.5
    %1509 = vmatpush.bf16.msra.mxu0 0
    %1510 = vmatpush.bf16.msra.mxu0 0
    %1511 = vmatpush.bf16.msra.mxu0 0
    %1512 = vmatpush.bf16.msra.mxu0 0
    %1513 = vmatpush.bf16.msra.mxu0 0
    %1514 = vmatpush.bf16.msra.mxu0 0
    %1515 = vmatpush.bf16.msra.mxu0 %v528
    %1516 = vmatpush.bf16.msra.mxu0 %v527
    %1517 = vmatmul.bf16.gmra.mxu0 %v1473
    %v1518 = vpop.f32.mrf.mxu0
    %v1519 = vadd.f32 %v165, %v1518
    %v1520 = vpop.f32.mrf.mxu0
    %1521 = vdwg.mxu0
    %1522 = vmatpush.bf16.msra.mxu0 0
    %1523 = vmatpush.bf16.msra.mxu0 0
    %1524 = vmatpush.bf16.msra.mxu0 0
    %1525 = vmatpush.bf16.msra.mxu0 0
    %1526 = vmatpush.bf16.msra.mxu0 0
    %1527 = vmatpush.bf16.msra.mxu0 0
    %1528 = vmatpush.bf16.msra.mxu0 %v553
    %1529 = vmatpush.bf16.msra.mxu0 %v552
    %1530 = vmatmul.bf16.gmra.mxu0 %v1489
    %v1531 = vpop.f32.mrf.mxu0
    %v1532 = vadd.f32 0.0, %v1531
    %v1533 = vpop.f32.mrf.mxu0
    %1534 = vdwg.mxu0
    %v1535 = vadd.f32 %v1519, %v1532
    %v1536 = vmul.f32 %v1535, 0.5
    %v1537 = vtanh.pop %v1536
    %v1538 = vmul.f32 %v1537, 0.5
    %v1539 = vadd.f32 %v1538, 0.5
    %1540 = vmatpush.bf16.msra.mxu0 0
    %1541 = vmatpush.bf16.msra.mxu0 0
    %1542 = vmatpush.bf16.msra.mxu0 0
    %1543 = vmatpush.bf16.msra.mxu0 0
    %1544 = vmatpush.bf16.msra.mxu0 0
    %1545 = vmatpush.bf16.msra.mxu0 0
    %1546 = vmatpush.bf16.msra.mxu0 %v583
    %1547 = vmatpush.bf16.msra.mxu0 %v582
    %1548 = vmatmul.bf16.gmra.mxu0 %v1473
    %v1549 = vpop.f32.mrf.mxu0
    %v1550 = vadd.f32 %v170, %v1549
    %v1551 = vpop.f32.mrf.mxu0
    %1552 = vdwg.mxu0
    %1553 = vmatpush.bf16.msra.mxu0 0
    %1554 = vmatpush.bf16.msra.mxu0 0
    %1555 = vmatpush.bf16.msra.mxu0 0
    %1556 = vmatpush.bf16.msra.mxu0 0
    %1557 = vmatpush.bf16.msra.mxu0 0
    %1558 = vmatpush.bf16.msra.mxu0 0
    %1559 = vmatpush.bf16.msra.mxu0 %v608
    %1560 = vmatpush.bf16.msra.mxu0 %v607
    %1561 = vmatmul.bf16.gmra.mxu0 %v1489
    %v1562 = vpop.f32.mrf.mxu0
    %v1563 = vadd.f32 %v178, %v1562
    %v1564 = vpop.f32.mrf.mxu0
    %1565 = vdwg.mxu0
    %v1566 = vmul.f32 %v1508, %v1563
    %v1567 = vadd.f32 %v1550, %v1566
    %v1568 = vtanh.pop %v1567
    %v1569 = vsub.f32 %v1414, %v1568
    %v1570 = vmul.f32 %v1539, %v1569
    %v1571 = vadd.f32 %v1568, %v1570
    %1572 = vmatpush.bf16.msra.mxu0 0
    %1573 = vmatpush.bf16.msra.mxu0 0
    %1574 = vmatpush.bf16.msra.mxu0 0
    %1575 = vmatpush.bf16.msra.mxu0 0
    %1576 = vmatpush.bf16.msra.mxu0 0
    %1577 = vmatpush.bf16.msra.mxu0 0
    %1578 = vmatpush.bf16.msra.mxu0 %v374
    %1579 = vmatpush.bf16.msra.mxu0 %v373
    %1580 = vmatmul.bf16.gmra.mxu0 %v1473
    %v1581 = vpop.f32.mrf.mxu0
    %v1582 = vadd.f32 0.0, %v1581
    %v1583 = vpop.f32.mrf.mxu0
    %1584 = vdwg.mxu0
    %v1585 = vadd.f32 %v261, %v1582
    %v1586 = vmul.f32 %v1585, 0.5
    %v1587 = vtanh.pop %v1586
    %v1588 = vmul.f32 %v1587, 0.5
    %v1589 = vadd.f32 %v1588, 0.5
    %1590 = vmatpush.bf16.msra.mxu0 0
    %1591 = vmatpush.bf16.msra.mxu0 0
    %1592 = vmatpush.bf16.msra.mxu0 0
    %1593 = vmatpush.bf16.msra.mxu0 0
    %1594 = vmatpush.bf16.msra.mxu0 0
    %1595 = vmatpush.bf16.msra.mxu0 0
    %1596 = vmatpush.bf16.msra.mxu0 %v408
    %1597 = vmatpush.bf16.msra.mxu0 %v407
    %1598 = vmatmul.bf16.gmra.mxu0 %v1473
    %v1599 = vpop.f32.mrf.mxu0
    %v1600 = vadd.f32 0.0, %v1599
    %v1601 = vpop.f32.mrf.mxu0
    %1602 = vdwg.mxu0
    %v1603 = vadd.f32 %v312, %v1600
    %v1604 = vmul.f32 %v1603, 0.5
    %v1605 = vtanh.pop %v1604
    %v1606 = vmul.f32 %v1605, 0.5
    %v1607 = vadd.f32 %v1606, 0.5
    %1608 = vmatpush.bf16.msra.mxu0 0
    %1609 = vmatpush.bf16.msra.mxu0 0
    %1610 = vmatpush.bf16.msra.mxu0 0
    %1611 = vmatpush.bf16.msra.mxu0 0
    %1612 = vmatpush.bf16.msra.mxu0 0
    %1613 = vmatpush.bf16.msra.mxu0 0
    %1614 = vmatpush.bf16.msra.mxu0 %v438
    %1615 = vmatpush.bf16.msra.mxu0 %v437
    %1616 = vmatmul.bf16.gmra.mxu0 %v1473
    %v1617 = vpop.f32.mrf.mxu0
    %v1618 = vadd.f32 %v174, %v1617
    %v1619 = vpop.f32.mrf.mxu0
    %1620 = vdwg.mxu0
    %v1621 = vmul.f32 %v1589, %v1618
    %v1622 = vadd.f32 %v363, %v1621
    %v1623 = vtanh.pop %v1622
    %v1624 = vsub.f32 %v1469, %v1623
    %v1625 = vmul.f32 %v1607, %v1624
    %v1626 = vadd.f32 %v1623, %v1625
    %v1627 = vpack.c.bf16 %v1626, %v1626
    %v1628 = vpack.c.bf16 %v1571, %v1571
    %v1630 = vsel %vm377, %v1627, 0
    %1632 = vmatpush.bf16.msra.mxu0 0
    %1633 = vmatpush.bf16.msra.mxu0 0
    %1634 = vmatpush.bf16.msra.mxu0 0
    %1635 = vmatpush.bf16.msra.mxu0 0
    %1636 = vmatpush.bf16.msra.mxu0 0
    %1637 = vmatpush.bf16.msra.mxu0 0
    %1638 = vmatpush.bf16.msra.mxu0 %v470
    %1639 = vmatpush.bf16.msra.mxu0 %v469
    %1640 = vmatmul.bf16.gmra.mxu0 %v1630
    %v1641 = vpop.f32.mrf.mxu0
    %v1642 = vadd.f32 %v160, %v1641
    %v1643 = vpop.f32.mrf.mxu0
    %1644 = vdwg.mxu0
    %v1646 = vsel %vm377, %v1628, 0
    %1648 = vmatpush.bf16.msra.mxu0 0
    %1649 = vmatpush.bf16.msra.mxu0 0
    %1650 = vmatpush.bf16.msra.mxu0 0
    %1651 = vmatpush.bf16.msra.mxu0 0
    %1652 = vmatpush.bf16.msra.mxu0 0
    %1653 = vmatpush.bf16.msra.mxu0 0
    %1654 = vmatpush.bf16.msra.mxu0 %v498
    %1655 = vmatpush.bf16.msra.mxu0 %v497
    %1656 = vmatmul.bf16.gmra.mxu0 %v1646
    %v1657 = vpop.f32.mrf.mxu0
    %v1658 = vadd.f32 0.0, %v1657
    %v1659 = vpop.f32.mrf.mxu0
    %1660 = vdwg.mxu0
    %v1661 = vadd.f32 %v1642, %v1658
    %v1662 = vmul.f32 %v1661, 0.5
    %v1663 = vtanh.pop %v1662
    %v1664 = vmul.f32 %v1663, 0.5
    %v1665 = vadd.f32 %v1664, 0.5
    %1666 = vmatpush.bf16.msra.mxu0 0
    %1667 = vmatpush.bf16.msra.mxu0 0
    %1668 = vmatpush.bf16.msra.mxu0 0
    %1669 = vmatpush.bf16.msra.mxu0 0
    %1670 = vmatpush.bf16.msra.mxu0 0
    %1671 = vmatpush.bf16.msra.mxu0 0
    %1672 = vmatpush.bf16.msra.mxu0 %v528
    %1673 = vmatpush.bf16.msra.mxu0 %v527
    %1674 = vmatmul.bf16.gmra.mxu0 %v1630
    %v1675 = vpop.f32.mrf.mxu0
    %v1676 = vadd.f32 %v165, %v1675
    %v1677 = vpop.f32.mrf.mxu0
    %1678 = vdwg.mxu0
    %1679 = vmatpush.bf16.msra.mxu0 0
    %1680 = vmatpush.bf16.msra.mxu0 0
    %1681 = vmatpush.bf16.msra.mxu0 0
    %1682 = vmatpush.bf16.msra.mxu0 0
    %1683 = vmatpush.bf16.msra.mxu0 0
    %1684 = vmatpush.bf16.msra.mxu0 0
    %1685 = vmatpush.bf16.msra.mxu0 %v553
    %1686 = vmatpush.bf16.msra.mxu0 %v552
    %1687 = vmatmul.bf16.gmra.mxu0 %v1646
    %v1688 = vpop.f32.mrf.mxu0
    %v1689 = vadd.f32 0.0, %v1688
    %v1690 = vpop.f32.mrf.mxu0
    %1691 = vdwg.mxu0
    %v1692 = vadd.f32 %v1676, %v1689
    %v1693 = vmul.f32 %v1692, 0.5
    %v1694 = vtanh.pop %v1693
    %v1695 = vmul.f32 %v1694, 0.5
    %v1696 = vadd.f32 %v1695, 0.5
    %1697 = vmatpush.bf16.msra.mxu0 0
    %1698 = vmatpush.bf16.msra.mxu0 0
    %1699 = vmatpush.bf16.msra.mxu0 0
    %1700 = vmatpush.bf16.msra.mxu0 0
    %1701 = vmatpush.bf16.msra.mxu0 0
    %1702 = vmatpush.bf16.msra.mxu0 0
    %1703 = vmatpush.bf16.msra.mxu0 %v583
    %1704 = vmatpush.bf16.msra.mxu0 %v582
    %1705 = vmatmul.bf16.gmra.mxu0 %v1630
    %v1706 = vpop.f32.mrf.mxu0
    %v1707 = vadd.f32 %v170, %v1706
    %v1708 = vpop.f32.mrf.mxu0
    %1709 = vdwg.mxu0
    %1710 = vmatpush.bf16.msra.mxu0 0
    %1711 = vmatpush.bf16.msra.mxu0 0
    %1712 = vmatpush.bf16.msra.mxu0 0
    %1713 = vmatpush.bf16.msra.mxu0 0
    %1714 = vmatpush.bf16.msra.mxu0 0
    %1715 = vmatpush.bf16.msra.mxu0 0
    %1716 = vmatpush.bf16.msra.mxu0 %v608
    %1717 = vmatpush.bf16.msra.mxu0 %v607
    %1718 = vmatmul.bf16.gmra.mxu0 %v1646
    %v1719 = vpop.f32.mrf.mxu0
    %v1720 = vadd.f32 %v178, %v1719
    %v1721 = vpop.f32.mrf.mxu0
    %1722 = vdwg.mxu0
    %v1723 = vmul.f32 %v1665, %v1720
    %v1724 = vadd.f32 %v1707, %v1723
    %v1725 = vtanh.pop %v1724
    %v1726 = vsub.f32 %v1571, %v1725
    %v1727 = vmul.f32 %v1696, %v1726
    %v1728 = vadd.f32 %v1725, %v1727
    %1730 = vrot.lane.b32.xlu0 %v786, 32
    %v1731 = vpop.permute.xlu0 %1730
    %1734 = vrot.lane.b32.xlu0 %v943, 64
    %v1735 = vpop.permute.xlu0 %1734
    %1738 = vrot.lane.b32.xlu0 %v1100, 96
    %v1739 = vpop.permute.xlu0 %1738
    %1742 = vrot.lane.b32.xlu0 %v1414, 32
    %v1743 = vpop.permute.xlu0 %1742
    %1746 = vrot.lane.b32.xlu0 %v1571, 64
    %v1747 = vpop.permute.xlu0 %1746
    %1750 = vrot.lane.b32.xlu0 %v1728, 96
    %v1751 = vpop.permute.xlu0 %1750
    %v1753 = vsel %vm377, %v629, %v1731
    %vm1754 = vcmask 523264
    %v1755 = vsel %vm1754, %v1753, %v1735
    %vm1756 = vcmask 785408
    %v1757 = vsel %vm1756, %v1755, %v1739
    %v1758 = vsel %vm377, %v1257, %v1743
    %v1759 = vsel %vm1754, %v1758, %v1747
    %v1760 = vsel %vm1756, %v1759, %v1751
    %v1761 = vpack.c.bf16 %v1757, %v1757
    %v1762 = vpack.c.bf16 %v1760, %v1760
    %v1763 = vld [vmem:[%s9] sm:$0xf]
    %v1764 = vld [vmem:[%s9 + $0x4] sm:$0xf]
    %v1765 = vld [vmem:[%s9 + $0x8] sm:$0xf]
    %v1766 = vld [vmem:[%s9 + $0xc] sm:$0xf]
    %v1767 = vld [vmem:[%s9 + $0x10] sm:$0xf]
    %v1768 = vld [vmem:[%s9 + $0x14] sm:$0xf]
    %v1769 = vld [vmem:[%s9 + $0x18] sm:$0xf]
    %v1770 = vld [vmem:[%s9 + $0x1c] sm:$0xf]
    %v1771 = vld [vmem:[%s9 + $0x20] sm:$0xf]
    %v1772 = vld [vmem:[%s9 + $0x24] sm:$0xf]
    %v1773 = vld [vmem:[%s9 + $0x28] sm:$0xf]
    %v1774 = vld [vmem:[%s9 + $0x2c] sm:$0xf]
    %v1775 = vld [vmem:[%s9 + $0x30] sm:$0xf]
    %v1776 = vld [vmem:[%s9 + $0x34] sm:$0xf]
    %v1777 = vld [vmem:[%s9 + $0x38] sm:$0xf]
    %v1778 = vld [vmem:[%s9 + $0x3c] sm:$0xf]
    %v1779 = vld [vmem:[%s9 + $0x40] sm:$0xf]
    %v1780 = vld [vmem:[%s9 + $0x44] sm:$0xf]
    %v1781 = vld [vmem:[%s9 + $0x48] sm:$0xf]
    %v1782 = vld [vmem:[%s9 + $0x4c] sm:$0xf]
    %v1783 = vld [vmem:[%s9 + $0x50] sm:$0xf]
    %v1784 = vld [vmem:[%s9 + $0x54] sm:$0xf]
    %v1785 = vld [vmem:[%s9 + $0x58] sm:$0xf]
    %v1786 = vld [vmem:[%s9 + $0x5c] sm:$0xf]
    %v1787 = vld [vmem:[%s9 + $0x60] sm:$0xf]
    %v1788 = vld [vmem:[%s9 + $0x64] sm:$0xf]
    %v1789 = vld [vmem:[%s9 + $0x68] sm:$0xf]
    %v1790 = vld [vmem:[%s9 + $0x6c] sm:$0xf]
    %v1791 = vld [vmem:[%s9 + $0x70] sm:$0xf]
    %v1792 = vld [vmem:[%s9 + $0x74] sm:$0xf]
    %v1793 = vld [vmem:[%s9 + $0x78] sm:$0xf]
    %v1794 = vld [vmem:[%s9 + $0x7c] sm:$0xf]
    %v1795 = vld [vmem:[%s10] sm:$0x1]
    %v1797 = vperm.slane %v1795, 0
    %v1831 = vunpack.c.l.b16 %v1763
    %v1832 = vunpack.c.l.b16 %v1764
    %v1833 = vunpack.c.l.b16 %v1765
    %v1834 = vunpack.c.l.b16 %v1766
    %v1835 = vunpack.c.l.b16 %v1767
    %v1836 = vunpack.c.l.b16 %v1768
    %v1837 = vunpack.c.l.b16 %v1769
    %v1838 = vunpack.c.l.b16 %v1770
    %v1839 = vunpack.c.l.b16 %v1771
    %v1840 = vunpack.c.l.b16 %v1772
    %v1841 = vunpack.c.l.b16 %v1773
    %v1842 = vunpack.c.l.b16 %v1774
    %v1843 = vunpack.c.l.b16 %v1775
    %v1844 = vunpack.c.l.b16 %v1776
    %v1845 = vunpack.c.l.b16 %v1777
    %v1846 = vunpack.c.l.b16 %v1778
    %v1847 = vunpack.c.l.b16 %v1779
    %v1848 = vunpack.c.l.b16 %v1780
    %v1849 = vunpack.c.l.b16 %v1781
    %v1850 = vunpack.c.l.b16 %v1782
    %v1851 = vunpack.c.l.b16 %v1783
    %v1852 = vunpack.c.l.b16 %v1784
    %v1853 = vunpack.c.l.b16 %v1785
    %v1854 = vunpack.c.l.b16 %v1786
    %v1855 = vunpack.c.l.b16 %v1787
    %v1856 = vunpack.c.l.b16 %v1788
    %v1857 = vunpack.c.l.b16 %v1789
    %v1858 = vunpack.c.l.b16 %v1790
    %v1859 = vunpack.c.l.b16 %v1791
    %v1860 = vunpack.c.l.b16 %v1792
    %v1861 = vunpack.c.l.b16 %v1793
    %v1862 = vunpack.c.l.b16 %v1794
    %v1863 = vpack.c.b16 %v1832, %v1831
    %v1864 = vpack.c.b16 %v1834, %v1833
    %v1865 = vpack.c.b16 %v1836, %v1835
    %v1866 = vpack.c.b16 %v1838, %v1837
    %v1867 = vpack.c.b16 %v1840, %v1839
    %v1868 = vpack.c.b16 %v1842, %v1841
    %v1869 = vpack.c.b16 %v1844, %v1843
    %v1870 = vpack.c.b16 %v1846, %v1845
    %v1871 = vpack.c.b16 %v1848, %v1847
    %v1872 = vpack.c.b16 %v1850, %v1849
    %v1873 = vpack.c.b16 %v1852, %v1851
    %v1874 = vpack.c.b16 %v1854, %v1853
    %v1875 = vpack.c.b16 %v1856, %v1855
    %v1876 = vpack.c.b16 %v1858, %v1857
    %v1877 = vpack.c.b16 %v1860, %v1859
    %v1878 = vpack.c.b16 %v1862, %v1861
    %1895 = vmatpush.bf16.msra.mxu0 %v1870
    %1896 = vmatpush.bf16.msra.mxu0 %v1869
    %1897 = vmatpush.bf16.msra.mxu0 %v1868
    %1898 = vmatpush.bf16.msra.mxu0 %v1867
    %1899 = vmatpush.bf16.msra.mxu0 %v1866
    %1900 = vmatpush.bf16.msra.mxu0 %v1865
    %1901 = vmatpush.bf16.msra.mxu0 %v1864
    %1902 = vmatpush.bf16.msra.mxu0 %v1863
    %1903 = vmatmul.bf16.gmra.mxu0 %v1761
    %v1904 = vpop.f32.mrf.mxu0
    %v1905 = vadd.f32 %v1797, %v1904
    %v1906 = vpop.f32.mrf.mxu0
    %1907 = vdwg.mxu0
    %1908 = vmatpush.bf16.msra.mxu0 %v1878
    %1909 = vmatpush.bf16.msra.mxu0 %v1877
    %1910 = vmatpush.bf16.msra.mxu0 %v1876
    %1911 = vmatpush.bf16.msra.mxu0 %v1875
    %1912 = vmatpush.bf16.msra.mxu0 %v1874
    %1913 = vmatpush.bf16.msra.mxu0 %v1873
    %1914 = vmatpush.bf16.msra.mxu0 %v1872
    %1915 = vmatpush.bf16.msra.mxu0 %v1871
    %1916 = vmatmul.bf16.gmra.mxu0 %v1762
    %v1917 = vpop.f32.mrf.mxu0
    %v1918 = vadd.f32 %v1905, %v1917
    %v1919 = vpop.f32.mrf.mxu0
    %1920 = vdwg.mxu0
    %v1921 = vmax.f32 %v1918, 0.0
    %v1922 = vpack.c.bf16 %v1921, %v1921
    %v1923 = vld [vmem:[%s11] sm:$0xf]
    %v1924 = vld [vmem:[%s11 + $0x4] sm:$0xf]
    %v1925 = vld [vmem:[%s11 + $0x8] sm:$0xf]
    %v1926 = vld [vmem:[%s11 + $0xc] sm:$0xf]
    %v1927 = vld [vmem:[%s11 + $0x10] sm:$0xf]
    %v1928 = vld [vmem:[%s11 + $0x14] sm:$0xf]
    %v1929 = vld [vmem:[%s11 + $0x18] sm:$0xf]
    %v1930 = vld [vmem:[%s11 + $0x1c] sm:$0xf]
    %v1931 = vld [vmem:[%s11 + $0x20] sm:$0xf]
    %v1932 = vld [vmem:[%s11 + $0x24] sm:$0xf]
    %v1933 = vld [vmem:[%s11 + $0x28] sm:$0xf]
    %v1934 = vld [vmem:[%s11 + $0x2c] sm:$0xf]
    %v1935 = vld [vmem:[%s11 + $0x30] sm:$0xf]
    %v1936 = vld [vmem:[%s11 + $0x34] sm:$0xf]
    %v1937 = vld [vmem:[%s11 + $0x38] sm:$0xf]
    %v1938 = vld [vmem:[%s11 + $0x3c] sm:$0xf]
    %v1939 = vld [vmem:[%s12] sm:$0x1]
    %v1941 = vperm.slane %v1939, 0
    %v1959 = vunpack.c.l.b16 %v1923
    %v1960 = vunpack.c.l.b16 %v1924
    %v1961 = vunpack.c.l.b16 %v1925
    %v1962 = vunpack.c.l.b16 %v1926
    %v1963 = vunpack.c.l.b16 %v1927
    %v1964 = vunpack.c.l.b16 %v1928
    %v1965 = vunpack.c.l.b16 %v1929
    %v1966 = vunpack.c.l.b16 %v1930
    %v1967 = vunpack.c.l.b16 %v1931
    %v1968 = vunpack.c.l.b16 %v1932
    %v1969 = vunpack.c.l.b16 %v1933
    %v1970 = vunpack.c.l.b16 %v1934
    %v1971 = vunpack.c.l.b16 %v1935
    %v1972 = vunpack.c.l.b16 %v1936
    %v1973 = vunpack.c.l.b16 %v1937
    %v1974 = vunpack.c.l.b16 %v1938
    %v1975 = vpack.c.b16 %v1960, %v1959
    %v1976 = vpack.c.b16 %v1962, %v1961
    %v1977 = vpack.c.b16 %v1964, %v1963
    %v1978 = vpack.c.b16 %v1966, %v1965
    %v1979 = vpack.c.b16 %v1968, %v1967
    %v1980 = vpack.c.b16 %v1970, %v1969
    %v1981 = vpack.c.b16 %v1972, %v1971
    %v1982 = vpack.c.b16 %v1974, %v1973
    %1991 = vmatpush.bf16.msra.mxu0 %v1982
    %1992 = vmatpush.bf16.msra.mxu0 %v1981
    %1993 = vmatpush.bf16.msra.mxu0 %v1980
    %1994 = vmatpush.bf16.msra.mxu0 %v1979
    %1995 = vmatpush.bf16.msra.mxu0 %v1978
    %1996 = vmatpush.bf16.msra.mxu0 %v1977
    %1997 = vmatpush.bf16.msra.mxu0 %v1976
    %1998 = vmatpush.bf16.msra.mxu0 %v1975
    %1999 = vmatmul.bf16.gmra.mxu0 %v1922
    %v2000 = vpop.f32.mrf.mxu0
    %v2001 = vadd.f32 %v1941, %v2000
    %v2002 = vpop.f32.mrf.mxu0
    %2003 = vdwg.mxu0
    %v2004 = vmax.f32 %v2001, 0.0
    %v2005 = vld [vmem:[%s13] sm:$0x1]
    %v2007 = vperm.slane %v2005, 0
    %v2009 = vmul.f32 %v2004, %v2007
    %v2010 = vsel %vm1754, %v2009, 0.0
    %2011 = vadd.xlane.f32.xlu0 %v2010
    %v2012 = vpop.xlane.xlu0 %2011
    %v2013 = vld [vmem:[#allocation2] sm:$0x1]
    %v2015 = vperm.slane %v2013, 0
    %v2017 = vadd.f32 %v2012, %v2015
    %vm2018 = vcmask 7168
    %2019 = vst.msk [vmem:[%s15] sm:$0xff] %vm2018, %v2017
    // Predicated region
    $region78: #{tpu_custom_call.1} parent=1 // pred_check
      _
    $region79: #{tpu_custom_call.1} parent=1 // pred_check_branch
      %2021 = sbr.rel (0) target = $region81
    $region80: #{tpu_custom_call.1} parent=1 // pred_region
      _
    $region81: #{tpu_custom_call.1} parent=1 // pred_fallthru
      _
    // Predicated region
    $region82: #{tpu_custom_call.1} parent=1 // pred_check
      _
    $region83: #{tpu_custom_call.1} parent=1 // pred_check_branch
      %2023 = sbr.rel (0) target = $region85
    $region84: #{tpu_custom_call.1} parent=1 // pred_region
      _
    $region85: #{tpu_custom_call.1} parent=1 // pred_fallthru
      _
    %2024 = vsyncpa [#allocation4], 1
    %2025 = vsyncpa [#allocation6], 1
    %2026 = vsyncpa [#allocation9], 1

</llo_original>
